<compile_context>
chip_gen: v7x
topology: tpu7x:2x2x1
jax: 0.10.0
libtpu: 0.0.40
codegen_flags: <defaults>
</compile_context>

<pallas_src>
import functools

import jax
import jax.numpy as jnp
from jax import lax
from jax.experimental import pallas as pl
from jax.experimental.pallas import tpu as pltpu

_VMEM = pl.BlockSpec(memory_space=pltpu.MemorySpace.VMEM)


# ---------------------------------------------------------------------------
# Pallas kernels (one invocation each, whole problem in VMEM)
# ---------------------------------------------------------------------------
def _conv_gemm_kernel(a_ref, b_ref, o_ref, *, relu):
    # o = (relu)(a @ b)            bf16 x bf16 -> f32 accumulate on the MXU
    acc = jnp.dot(a_ref[...], b_ref[...], preferred_element_type=jnp.float32)
    if relu:
        acc = jnp.maximum(acc, 0.0)
    o_ref[...] = acc.astype(o_ref.dtype)


def _conv_gemm_bias_kernel(a_ref, b_ref, bias_ref, o_ref, *, relu):
    # o = (relu)(a @ b + bias)
    acc = jnp.dot(a_ref[...], b_ref[...], preferred_element_type=jnp.float32)
    acc = acc + bias_ref[...]
    if relu:
        acc = jnp.maximum(acc, 0.0)
    o_ref[...] = acc.astype(o_ref.dtype)


def _conv_bn_relu_kernel(a_ref, b_ref, gamma_ref, beta_ref, o_ref, *, eps):
    # Fused: conv-GEMM -> training-mode BatchNorm (batch statistics, centered
    # two-pass variance, reductions routed to the MXU) -> ReLU.
    x = jnp.dot(a_ref[...], b_ref[...], preferred_element_type=jnp.float32)  # (M, C) f32
    m = x.shape[0]
    ones = jnp.ones((1, m), jnp.float32)
    mean = jnp.dot(ones, x, preferred_element_type=jnp.float32) * (1.0 / m)       # (1, C)
    xc = x - mean
    var = jnp.dot(ones, xc * xc, preferred_element_type=jnp.float32) * (1.0 / m)  # (1, C)
    scale = lax.rsqrt(var + eps) * gamma_ref[...]
    y = xc * scale + beta_ref[...]
    o_ref[...] = jnp.maximum(y, 0.0).astype(o_ref.dtype)


def pallas_conv_gemm(a, b, bias=None, relu=False, out_dtype=jnp.float32):
    """(M,K)@(K,N) [+bias] [ReLU], unpadded full-array VMEM tiles, no grid."""
    M, K = a.shape
    K2, N = b.shape
    assert K == K2
    if bias is None:
        return pl.pallas_call(
            functools.partial(_conv_gemm_kernel, relu=relu),
            out_shape=jax.ShapeDtypeStruct((M, N), out_dtype),
            in_specs=[_VMEM, _VMEM],
            out_specs=_VMEM,
        )(a, b)
    bias2d = bias.astype(jnp.float32).reshape(1, N)
    return pl.pallas_call(
        functools.partial(_conv_gemm_bias_kernel, relu=relu),
        out_shape=jax.ShapeDtypeStruct((M, N), out_dtype),
        in_specs=[_VMEM, _VMEM, _VMEM],
        out_specs=_VMEM,
    )(a, b, bias2d)


def pallas_conv_bn_relu(a, b, gamma, beta, eps=1e-5, out_dtype=jnp.bfloat16):
    """Fused conv-GEMM + BatchNorm(training stats) + ReLU in one kernel."""
    M, K = a.shape
    _, N = b.shape
    g2d = gamma.astype(jnp.float32).reshape(1, N)
    b2d = beta.astype(jnp.float32).reshape(1, N)
    return pl.pallas_call(
        functools.partial(_conv_bn_relu_kernel, eps=eps),
        out_shape=jax.ShapeDtypeStruct((M, N), out_dtype),
        in_specs=[_VMEM, _VMEM, _VMEM, _VMEM],
        out_specs=_VMEM,
    )(a, b, g2d, b2d)


# ---------------------------------------------------------------------------
# im2col glue (plain JAX, fused by XLA under the outer jit)
# ---------------------------------------------------------------------------
def _im2col(x_nhwc, kh, kw, stride, pad):
    N, H, W, C = x_nhwc.shape
    if pad:
        x_nhwc = jnp.pad(x_nhwc, ((0, 0), (pad, pad), (pad, pad), (0, 0)))
    Hp, Wp = H + 2 * pad, W + 2 * pad
    Ho = (Hp - kh) // stride + 1
    Wo = (Wp - kw) // stride + 1
    cols = [x_nhwc[:, i:i + stride * Ho:stride, j:j + stride * Wo:stride, :]
            for i in range(kh) for j in range(kw)]
    patches = jnp.stack(cols, axis=3)                       # (N,Ho,Wo,kh*kw,C)
    return patches.reshape(N * Ho * Wo, kh * kw * C), (N, Ho, Wo)


def _w_mat(w_oihw):
    # OIHW -> (kh*kw*Cin, Cout) matching im2col column ordering, bf16 for MXU.
    co, ci, kh, kw = w_oihw.shape
    return jnp.transpose(w_oihw, (2, 3, 1, 0)).reshape(kh * kw * ci, co).astype(jnp.bfloat16)


# ---------------------------------------------------------------------------
# full Conv2dClassifier forward (Pallas)
# ---------------------------------------------------------------------------
@jax.jit
def conv2d_classifier_forward(x_nchw, params):
    x = jnp.transpose(x_nchw, (0, 2, 3, 1)).astype(jnp.bfloat16)   # NCHW -> NHWC
    # Conv2d(1->8, k=5, pad=4, bias=False) + BatchNorm2d(8) + ReLU   (fused kernel)
    a, (n, ho, wo) = _im2col(x, 5, 5, 1, 4)
    x = pallas_conv_bn_relu(a, _w_mat(params["w1"]), params["gamma"], params["beta"])
    x = x.reshape(n, ho, wo, -1)
    # Conv2d(8->16, k=5, pad=4, stride=2, bias=False) + ReLU
    a, (n, ho, wo) = _im2col(x, 5, 5, 2, 4)
    x = pallas_conv_gemm(a, _w_mat(params["w2"]), relu=True,
                         out_dtype=jnp.bfloat16).reshape(n, ho, wo, -1)
    # Conv2d(16->32, k=5, pad=4, stride=2, bias=False) + ReLU
    a, (n, ho, wo) = _im2col(x, 5, 5, 2, 4)
    x = pallas_conv_gemm(a, _w_mat(params["w3"]), relu=True,
                         out_dtype=jnp.bfloat16).reshape(n, ho, wo, -1)
    # Conv2d(32->64, k=3, pad=0, bias=True)
    a, (n, ho, wo) = _im2col(x, 3, 3, 1, 0)
    x = pallas_conv_gemm(a, _w_mat(params["w4"]), bias=params["b4"], relu=False,
                         out_dtype=jnp.float32).reshape(n, ho, wo, -1)
    return jnp.transpose(x, (0, 3, 1, 2))                          # NHWC -> NCHW


# ---------------------------------------------------------------------------
# pure-JAX f32 reference (lax.conv) for correctness checking
# ---------------------------------------------------------------------------
@jax.jit
def conv2d_classifier_reference(x_nchw, params, eps=1e-5):
    dn = ("NHWC", "HWIO", "NHWC")
    x = jnp.transpose(x_nchw, (0, 2, 3, 1)).astype(jnp.float32)

    def conv(x, w_oihw, stride, pad):
        w = jnp.transpose(w_oihw, (2, 3, 1, 0)).astype(jnp.float32)
        return lax.conv_general_dilated(
            x, w, (stride, stride), [(pad, pad), (pad, pad)], dimension_numbers=dn)

    x = conv(x, params["w1"], 1, 4)
    mean = jnp.mean(x, axis=(0, 1, 2), keepdims=True)
    var = jnp.mean((x - mean) ** 2, axis=(0, 1, 2), keepdims=True)
    x = (x - mean) / jnp.sqrt(var + eps) * params["gamma"] + params["beta"]
    x = jnp.maximum(x, 0.0)
    x = jnp.maximum(conv(x, params["w2"], 2, 4), 0.0)
    x = jnp.maximum(conv(x, params["w3"], 2, 4), 0.0)
    x = conv(x, params["w4"], 1, 0) + params["b4"]
    return jnp.transpose(x, (0, 3, 1, 2))


# ---------------------------------------------------------------------------
if __name__ == "__main__":
    key = jax.random.PRNGKey(0)
    ks = jax.random.split(key, 8)

    ndf = 8
    params = {
        "w1": 0.1 * jax.random.normal(ks[0], (ndf, 1, 5, 5), jnp.float32),            # Conv2d(1,8,5,p4)
        "gamma": 1.0 + 0.1 * jax.random.normal(ks[1], (ndf,), jnp.float32),            # BN weight
        "beta": 0.1 * jax.random.normal(ks[2], (ndf,), jnp.float32),                   # BN bias
        "w2": 0.1 * jax.random.normal(ks[3], (2 * ndf, ndf, 5, 5), jnp.float32),       # Conv2d(8,16,5,s2)
        "w3": 0.1 * jax.random.normal(ks[4], (4 * ndf, 2 * ndf, 5, 5), jnp.float32),   # Conv2d(16,32,5,s2)
        "w4": 0.1 * jax.random.normal(ks[5], (8 * ndf, 4 * ndf, 3, 3), jnp.float32),   # Conv2d(32,64,3)
        "b4": 0.1 * jax.random.normal(ks[6], (8 * ndf,), jnp.float32),
    }

    # input: NCHW, tensor_size=17 => (batch=2, 1, 17, 17)
    x = jax.random.normal(ks[7], (2, 1, 17, 17), jnp.float32)

    out = jax.block_until_ready(conv2d_classifier_forward(x, params))
    ref = jax.block_until_ready(conv2d_classifier_reference(x, params))

    # conv arithmetic: 17 -(k5,p4)-> 21 -(k5,p4,s2)-> 13 -(k5,p4,s2)-> 9 -(k3)-> 7
    assert out.shape == (2, 8 * ndf, 7, 7), out.shape
    assert bool(jnp.all(jnp.isfinite(out)))
    # bf16 operands vs f32 reference: loose per-element tolerance, tight mean error.
    assert float(jnp.mean(jnp.abs(out - ref))) < 2e-2, float(jnp.mean(jnp.abs(out - ref)))
    assert jnp.allclose(out, ref, rtol=5e-2, atol=5e-2), float(jnp.max(jnp.abs(out - ref)))

    print("KERNEL_OK")
</pallas_src>

<mosaic_0001>
module attributes {stable_mosaic.version = 11 : i64} {
  func.func @_conv_bn_relu_kernel(%arg0: memref<882x25xbf16, #tpu.memory_space<vmem>>, %arg1: memref<25x8xbf16, #tpu.memory_space<vmem>>, %arg2: memref<1x8xf32, #tpu.memory_space<vmem>>, %arg3: memref<1x8xf32, #tpu.memory_space<vmem>>, %arg4: memref<882x8xbf16, #tpu.memory_space<vmem>>) attributes {dimension_semantics = [], scalar_prefetch = 0 : i64, scratch_operands = 0 : i64, tpu.core_type = #tpu.core_type<tc>} {
    %c0 = arith.constant 0 : index
    %c0_0 = arith.constant 0 : index
    %0 = vector.load %arg0[%c0, %c0_0] : memref<882x25xbf16, #tpu.memory_space<vmem>>, vector<882x25xbf16>
    %c0_1 = arith.constant 0 : index
    %c0_2 = arith.constant 0 : index
    %1 = vector.load %arg1[%c0_1, %c0_2] : memref<25x8xbf16, #tpu.memory_space<vmem>>, vector<25x8xbf16>
    %cst = arith.constant dense<0.000000e+00> : vector<882x8xf32>
    %2 = tpu.matmul %0, %1, %cst {dimension_numbers = #tpu.dot_dimension_numbers<[1], [0], [0], [1], [0, 0, 1, 1], [], []>} : vector<882x25xbf16>, vector<25x8xbf16>, vector<882x8xf32> -> vector<882x8xf32>
    %cst_3 = arith.constant 1.000000e+00 : f32
    %3 = vector.broadcast %cst_3 : f32 to vector<1x882xf32>
    %cst_4 = arith.constant dense<0.000000e+00> : vector<1x8xf32>
    %4 = tpu.matmul %3, %2, %cst_4 {dimension_numbers = #tpu.dot_dimension_numbers<[1], [0], [0], [1], [0, 0, 1, 1], [], []>} : vector<1x882xf32>, vector<882x8xf32>, vector<1x8xf32> -> vector<1x8xf32>
    %cst_5 = arith.constant 0.00113378686 : f32
    %5 = vector.broadcast %cst_5 : f32 to vector<1x8xf32>
    %6 = arith.mulf %4, %5 : vector<1x8xf32>
    %7 = vector.broadcast %6 : vector<1x8xf32> to vector<882x8xf32>
    %8 = arith.subf %2, %7 : vector<882x8xf32>
    %9 = arith.mulf %8, %8 : vector<882x8xf32>
    %cst_6 = arith.constant dense<0.000000e+00> : vector<1x8xf32>
    %10 = tpu.matmul %3, %9, %cst_6 {dimension_numbers = #tpu.dot_dimension_numbers<[1], [0], [0], [1], [0, 0, 1, 1], [], []>} : vector<1x882xf32>, vector<882x8xf32>, vector<1x8xf32> -> vector<1x8xf32>
    %cst_7 = arith.constant 0.00113378686 : f32
    %11 = vector.broadcast %cst_7 : f32 to vector<1x8xf32>
    %12 = arith.mulf %10, %11 : vector<1x8xf32>
    %cst_8 = arith.constant 9.99999974E-6 : f32
    %13 = vector.broadcast %cst_8 : f32 to vector<1x8xf32>
    %14 = arith.addf %12, %13 : vector<1x8xf32>
    %15 = math.rsqrt %14 : vector<1x8xf32>
    %c0_9 = arith.constant 0 : index
    %c0_10 = arith.constant 0 : index
    %16 = vector.load %arg2[%c0_9, %c0_10] : memref<1x8xf32, #tpu.memory_space<vmem>>, vector<1x8xf32>
    %17 = arith.mulf %15, %16 : vector<1x8xf32>
    %18 = vector.broadcast %17 : vector<1x8xf32> to vector<882x8xf32>
    %19 = arith.mulf %8, %18 : vector<882x8xf32>
    %c0_11 = arith.constant 0 : index
    %c0_12 = arith.constant 0 : index
    %20 = vector.load %arg3[%c0_11, %c0_12] : memref<1x8xf32, #tpu.memory_space<vmem>>, vector<1x8xf32>
    %21 = vector.broadcast %20 : vector<1x8xf32> to vector<882x8xf32>
    %22 = arith.addf %19, %21 : vector<882x8xf32>
    %cst_13 = arith.constant 0.000000e+00 : f32
    %23 = vector.broadcast %cst_13 : f32 to vector<882x8xf32>
    %24 = arith.maximumf %22, %23 : vector<882x8xf32>
    %25 = arith.truncf %24 : vector<882x8xf32> to vector<882x8xbf16>
    %c0_14 = arith.constant 0 : index
    %c0_15 = arith.constant 0 : index
    %26 = vector.load %arg4[%c0_14, %c0_15] : memref<882x8xbf16, #tpu.memory_space<vmem>>, vector<882x8xbf16>
    tpu.vector_store %arg4[%c0_14, %c0_15], %25 {strides = array<i32>} : memref<882x8xbf16, #tpu.memory_space<vmem>>, vector<882x8xbf16>,
    return
  }
}

module attributes {stable_mosaic.version = 11 : i64} {
  func.func @_conv_gemm_kernel(%arg0: memref<338x200xbf16, #tpu.memory_space<vmem>>, %arg1: memref<200x16xbf16, #tpu.memory_space<vmem>>, %arg2: memref<338x16xbf16, #tpu.memory_space<vmem>>) attributes {dimension_semantics = [], scalar_prefetch = 0 : i64, scratch_operands = 0 : i64, tpu.core_type = #tpu.core_type<tc>} {
    %c0 = arith.constant 0 : index
    %c0_0 = arith.constant 0 : index
    %0 = vector.load %arg0[%c0, %c0_0] : memref<338x200xbf16, #tpu.memory_space<vmem>>, vector<338x200xbf16>
    %c0_1 = arith.constant 0 : index
    %c0_2 = arith.constant 0 : index
    %1 = vector.load %arg1[%c0_1, %c0_2] : memref<200x16xbf16, #tpu.memory_space<vmem>>, vector<200x16xbf16>
    %cst = arith.constant dense<0.000000e+00> : vector<338x16xf32>
    %2 = tpu.matmul %0, %1, %cst {dimension_numbers = #tpu.dot_dimension_numbers<[1], [0], [0], [1], [0, 0, 1, 1], [], []>} : vector<338x200xbf16>, vector<200x16xbf16>, vector<338x16xf32> -> vector<338x16xf32>
    %cst_3 = arith.constant 0.000000e+00 : f32
    %3 = vector.broadcast %cst_3 : f32 to vector<338x16xf32>
    %4 = arith.maximumf %2, %3 : vector<338x16xf32>
    %5 = arith.truncf %4 : vector<338x16xf32> to vector<338x16xbf16>
    %c0_4 = arith.constant 0 : index
    %c0_5 = arith.constant 0 : index
    %6 = vector.load %arg2[%c0_4, %c0_5] : memref<338x16xbf16, #tpu.memory_space<vmem>>, vector<338x16xbf16>
    tpu.vector_store %arg2[%c0_4, %c0_5], %5 {strides = array<i32>} : memref<338x16xbf16, #tpu.memory_space<vmem>>, vector<338x16xbf16>,
    return
  }
}

module attributes {stable_mosaic.version = 11 : i64} {
  func.func @_conv_gemm_kernel(%arg0: memref<162x400xbf16, #tpu.memory_space<vmem>>, %arg1: memref<400x32xbf16, #tpu.memory_space<vmem>>, %arg2: memref<162x32xbf16, #tpu.memory_space<vmem>>) attributes {dimension_semantics = [], scalar_prefetch = 0 : i64, scratch_operands = 0 : i64, tpu.core_type = #tpu.core_type<tc>} {
    %c0 = arith.constant 0 : index
    %c0_0 = arith.constant 0 : index
    %0 = vector.load %arg0[%c0, %c0_0] : memref<162x400xbf16, #tpu.memory_space<vmem>>, vector<162x400xbf16>
    %c0_1 = arith.constant 0 : index
    %c0_2 = arith.constant 0 : index
    %1 = vector.load %arg1[%c0_1, %c0_2] : memref<400x32xbf16, #tpu.memory_space<vmem>>, vector<400x32xbf16>
    %cst = arith.constant dense<0.000000e+00> : vector<162x32xf32>
    %2 = tpu.matmul %0, %1, %cst {dimension_numbers = #tpu.dot_dimension_numbers<[1], [0], [0], [1], [0, 0, 1, 1], [], []>} : vector<162x400xbf16>, vector<400x32xbf16>, vector<162x32xf32> -> vector<162x32xf32>
    %cst_3 = arith.constant 0.000000e+00 : f32
    %3 = vector.broadcast %cst_3 : f32 to vector<162x32xf32>
    %4 = arith.maximumf %2, %3 : vector<162x32xf32>
    %5 = arith.truncf %4 : vector<162x32xf32> to vector<162x32xbf16>
    %c0_4 = arith.constant 0 : index
    %c0_5 = arith.constant 0 : index
    %6 = vector.load %arg2[%c0_4, %c0_5] : memref<162x32xbf16, #tpu.memory_space<vmem>>, vector<162x32xbf16>
    tpu.vector_store %arg2[%c0_4, %c0_5], %5 {strides = array<i32>} : memref<162x32xbf16, #tpu.memory_space<vmem>>, vector<162x32xbf16>,
    return
  }
}

module attributes {stable_mosaic.version = 11 : i64} {
  func.func @_conv_gemm_bias_kernel(%arg0: memref<98x288xbf16, #tpu.memory_space<vmem>>, %arg1: memref<288x64xbf16, #tpu.memory_space<vmem>>, %arg2: memref<1x64xf32, #tpu.memory_space<vmem>>, %arg3: memref<98x64xf32, #tpu.memory_space<vmem>>) attributes {dimension_semantics = [], scalar_prefetch = 0 : i64, scratch_operands = 0 : i64, tpu.core_type = #tpu.core_type<tc>} {
    %c0 = arith.constant 0 : index
    %c0_0 = arith.constant 0 : index
    %0 = vector.load %arg0[%c0, %c0_0] : memref<98x288xbf16, #tpu.memory_space<vmem>>, vector<98x288xbf16>
    %c0_1 = arith.constant 0 : index
    %c0_2 = arith.constant 0 : index
    %1 = vector.load %arg1[%c0_1, %c0_2] : memref<288x64xbf16, #tpu.memory_space<vmem>>, vector<288x64xbf16>
    %cst = arith.constant dense<0.000000e+00> : vector<98x64xf32>
    %2 = tpu.matmul %0, %1, %cst {dimension_numbers = #tpu.dot_dimension_numbers<[1], [0], [0], [1], [0, 0, 1, 1], [], []>} : vector<98x288xbf16>, vector<288x64xbf16>, vector<98x64xf32> -> vector<98x64xf32>
    %c0_3 = arith.constant 0 : index
    %c0_4 = arith.constant 0 : index
    %3 = vector.load %arg2[%c0_3, %c0_4] : memref<1x64xf32, #tpu.memory_space<vmem>>, vector<1x64xf32>
    %4 = vector.broadcast %3 : vector<1x64xf32> to vector<98x64xf32>
    %5 = arith.addf %2, %4 : vector<98x64xf32>
    %c0_5 = arith.constant 0 : index
    %c0_6 = arith.constant 0 : index
    %6 = vector.load %arg3[%c0_5, %c0_6] : memref<98x64xf32, #tpu.memory_space<vmem>>, vector<98x64xf32>
    tpu.vector_store %arg3[%c0_5, %c0_6], %5 {strides = array<i32>} : memref<98x64xf32, #tpu.memory_space<vmem>>, vector<98x64xf32>,
    return
  }
}

</mosaic_0001>

<llo_original>
// kernel: conv2d_classifier_forward.4
$region0: #{conv2d_classifier_forward.4}
  #allocation0 [shape = 'u32[]', space=smem, size = 0x4, offset = 0x4, fixed_abs, tag = 'smem constant byte address 0x4 - core index']
  #allocation1 [shape = 'u32[144,128]{1,0:T(1,128)}', space=vmem, size = 0x12000, scoped, tag = 'internal scratch']
  %s0 = inlined_call_operand.vmem [shape: bf16[882,25], index: 0, kind: input, shape index: {}]
  %s1 = inlined_call_operand.vmem [shape: bf16[25,8], index: 1, kind: input, shape index: {}]
  %s2 = inlined_call_operand.hbm [shape: f32[1,8], index: 2, kind: input, shape index: {}]
  %s3 = inlined_call_operand.hbm [shape: f32[1,8], index: 3, kind: input, shape index: {}]
  %s4 = inlined_call_operand.vmem [shape: bf16[882,8], index: 4, kind: output, shape index: {}]
  %s5 = sld [smem:[#allocation0]]
  $region34: #{conv2d_classifier_forward.4} parent=0
    _
  %s7 = ssub.s32 1, %s5
  %s8 = scalar_select 0, %s7, %s5
  $region1: #{conv2d_classifier_forward.4} parent=0
    #allocation2 [shape = 'u8[512]{0}', space=vmem, size = 0x400, scoped, tag = 'input window, operand 2, single buffered']
    #allocation3 [shape = 's32[1]{0}', space=sflag, size = 0x4, scoped, tag = 'scoped memory for conv2d_classifier_forward.4']
    #allocation4 [shape = 'u8[512]{0}', space=vmem, size = 0x400, scoped, tag = 'input window, operand 3, single buffered']
    #allocation5 [shape = 's32[1]{0}', space=sflag, size = 0x4, scoped, tag = 'scoped memory for conv2d_classifier_forward.4']
    %9 = vsyncpa [#allocation3], 0
    %10 = vsyncpa [#allocation5], 0
    // Predicated region
    $region2: #{conv2d_classifier_forward.4} parent=1 // pred_check
      _
    $region3: #{conv2d_classifier_forward.4} parent=1 // pred_check_branch
      %12 = sbr.rel (0) target = $region5
    $region4: #{conv2d_classifier_forward.4} parent=1 // pred_region
      _
    $region5: #{conv2d_classifier_forward.4} parent=1 // pred_fallthru
      _
    // Predicated region
    $region6: #{conv2d_classifier_forward.4} parent=1 // pred_check
      _
    $region7: #{conv2d_classifier_forward.4} parent=1 // pred_check_branch
      %14 = sbr.rel (0) target = $region9
    $region8: #{conv2d_classifier_forward.4} parent=1 // pred_region
      _
    $region9: #{conv2d_classifier_forward.4} parent=1 // pred_fallthru
      _
    // Predicated region
    $region10: #{conv2d_classifier_forward.4} parent=1 // pred_check
      _
    $region11: #{conv2d_classifier_forward.4} parent=1 // pred_check_branch
      %16 = sbr.rel (0) target = $region13
    $region12: #{conv2d_classifier_forward.4} parent=1 // pred_region
      %s18 = ssub.s32 16, 16
      %19 = vsyncadd [#allocation3], %s18
      %s21 = sshll.u32 [#allocation2], 4
      %s22 = int_to_ptr.vmem [resolvable:$true] %s21
      %24 = dma.hbm_to_vmem [thread:$0]  %s2, 16, %s22, [#allocation3]
    $region13: #{conv2d_classifier_forward.4} parent=1 // pred_fallthru
      _
    // Predicated region
    $region14: #{conv2d_classifier_forward.4} parent=1 // pred_check
      _
    $region15: #{conv2d_classifier_forward.4} parent=1 // pred_check_branch
      %26 = sbr.rel (0) target = $region17
    $region16: #{conv2d_classifier_forward.4} parent=1 // pred_region
      %s28 = ssub.s32 16, 16
      %29 = vsyncadd [#allocation5], %s28
      %s31 = sshll.u32 [#allocation4], 4
      %s32 = int_to_ptr.vmem [resolvable:$true] %s31
      %34 = dma.hbm_to_vmem [thread:$0]  %s3, 16, %s32, [#allocation5]
    $region17: #{conv2d_classifier_forward.4} parent=1 // pred_fallthru
      _
    // Predicated region
    $region18: #{conv2d_classifier_forward.4} parent=1 // pred_check
      _
    $region19: #{conv2d_classifier_forward.4} parent=1 // pred_check_branch
      %36 = sbr.rel (0) target = $region21
    $region20: #{conv2d_classifier_forward.4} parent=1 // pred_region
      %37 = dma.done [#allocation3], 16
    $region21: #{conv2d_classifier_forward.4} parent=1 // pred_fallthru
      _
    // Predicated region
    $region22: #{conv2d_classifier_forward.4} parent=1 // pred_check
      _
    $region23: #{conv2d_classifier_forward.4} parent=1 // pred_check_branch
      %39 = sbr.rel (0) target = $region25
    $region24: #{conv2d_classifier_forward.4} parent=1 // pred_region
      %40 = dma.done [#allocation5], 16
    $region25: #{conv2d_classifier_forward.4} parent=1 // pred_fallthru
      _
    %v42 = vld [vmem:[%s0] sm:$0xf]
    %v43 = vld [vmem:[%s0 + $0x4] sm:$0xf]
    %v44 = vld [vmem:[%s0 + $0x8] sm:$0xf]
    %v45 = vld [vmem:[%s0 + $0xc] sm:$0xf]
    %v46 = vld [vmem:[%s0 + $0x10] sm:$0xf]
    %v47 = vld [vmem:[%s0 + $0x14] sm:$0xf]
    %v48 = vld [vmem:[%s0 + $0x18] sm:$0xf]
    %v49 = vld [vmem:[%s0 + $0x1c] sm:$0xf]
    %v50 = vld [vmem:[%s0 + $0x20] sm:$0xf]
    %v51 = vld [vmem:[%s0 + $0x24] sm:$0xf]
    %v52 = vld [vmem:[%s0 + $0x28] sm:$0xf]
    %v53 = vld [vmem:[%s0 + $0x2c] sm:$0xf]
    %v54 = vld [vmem:[%s0 + $0x30] sm:$0xf]
    %v55 = vld [vmem:[%s0 + $0x34] sm:$0xf]
    %v56 = vld [vmem:[%s0 + $0x38] sm:$0xf]
    %v57 = vld [vmem:[%s0 + $0x3c] sm:$0xf]
    %v58 = vld [vmem:[%s0 + $0x40] sm:$0xf]
    %v59 = vld [vmem:[%s0 + $0x44] sm:$0xf]
    %v60 = vld [vmem:[%s0 + $0x48] sm:$0xf]
    %v61 = vld [vmem:[%s0 + $0x4c] sm:$0xf]
    %v62 = vld [vmem:[%s0 + $0x50] sm:$0xf]
    %v63 = vld [vmem:[%s0 + $0x54] sm:$0xf]
    %v64 = vld [vmem:[%s0 + $0x58] sm:$0xf]
    %v65 = vld [vmem:[%s0 + $0x5c] sm:$0xf]
    %v66 = vld [vmem:[%s0 + $0x60] sm:$0xf]
    %v67 = vld [vmem:[%s0 + $0x64] sm:$0xf]
    %v68 = vld [vmem:[%s0 + $0x68] sm:$0xf]
    %v69 = vld [vmem:[%s0 + $0x6c] sm:$0xf]
    %v70 = vld [vmem:[%s0 + $0x70] sm:$0xf]
    %v71 = vld [vmem:[%s0 + $0x74] sm:$0xf]
    %v72 = vld [vmem:[%s0 + $0x78] sm:$0xf]
    %v73 = vld [vmem:[%s0 + $0x7c] sm:$0xf]
    %v74 = vld [vmem:[%s0 + $0x80] sm:$0xf]
    %v75 = vld [vmem:[%s0 + $0x84] sm:$0xf]
    %v76 = vld [vmem:[%s0 + $0x88] sm:$0xf]
    %v77 = vld [vmem:[%s0 + $0x8c] sm:$0xf]
    %v78 = vld [vmem:[%s0 + $0x90] sm:$0xf]
    %v79 = vld [vmem:[%s0 + $0x94] sm:$0xf]
    %v80 = vld [vmem:[%s0 + $0x98] sm:$0xf]
    %v81 = vld [vmem:[%s0 + $0x9c] sm:$0xf]
    %v82 = vld [vmem:[%s0 + $0xa0] sm:$0xf]
    %v83 = vld [vmem:[%s0 + $0xa4] sm:$0xf]
    %v84 = vld [vmem:[%s0 + $0xa8] sm:$0xf]
    %v85 = vld [vmem:[%s0 + $0xac] sm:$0xf]
    %v86 = vld [vmem:[%s0 + $0xb0] sm:$0xf]
    %v87 = vld [vmem:[%s0 + $0xb4] sm:$0xf]
    %v88 = vld [vmem:[%s0 + $0xb8] sm:$0xf]
    %v89 = vld [vmem:[%s0 + $0xbc] sm:$0xf]
    %v90 = vld [vmem:[%s0 + $0xc0] sm:$0xf]
    %v91 = vld [vmem:[%s0 + $0xc4] sm:$0xf]
    %v92 = vld [vmem:[%s0 + $0xc8] sm:$0xf]
    %v93 = vld [vmem:[%s0 + $0xcc] sm:$0xf]
    %v94 = vld [vmem:[%s0 + $0xd0] sm:$0xf]
    %v95 = vld [vmem:[%s0 + $0xd4] sm:$0xf]
    %v96 = vld [vmem:[%s0 + $0xd8] sm:$0xf]
    %v97 = vld [vmem:[%s0 + $0xdc] sm:$0xf]
    %v98 = vld [vmem:[%s0 + $0xe0] sm:$0xf]
    %v99 = vld [vmem:[%s0 + $0xe4] sm:$0xf]
    %v100 = vld [vmem:[%s0 + $0xe8] sm:$0xf]
    %v101 = vld [vmem:[%s0 + $0xec] sm:$0xf]
    %v102 = vld [vmem:[%s0 + $0xf0] sm:$0xf]
    %v103 = vld [vmem:[%s0 + $0xf4] sm:$0xf]
    %v104 = vld [vmem:[%s0 + $0xf8] sm:$0xf]
    %v105 = vld [vmem:[%s0 + $0xfc] sm:$0xf]
    %v106 = vld [vmem:[%s0 + $0x100] sm:$0xf]
    %v107 = vld [vmem:[%s0 + $0x104] sm:$0xf]
    %v108 = vld [vmem:[%s0 + $0x108] sm:$0xf]
    %v109 = vld [vmem:[%s0 + $0x10c] sm:$0xf]
    %v110 = vld [vmem:[%s0 + $0x110] sm:$0xf]
    %v111 = vld [vmem:[%s0 + $0x114] sm:$0xf]
    %v112 = vld [vmem:[%s0 + $0x118] sm:$0xf]
    %v113 = vld [vmem:[%s0 + $0x11c] sm:$0xf]
    %v114 = vld [vmem:[%s0 + $0x120] sm:$0xf]
    %v115 = vld [vmem:[%s0 + $0x124] sm:$0xf]
    %v116 = vld [vmem:[%s0 + $0x128] sm:$0xf]
    %v117 = vld [vmem:[%s0 + $0x12c] sm:$0xf]
    %v118 = vld [vmem:[%s0 + $0x130] sm:$0xf]
    %v119 = vld [vmem:[%s0 + $0x134] sm:$0xf]
    %v120 = vld [vmem:[%s0 + $0x138] sm:$0xf]
    %v121 = vld [vmem:[%s0 + $0x13c] sm:$0xf]
    %v122 = vld [vmem:[%s0 + $0x140] sm:$0xf]
    %v123 = vld [vmem:[%s0 + $0x144] sm:$0xf]
    %v124 = vld [vmem:[%s0 + $0x148] sm:$0xf]
    %v125 = vld [vmem:[%s0 + $0x14c] sm:$0xf]
    %v126 = vld [vmem:[%s0 + $0x150] sm:$0xf]
    %v127 = vld [vmem:[%s0 + $0x154] sm:$0xf]
    %v128 = vld [vmem:[%s0 + $0x158] sm:$0xf]
    %v129 = vld [vmem:[%s0 + $0x15c] sm:$0xf]
    %v130 = vld [vmem:[%s0 + $0x160] sm:$0xf]
    %v131 = vld [vmem:[%s0 + $0x164] sm:$0xf]
    %v132 = vld [vmem:[%s0 + $0x168] sm:$0xf]
    %v133 = vld [vmem:[%s0 + $0x16c] sm:$0xf]
    %v134 = vld [vmem:[%s0 + $0x170] sm:$0xf]
    %v135 = vld [vmem:[%s0 + $0x174] sm:$0xf]
    %v136 = vld [vmem:[%s0 + $0x178] sm:$0xf]
    %v137 = vld [vmem:[%s0 + $0x17c] sm:$0xf]
    %v138 = vld [vmem:[%s0 + $0x180] sm:$0xf]
    %v139 = vld [vmem:[%s0 + $0x184] sm:$0xf]
    %v140 = vld [vmem:[%s0 + $0x188] sm:$0xf]
    %v141 = vld [vmem:[%s0 + $0x18c] sm:$0xf]
    %v142 = vld [vmem:[%s0 + $0x190] sm:$0xf]
    %v143 = vld [vmem:[%s0 + $0x194] sm:$0xf]
    %v144 = vld [vmem:[%s0 + $0x198] sm:$0xf]
    %v145 = vld [vmem:[%s0 + $0x19c] sm:$0xf]
    %v146 = vld [vmem:[%s0 + $0x1a0] sm:$0xf]
    %v147 = vld [vmem:[%s0 + $0x1a4] sm:$0xf]
    %v148 = vld [vmem:[%s0 + $0x1a8] sm:$0xf]
    %v149 = vld [vmem:[%s0 + $0x1ac] sm:$0xf]
    %v150 = vld [vmem:[%s0 + $0x1b0] sm:$0xf]
    %v151 = vld [vmem:[%s0 + $0x1b4] sm:$0xf]
    %v152 = vld [vmem:[%s0 + $0x1b8] sm:$0x1]
    %v153 = vld [vmem:[%s1] sm:$0xf]
    %v154 = vld [vmem:[%s1 + $0x4] sm:$0xf]
    %v155 = vld [vmem:[%s1 + $0x8] sm:$0xf]
    %v156 = vld [vmem:[%s1 + $0xc] sm:$0x1]
    %v268 = vunpack.c.l.b16 %v42
    %v269 = vunpack.c.l.b16 %v43
    %v270 = vunpack.c.l.b16 %v44
    %v271 = vunpack.c.l.b16 %v45
    %v272 = vunpack.c.l.b16 %v46
    %v273 = vunpack.c.l.b16 %v47
    %v274 = vunpack.c.l.b16 %v48
    %v275 = vunpack.c.l.b16 %v49
    %v276 = vunpack.c.l.b16 %v50
    %v277 = vunpack.c.l.b16 %v51
    %v278 = vunpack.c.l.b16 %v52
    %v279 = vunpack.c.l.b16 %v53
    %v280 = vunpack.c.l.b16 %v54
    %v281 = vunpack.c.l.b16 %v55
    %v282 = vunpack.c.l.b16 %v56
    %v283 = vunpack.c.l.b16 %v57
    %v284 = vunpack.c.l.b16 %v58
    %v285 = vunpack.c.l.b16 %v59
    %v286 = vunpack.c.l.b16 %v60
    %v287 = vunpack.c.l.b16 %v61
    %v288 = vunpack.c.l.b16 %v62
    %v289 = vunpack.c.l.b16 %v63
    %v290 = vunpack.c.l.b16 %v64
    %v291 = vunpack.c.l.b16 %v65
    %v292 = vunpack.c.l.b16 %v66
    %v293 = vunpack.c.l.b16 %v67
    %v294 = vunpack.c.l.b16 %v68
    %v295 = vunpack.c.l.b16 %v69
    %v296 = vunpack.c.l.b16 %v70
    %v297 = vunpack.c.l.b16 %v71
    %v298 = vunpack.c.l.b16 %v72
    %v299 = vunpack.c.l.b16 %v73
    %v300 = vunpack.c.l.b16 %v74
    %v301 = vunpack.c.l.b16 %v75
    %v302 = vunpack.c.l.b16 %v76
    %v303 = vunpack.c.l.b16 %v77
    %v304 = vunpack.c.l.b16 %v78
    %v305 = vunpack.c.l.b16 %v79
    %v306 = vunpack.c.l.b16 %v80
    %v307 = vunpack.c.l.b16 %v81
    %v308 = vunpack.c.l.b16 %v82
    %v309 = vunpack.c.l.b16 %v83
    %v310 = vunpack.c.l.b16 %v84
    %v311 = vunpack.c.l.b16 %v85
    %v312 = vunpack.c.l.b16 %v86
    %v313 = vunpack.c.l.b16 %v87
    %v314 = vunpack.c.l.b16 %v88
    %v315 = vunpack.c.l.b16 %v89
    %v316 = vunpack.c.l.b16 %v90
    %v317 = vunpack.c.l.b16 %v91
    %v318 = vunpack.c.l.b16 %v92
    %v319 = vunpack.c.l.b16 %v93
    %v320 = vunpack.c.l.b16 %v94
    %v321 = vunpack.c.l.b16 %v95
    %v322 = vunpack.c.l.b16 %v96
    %v323 = vunpack.c.l.b16 %v97
    %v324 = vunpack.c.l.b16 %v98
    %v325 = vunpack.c.l.b16 %v99
    %v326 = vunpack.c.l.b16 %v100
    %v327 = vunpack.c.l.b16 %v101
    %v328 = vunpack.c.l.b16 %v102
    %v329 = vunpack.c.l.b16 %v103
    %v330 = vunpack.c.l.b16 %v104
    %v331 = vunpack.c.l.b16 %v105
    %v332 = vunpack.c.l.b16 %v106
    %v333 = vunpack.c.l.b16 %v107
    %v334 = vunpack.c.l.b16 %v108
    %v335 = vunpack.c.l.b16 %v109
    %v336 = vunpack.c.l.b16 %v110
    %v337 = vunpack.c.l.b16 %v111
    %v338 = vunpack.c.l.b16 %v112
    %v339 = vunpack.c.l.b16 %v113
    %v340 = vunpack.c.l.b16 %v114
    %v341 = vunpack.c.l.b16 %v115
    %v342 = vunpack.c.l.b16 %v116
    %v343 = vunpack.c.l.b16 %v117
    %v344 = vunpack.c.l.b16 %v118
    %v345 = vunpack.c.l.b16 %v119
    %v346 = vunpack.c.l.b16 %v120
    %v347 = vunpack.c.l.b16 %v121
    %v348 = vunpack.c.l.b16 %v122
    %v349 = vunpack.c.l.b16 %v123
    %v350 = vunpack.c.l.b16 %v124
    %v351 = vunpack.c.l.b16 %v125
    %v352 = vunpack.c.l.b16 %v126
    %v353 = vunpack.c.l.b16 %v127
    %v354 = vunpack.c.l.b16 %v128
    %v355 = vunpack.c.l.b16 %v129
    %v356 = vunpack.c.l.b16 %v130
    %v357 = vunpack.c.l.b16 %v131
    %v358 = vunpack.c.l.b16 %v132
    %v359 = vunpack.c.l.b16 %v133
    %v360 = vunpack.c.l.b16 %v134
    %v361 = vunpack.c.l.b16 %v135
    %v362 = vunpack.c.l.b16 %v136
    %v363 = vunpack.c.l.b16 %v137
    %v364 = vunpack.c.l.b16 %v138
    %v365 = vunpack.c.l.b16 %v139
    %v366 = vunpack.c.l.b16 %v140
    %v367 = vunpack.c.l.b16 %v141
    %v368 = vunpack.c.l.b16 %v142
    %v369 = vunpack.c.l.b16 %v143
    %v370 = vunpack.c.l.b16 %v144
    %v371 = vunpack.c.l.b16 %v145
    %v372 = vunpack.c.l.b16 %v146
    %v373 = vunpack.c.l.b16 %v147
    %v374 = vunpack.c.l.b16 %v148
    %v375 = vunpack.c.l.b16 %v149
    %v376 = vunpack.c.l.b16 %v150
    %v377 = vunpack.c.l.b16 %v151
    %v378 = vunpack.c.l.b16 %v152
    %v379 = vpack.c.b16 %v269, %v268
    %v380 = vpack.c.b16 %v271, %v270
    %v381 = vpack.c.b16 %v273, %v272
    %v382 = vpack.c.b16 %v275, %v274
    %v383 = vpack.c.b16 %v277, %v276
    %v384 = vpack.c.b16 %v279, %v278
    %v385 = vpack.c.b16 %v281, %v280
    %v386 = vpack.c.b16 %v283, %v282
    %v387 = vpack.c.b16 %v285, %v284
    %v388 = vpack.c.b16 %v287, %v286
    %v389 = vpack.c.b16 %v289, %v288
    %v390 = vpack.c.b16 %v291, %v290
    %v391 = vpack.c.b16 %v293, %v292
    %v392 = vpack.c.b16 %v295, %v294
    %v393 = vpack.c.b16 %v297, %v296
    %v394 = vpack.c.b16 %v299, %v298
    %v395 = vpack.c.b16 %v301, %v300
    %v396 = vpack.c.b16 %v303, %v302
    %v397 = vpack.c.b16 %v305, %v304
    %v398 = vpack.c.b16 %v307, %v306
    %v399 = vpack.c.b16 %v309, %v308
    %v400 = vpack.c.b16 %v311, %v310
    %v401 = vpack.c.b16 %v313, %v312
    %v402 = vpack.c.b16 %v315, %v314
    %v403 = vpack.c.b16 %v317, %v316
    %v404 = vpack.c.b16 %v319, %v318
    %v405 = vpack.c.b16 %v321, %v320
    %v406 = vpack.c.b16 %v323, %v322
    %v407 = vpack.c.b16 %v325, %v324
    %v408 = vpack.c.b16 %v327, %v326
    %v409 = vpack.c.b16 %v329, %v328
    %v410 = vpack.c.b16 %v331, %v330
    %v411 = vpack.c.b16 %v333, %v332
    %v412 = vpack.c.b16 %v335, %v334
    %v413 = vpack.c.b16 %v337, %v336
    %v414 = vpack.c.b16 %v339, %v338
    %v415 = vpack.c.b16 %v341, %v340
    %v416 = vpack.c.b16 %v343, %v342
    %v417 = vpack.c.b16 %v345, %v344
    %v418 = vpack.c.b16 %v347, %v346
    %v419 = vpack.c.b16 %v349, %v348
    %v420 = vpack.c.b16 %v351, %v350
    %v421 = vpack.c.b16 %v353, %v352
    %v422 = vpack.c.b16 %v355, %v354
    %v423 = vpack.c.b16 %v357, %v356
    %v424 = vpack.c.b16 %v359, %v358
    %v425 = vpack.c.b16 %v361, %v360
    %v426 = vpack.c.b16 %v363, %v362
    %v427 = vpack.c.b16 %v365, %v364
    %v428 = vpack.c.b16 %v367, %v366
    %v429 = vpack.c.b16 %v369, %v368
    %v430 = vpack.c.b16 %v371, %v370
    %v431 = vpack.c.b16 %v373, %v372
    %v432 = vpack.c.b16 %v375, %v374
    %v433 = vpack.c.b16 %v377, %v376
    %v434 = vpack.c.b16 %v378, %v378
    %v439 = vunpack.c.l.b16 %v153
    %v440 = vunpack.c.l.b16 %v154
    %v441 = vunpack.c.l.b16 %v155
    %v442 = vunpack.c.l.b16 %v156
    %v443 = vpack.c.b16 %v440, %v439
    %v444 = vpack.c.b16 %v442, %v441
    %vm446 = vcmask 203776
    %v448 = vsel %vm446, %v379, 0
    %v451 = vsel %vm446, %v380, 0
    %v454 = vsel %vm446, %v381, 0
    %v457 = vsel %vm446, %v382, 0
    %v460 = vsel %vm446, %v383, 0
    %v463 = vsel %vm446, %v384, 0
    %v466 = vsel %vm446, %v385, 0
    %v469 = vsel %vm446, %v386, 0
    %v472 = vsel %vm446, %v387, 0
    %v475 = vsel %vm446, %v388, 0
    %v478 = vsel %vm446, %v389, 0
    %v481 = vsel %vm446, %v390, 0
    %v484 = vsel %vm446, %v391, 0
    %v487 = vsel %vm446, %v392, 0
    %v490 = vsel %vm446, %v393, 0
    %v493 = vsel %vm446, %v394, 0
    %v496 = vsel %vm446, %v395, 0
    %v499 = vsel %vm446, %v396, 0
    %v502 = vsel %vm446, %v397, 0
    %v505 = vsel %vm446, %v398, 0
    %v508 = vsel %vm446, %v399, 0
    %v511 = vsel %vm446, %v400, 0
    %v514 = vsel %vm446, %v401, 0
    %v517 = vsel %vm446, %v402, 0
    %v520 = vsel %vm446, %v403, 0
    %v523 = vsel %vm446, %v404, 0
    %v526 = vsel %vm446, %v405, 0
    %v529 = vsel %vm446, %v406, 0
    %v532 = vsel %vm446, %v407, 0
    %v535 = vsel %vm446, %v408, 0
    %v538 = vsel %vm446, %v409, 0
    %v541 = vsel %vm446, %v410, 0
    %v544 = vsel %vm446, %v411, 0
    %v547 = vsel %vm446, %v412, 0
    %v550 = vsel %vm446, %v413, 0
    %v553 = vsel %vm446, %v414, 0
    %v556 = vsel %vm446, %v415, 0
    %v559 = vsel %vm446, %v416, 0
    %v562 = vsel %vm446, %v417, 0
    %v565 = vsel %vm446, %v418, 0
    %v568 = vsel %vm446, %v419, 0
    %v571 = vsel %vm446, %v420, 0
    %v574 = vsel %vm446, %v421, 0
    %v577 = vsel %vm446, %v422, 0
    %v580 = vsel %vm446, %v423, 0
    %v583 = vsel %vm446, %v424, 0
    %v586 = vsel %vm446, %v425, 0
    %v589 = vsel %vm446, %v426, 0
    %v592 = vsel %vm446, %v427, 0
    %v595 = vsel %vm446, %v428, 0
    %v598 = vsel %vm446, %v429, 0
    %v601 = vsel %vm446, %v430, 0
    %v604 = vsel %vm446, %v431, 0
    %v607 = vsel %vm446, %v432, 0
    %v610 = vsel %vm446, %v433, 0
    %v613 = vsel %vm446, %v434, 0
    %vm615 = vcmask 1043456
    %vm616 = vcmask 1044480
    %v617 = vsel %vm615, 4294967295, 65535
    %v618 = vsel %vm616, %v617, 0
    %v620 = vand.u32 %v444, %v618
    %622 = vmatprep.subr.bf16.mxu0 0
    %623 = vmatpush1.bf16.msra.mxu0 %v443
    %624 = vmatprep.subr.bf16.mxu0 0
    %625 = vmatpush1.bf16.msra.mxu0 %v620
    %626 = vmatprep.subr.bf16.mxu0 0
    %627 = vmatpush1.bf16.msra.mxu0 0
    %628 = vmatprep.subr.bf16.mxu0 0
    %629 = vmatpush1.bf16.msra.mxu0 0
    %630 = vmatprep.subr.bf16.mxu0 0
    %631 = vmatpush1.bf16.msra.mxu0 0
    %632 = vmatprep.subr.bf16.mxu0 0
    %633 = vmatpush1.bf16.msra.mxu0 0
    %634 = vmatprep.subr.bf16.mxu0 0
    %635 = vmatpush1.bf16.msra.mxu0 0
    %636 = vmatprep.subr.bf16.mxu0 0
    %637 = vmatpush1.bf16.msra.mxu0 0
    %638 = vmatprep.subr.bf16.mxu0 0
    %639 = vmatpush1.bf16.msra.mxu0 0
    %640 = vmatprep.subr.bf16.mxu0 0
    %641 = vmatpush1.bf16.msra.mxu0 0
    %642 = vmatprep.subr.bf16.mxu0 0
    %643 = vmatpush1.bf16.msra.mxu0 0
    %644 = vmatprep.subr.bf16.mxu0 0
    %645 = vmatpush1.bf16.msra.mxu0 0
    %646 = vmatprep.subr.bf16.mxu0 0
    %647 = vmatpush1.bf16.msra.mxu0 0
    %648 = vmatprep.subr.bf16.mxu0 0
    %649 = vmatpush1.bf16.msra.mxu0 0
    %650 = vmatprep.subr.bf16.mxu0 0
    %651 = vmatpush1.bf16.msra.mxu0 0
    %652 = vmatprep.subr.bf16.mxu0 0
    %653 = vmatpush1.bf16.msra.mxu0 0
    %654 = vmatprep.mubr.bf16.mxu0 0
    %655 = vmatmul.mubr.bf16.gmra.mrb[0].mxu0 %v448
    %v656 = vpop.f32.mrb[0].mxu0
    %v657 = vadd.f32 0.0, %v656
    %v658 = vpop.f32.mrb[0].mxu0
    %v659 = vpop.f32.mrb[0].mxu0
    %v660 = vadd.f32 0.0, %v659
    %v661 = vpop.f32.mrb[0].mxu0
    %662 = vmatprep.mubr.bf16.mxu0 0
    %663 = vmatmul.mubr.bf16.gmra.mrb[0].mxu0 %v451
    %v664 = vpop.f32.mrb[0].mxu0
    %v665 = vadd.f32 0.0, %v664
    %v666 = vpop.f32.mrb[0].mxu0
    %v667 = vpop.f32.mrb[0].mxu0
    %v668 = vadd.f32 0.0, %v667
    %v669 = vpop.f32.mrb[0].mxu0
    %670 = vmatprep.mubr.bf16.mxu0 0
    %671 = vmatmul.mubr.bf16.gmra.mrb[0].mxu0 %v454
    %v672 = vpop.f32.mrb[0].mxu0
    %v673 = vadd.f32 0.0, %v672
    %v674 = vpop.f32.mrb[0].mxu0
    %v675 = vpop.f32.mrb[0].mxu0
    %v676 = vadd.f32 0.0, %v675
    %v677 = vpop.f32.mrb[0].mxu0
    %678 = vmatprep.mubr.bf16.mxu0 0
    %679 = vmatmul.mubr.bf16.gmra.mrb[0].mxu0 %v457
    %v680 = vpop.f32.mrb[0].mxu0
    %v681 = vadd.f32 0.0, %v680
    %v682 = vpop.f32.mrb[0].mxu0
    %v683 = vpop.f32.mrb[0].mxu0
    %v684 = vadd.f32 0.0, %v683
    %v685 = vpop.f32.mrb[0].mxu0
    %686 = vmatprep.mubr.bf16.mxu0 0
    %687 = vmatmul.mubr.bf16.gmra.mrb[0].mxu0 %v460
    %v688 = vpop.f32.mrb[0].mxu0
    %v689 = vadd.f32 0.0, %v688
    %v690 = vpop.f32.mrb[0].mxu0
    %v691 = vpop.f32.mrb[0].mxu0
    %v692 = vadd.f32 0.0, %v691
    %v693 = vpop.f32.mrb[0].mxu0
    %694 = vmatprep.mubr.bf16.mxu0 0
    %695 = vmatmul.mubr.bf16.gmra.mrb[0].mxu0 %v463
    %v696 = vpop.f32.mrb[0].mxu0
    %v697 = vadd.f32 0.0, %v696
    %v698 = vpop.f32.mrb[0].mxu0
    %v699 = vpop.f32.mrb[0].mxu0
    %v700 = vadd.f32 0.0, %v699
    %v701 = vpop.f32.mrb[0].mxu0
    %702 = vmatprep.mubr.bf16.mxu0 0
    %703 = vmatmul.mubr.bf16.gmra.mrb[0].mxu0 %v466
    %v704 = vpop.f32.mrb[0].mxu0
    %v705 = vadd.f32 0.0, %v704
    %v706 = vpop.f32.mrb[0].mxu0
    %v707 = vpop.f32.mrb[0].mxu0
    %v708 = vadd.f32 0.0, %v707
    %v709 = vpop.f32.mrb[0].mxu0
    %710 = vmatprep.mubr.bf16.mxu0 0
    %711 = vmatmul.mubr.bf16.gmra.mrb[0].mxu0 %v469
    %v712 = vpop.f32.mrb[0].mxu0
    %v713 = vadd.f32 0.0, %v712
    %v714 = vpop.f32.mrb[0].mxu0
    %v715 = vpop.f32.mrb[0].mxu0
    %v716 = vadd.f32 0.0, %v715
    %v717 = vpop.f32.mrb[0].mxu0
    %718 = vmatprep.mubr.bf16.mxu0 0
    %719 = vmatmul.mubr.bf16.gmra.mrb[0].mxu0 %v472
    %v720 = vpop.f32.mrb[0].mxu0
    %v721 = vadd.f32 0.0, %v720
    %v722 = vpop.f32.mrb[0].mxu0
    %v723 = vpop.f32.mrb[0].mxu0
    %v724 = vadd.f32 0.0, %v723
    %v725 = vpop.f32.mrb[0].mxu0
    %726 = vmatprep.mubr.bf16.mxu0 0
    %727 = vmatmul.mubr.bf16.gmra.mrb[0].mxu0 %v475
    %v728 = vpop.f32.mrb[0].mxu0
    %v729 = vadd.f32 0.0, %v728
    %v730 = vpop.f32.mrb[0].mxu0
    %v731 = vpop.f32.mrb[0].mxu0
    %v732 = vadd.f32 0.0, %v731
    %v733 = vpop.f32.mrb[0].mxu0
    %734 = vmatprep.mubr.bf16.mxu0 0
    %735 = vmatmul.mubr.bf16.gmra.mrb[0].mxu0 %v478
    %v736 = vpop.f32.mrb[0].mxu0
    %v737 = vadd.f32 0.0, %v736
    %v738 = vpop.f32.mrb[0].mxu0
    %v739 = vpop.f32.mrb[0].mxu0
    %v740 = vadd.f32 0.0, %v739
    %v741 = vpop.f32.mrb[0].mxu0
    %742 = vmatprep.mubr.bf16.mxu0 0
    %743 = vmatmul.mubr.bf16.gmra.mrb[0].mxu0 %v481
    %v744 = vpop.f32.mrb[0].mxu0
    %v745 = vadd.f32 0.0, %v744
    %v746 = vpop.f32.mrb[0].mxu0
    %v747 = vpop.f32.mrb[0].mxu0
    %v748 = vadd.f32 0.0, %v747
    %v749 = vpop.f32.mrb[0].mxu0
    %750 = vmatprep.mubr.bf16.mxu0 0
    %751 = vmatmul.mubr.bf16.gmra.mrb[0].mxu0 %v484
    %v752 = vpop.f32.mrb[0].mxu0
    %v753 = vadd.f32 0.0, %v752
    %v754 = vpop.f32.mrb[0].mxu0
    %v755 = vpop.f32.mrb[0].mxu0
    %v756 = vadd.f32 0.0, %v755
    %v757 = vpop.f32.mrb[0].mxu0
    %758 = vmatprep.mubr.bf16.mxu0 0
    %759 = vmatmul.mubr.bf16.gmra.mrb[0].mxu0 %v487
    %v760 = vpop.f32.mrb[0].mxu0
    %v761 = vadd.f32 0.0, %v760
    %v762 = vpop.f32.mrb[0].mxu0
    %v763 = vpop.f32.mrb[0].mxu0
    %v764 = vadd.f32 0.0, %v763
    %v765 = vpop.f32.mrb[0].mxu0
    %766 = vmatprep.mubr.bf16.mxu0 0
    %767 = vmatmul.mubr.bf16.gmra.mrb[0].mxu0 %v490
    %v768 = vpop.f32.mrb[0].mxu0
    %v769 = vadd.f32 0.0, %v768
    %v770 = vpop.f32.mrb[0].mxu0
    %v771 = vpop.f32.mrb[0].mxu0
    %v772 = vadd.f32 0.0, %v771
    %v773 = vpop.f32.mrb[0].mxu0
    %774 = vmatprep.mubr.bf16.mxu0 0
    %775 = vmatmul.mubr.bf16.gmra.mrb[0].mxu0 %v493
    %v776 = vpop.f32.mrb[0].mxu0
    %v777 = vadd.f32 0.0, %v776
    %v778 = vpop.f32.mrb[0].mxu0
    %v779 = vpop.f32.mrb[0].mxu0
    %v780 = vadd.f32 0.0, %v779
    %v781 = vpop.f32.mrb[0].mxu0
    %782 = vmatprep.mubr.bf16.mxu0 0
    %783 = vmatmul.mubr.bf16.gmra.mrb[0].mxu0 %v496
    %v784 = vpop.f32.mrb[0].mxu0
    %v785 = vadd.f32 0.0, %v784
    %v786 = vpop.f32.mrb[0].mxu0
    %v787 = vpop.f32.mrb[0].mxu0
    %v788 = vadd.f32 0.0, %v787
    %v789 = vpop.f32.mrb[0].mxu0
    %790 = vmatprep.mubr.bf16.mxu0 0
    %791 = vmatmul.mubr.bf16.gmra.mrb[0].mxu0 %v499
    %v792 = vpop.f32.mrb[0].mxu0
    %v793 = vadd.f32 0.0, %v792
    %v794 = vpop.f32.mrb[0].mxu0
    %v795 = vpop.f32.mrb[0].mxu0
    %v796 = vadd.f32 0.0, %v795
    %v797 = vpop.f32.mrb[0].mxu0
    %798 = vmatprep.mubr.bf16.mxu0 0
    %799 = vmatmul.mubr.bf16.gmra.mrb[0].mxu0 %v502
    %v800 = vpop.f32.mrb[0].mxu0
    %v801 = vadd.f32 0.0, %v800
    %v802 = vpop.f32.mrb[0].mxu0
    %v803 = vpop.f32.mrb[0].mxu0
    %v804 = vadd.f32 0.0, %v803
    %v805 = vpop.f32.mrb[0].mxu0
    %806 = vmatprep.mubr.bf16.mxu0 0
    %807 = vmatmul.mubr.bf16.gmra.mrb[0].mxu0 %v505
    %v808 = vpop.f32.mrb[0].mxu0
    %v809 = vadd.f32 0.0, %v808
    %v810 = vpop.f32.mrb[0].mxu0
    %v811 = vpop.f32.mrb[0].mxu0
    %v812 = vadd.f32 0.0, %v811
    %v813 = vpop.f32.mrb[0].mxu0
    %814 = vmatprep.mubr.bf16.mxu0 0
    %815 = vmatmul.mubr.bf16.gmra.mrb[0].mxu0 %v508
    %v816 = vpop.f32.mrb[0].mxu0
    %v817 = vadd.f32 0.0, %v816
    %v818 = vpop.f32.mrb[0].mxu0
    %v819 = vpop.f32.mrb[0].mxu0
    %v820 = vadd.f32 0.0, %v819
    %v821 = vpop.f32.mrb[0].mxu0
    %822 = vmatprep.mubr.bf16.mxu0 0
    %823 = vmatmul.mubr.bf16.gmra.mrb[0].mxu0 %v511
    %v824 = vpop.f32.mrb[0].mxu0
    %v825 = vadd.f32 0.0, %v824
    %v826 = vpop.f32.mrb[0].mxu0
    %v827 = vpop.f32.mrb[0].mxu0
    %v828 = vadd.f32 0.0, %v827
    %v829 = vpop.f32.mrb[0].mxu0
    %830 = vmatprep.mubr.bf16.mxu0 0
    %831 = vmatmul.mubr.bf16.gmra.mrb[0].mxu0 %v514
    %v832 = vpop.f32.mrb[0].mxu0
    %v833 = vadd.f32 0.0, %v832
    %v834 = vpop.f32.mrb[0].mxu0
    %v835 = vpop.f32.mrb[0].mxu0
    %v836 = vadd.f32 0.0, %v835
    %v837 = vpop.f32.mrb[0].mxu0
    %838 = vmatprep.mubr.bf16.mxu0 0
    %839 = vmatmul.mubr.bf16.gmra.mrb[0].mxu0 %v517
    %v840 = vpop.f32.mrb[0].mxu0
    %v841 = vadd.f32 0.0, %v840
    %v842 = vpop.f32.mrb[0].mxu0
    %v843 = vpop.f32.mrb[0].mxu0
    %v844 = vadd.f32 0.0, %v843
    %v845 = vpop.f32.mrb[0].mxu0
    %846 = vmatprep.mubr.bf16.mxu0 0
    %847 = vmatmul.mubr.bf16.gmra.mrb[0].mxu0 %v520
    %v848 = vpop.f32.mrb[0].mxu0
    %v849 = vadd.f32 0.0, %v848
    %v850 = vpop.f32.mrb[0].mxu0
    %v851 = vpop.f32.mrb[0].mxu0
    %v852 = vadd.f32 0.0, %v851
    %v853 = vpop.f32.mrb[0].mxu0
    %854 = vmatprep.mubr.bf16.mxu0 0
    %855 = vmatmul.mubr.bf16.gmra.mrb[0].mxu0 %v523
    %v856 = vpop.f32.mrb[0].mxu0
    %v857 = vadd.f32 0.0, %v856
    %v858 = vpop.f32.mrb[0].mxu0
    %v859 = vpop.f32.mrb[0].mxu0
    %v860 = vadd.f32 0.0, %v859
    %v861 = vpop.f32.mrb[0].mxu0
    %862 = vmatprep.mubr.bf16.mxu0 0
    %863 = vmatmul.mubr.bf16.gmra.mrb[0].mxu0 %v526
    %v864 = vpop.f32.mrb[0].mxu0
    %v865 = vadd.f32 0.0, %v864
    %v866 = vpop.f32.mrb[0].mxu0
    %v867 = vpop.f32.mrb[0].mxu0
    %v868 = vadd.f32 0.0, %v867
    %v869 = vpop.f32.mrb[0].mxu0
    %870 = vmatprep.mubr.bf16.mxu0 0
    %871 = vmatmul.mubr.bf16.gmra.mrb[0].mxu0 %v529
    %v872 = vpop.f32.mrb[0].mxu0
    %v873 = vadd.f32 0.0, %v872
    %v874 = vpop.f32.mrb[0].mxu0
    %v875 = vpop.f32.mrb[0].mxu0
    %v876 = vadd.f32 0.0, %v875
    %v877 = vpop.f32.mrb[0].mxu0
    %878 = vmatprep.mubr.bf16.mxu0 0
    %879 = vmatmul.mubr.bf16.gmra.mrb[0].mxu0 %v532
    %v880 = vpop.f32.mrb[0].mxu0
    %v881 = vadd.f32 0.0, %v880
    %v882 = vpop.f32.mrb[0].mxu0
    %v883 = vpop.f32.mrb[0].mxu0
    %v884 = vadd.f32 0.0, %v883
    %v885 = vpop.f32.mrb[0].mxu0
    %886 = vmatprep.mubr.bf16.mxu0 0
    %887 = vmatmul.mubr.bf16.gmra.mrb[0].mxu0 %v535
    %v888 = vpop.f32.mrb[0].mxu0
    %v889 = vadd.f32 0.0, %v888
    %v890 = vpop.f32.mrb[0].mxu0
    %v891 = vpop.f32.mrb[0].mxu0
    %v892 = vadd.f32 0.0, %v891
    %v893 = vpop.f32.mrb[0].mxu0
    %894 = vmatprep.mubr.bf16.mxu0 0
    %895 = vmatmul.mubr.bf16.gmra.mrb[0].mxu0 %v538
    %v896 = vpop.f32.mrb[0].mxu0
    %v897 = vadd.f32 0.0, %v896
    %v898 = vpop.f32.mrb[0].mxu0
    %v899 = vpop.f32.mrb[0].mxu0
    %v900 = vadd.f32 0.0, %v899
    %v901 = vpop.f32.mrb[0].mxu0
    %902 = vmatprep.mubr.bf16.mxu0 0
    %903 = vmatmul.mubr.bf16.gmra.mrb[0].mxu0 %v541
    %v904 = vpop.f32.mrb[0].mxu0
    %v905 = vadd.f32 0.0, %v904
    %v906 = vpop.f32.mrb[0].mxu0
    %v907 = vpop.f32.mrb[0].mxu0
    %v908 = vadd.f32 0.0, %v907
    %v909 = vpop.f32.mrb[0].mxu0
    %910 = vmatprep.mubr.bf16.mxu0 0
    %911 = vmatmul.mubr.bf16.gmra.mrb[0].mxu0 %v544
    %v912 = vpop.f32.mrb[0].mxu0
    %v913 = vadd.f32 0.0, %v912
    %v914 = vpop.f32.mrb[0].mxu0
    %v915 = vpop.f32.mrb[0].mxu0
    %v916 = vadd.f32 0.0, %v915
    %v917 = vpop.f32.mrb[0].mxu0
    %918 = vmatprep.mubr.bf16.mxu0 0
    %919 = vmatmul.mubr.bf16.gmra.mrb[0].mxu0 %v547
    %v920 = vpop.f32.mrb[0].mxu0
    %v921 = vadd.f32 0.0, %v920
    %v922 = vpop.f32.mrb[0].mxu0
    %v923 = vpop.f32.mrb[0].mxu0
    %v924 = vadd.f32 0.0, %v923
    %v925 = vpop.f32.mrb[0].mxu0
    %926 = vmatprep.mubr.bf16.mxu0 0
    %927 = vmatmul.mubr.bf16.gmra.mrb[0].mxu0 %v550
    %v928 = vpop.f32.mrb[0].mxu0
    %v929 = vadd.f32 0.0, %v928
    %v930 = vpop.f32.mrb[0].mxu0
    %v931 = vpop.f32.mrb[0].mxu0
    %v932 = vadd.f32 0.0, %v931
    %v933 = vpop.f32.mrb[0].mxu0
    %934 = vmatprep.mubr.bf16.mxu0 0
    %935 = vmatmul.mubr.bf16.gmra.mrb[0].mxu0 %v553
    %v936 = vpop.f32.mrb[0].mxu0
    %v937 = vadd.f32 0.0, %v936
    %v938 = vpop.f32.mrb[0].mxu0
    %v939 = vpop.f32.mrb[0].mxu0
    %v940 = vadd.f32 0.0, %v939
    %v941 = vpop.f32.mrb[0].mxu0
    %942 = vmatprep.mubr.bf16.mxu0 0
    %943 = vmatmul.mubr.bf16.gmra.mrb[0].mxu0 %v556
    %v944 = vpop.f32.mrb[0].mxu0
    %v945 = vadd.f32 0.0, %v944
    %v946 = vpop.f32.mrb[0].mxu0
    %v947 = vpop.f32.mrb[0].mxu0
    %v948 = vadd.f32 0.0, %v947
    %v949 = vpop.f32.mrb[0].mxu0
    %950 = vmatprep.mubr.bf16.mxu0 0
    %951 = vmatmul.mubr.bf16.gmra.mrb[0].mxu0 %v559
    %v952 = vpop.f32.mrb[0].mxu0
    %v953 = vadd.f32 0.0, %v952
    %v954 = vpop.f32.mrb[0].mxu0
    %v955 = vpop.f32.mrb[0].mxu0
    %v956 = vadd.f32 0.0, %v955
    %v957 = vpop.f32.mrb[0].mxu0
    %958 = vmatprep.mubr.bf16.mxu0 0
    %959 = vmatmul.mubr.bf16.gmra.mrb[0].mxu0 %v562
    %v960 = vpop.f32.mrb[0].mxu0
    %v961 = vadd.f32 0.0, %v960
    %v962 = vpop.f32.mrb[0].mxu0
    %v963 = vpop.f32.mrb[0].mxu0
    %v964 = vadd.f32 0.0, %v963
    %v965 = vpop.f32.mrb[0].mxu0
    %966 = vmatprep.mubr.bf16.mxu0 0
    %967 = vmatmul.mubr.bf16.gmra.mrb[0].mxu0 %v565
    %v968 = vpop.f32.mrb[0].mxu0
    %v969 = vadd.f32 0.0, %v968
    %v970 = vpop.f32.mrb[0].mxu0
    %v971 = vpop.f32.mrb[0].mxu0
    %v972 = vadd.f32 0.0, %v971
    %v973 = vpop.f32.mrb[0].mxu0
    %974 = vmatprep.mubr.bf16.mxu0 0
    %975 = vmatmul.mubr.bf16.gmra.mrb[0].mxu0 %v568
    %v976 = vpop.f32.mrb[0].mxu0
    %v977 = vadd.f32 0.0, %v976
    %v978 = vpop.f32.mrb[0].mxu0
    %v979 = vpop.f32.mrb[0].mxu0
    %v980 = vadd.f32 0.0, %v979
    %v981 = vpop.f32.mrb[0].mxu0
    %982 = vmatprep.mubr.bf16.mxu0 0
    %983 = vmatmul.mubr.bf16.gmra.mrb[0].mxu0 %v571
    %v984 = vpop.f32.mrb[0].mxu0
    %v985 = vadd.f32 0.0, %v984
    %v986 = vpop.f32.mrb[0].mxu0
    %v987 = vpop.f32.mrb[0].mxu0
    %v988 = vadd.f32 0.0, %v987
    %v989 = vpop.f32.mrb[0].mxu0
    %990 = vmatprep.mubr.bf16.mxu0 0
    %991 = vmatmul.mubr.bf16.gmra.mrb[0].mxu0 %v574
    %v992 = vpop.f32.mrb[0].mxu0
    %v993 = vadd.f32 0.0, %v992
    %v994 = vpop.f32.mrb[0].mxu0
    %v995 = vpop.f32.mrb[0].mxu0
    %v996 = vadd.f32 0.0, %v995
    %v997 = vpop.f32.mrb[0].mxu0
    %998 = vmatprep.mubr.bf16.mxu0 0
    %999 = vmatmul.mubr.bf16.gmra.mrb[0].mxu0 %v577
    %v1000 = vpop.f32.mrb[0].mxu0
    %v1001 = vadd.f32 0.0, %v1000
    %v1002 = vpop.f32.mrb[0].mxu0
    %v1003 = vpop.f32.mrb[0].mxu0
    %v1004 = vadd.f32 0.0, %v1003
    %v1005 = vpop.f32.mrb[0].mxu0
    %1006 = vmatprep.mubr.bf16.mxu0 0
    %1007 = vmatmul.mubr.bf16.gmra.mrb[0].mxu0 %v580
    %v1008 = vpop.f32.mrb[0].mxu0
    %v1009 = vadd.f32 0.0, %v1008
    %v1010 = vpop.f32.mrb[0].mxu0
    %v1011 = vpop.f32.mrb[0].mxu0
    %v1012 = vadd.f32 0.0, %v1011
    %v1013 = vpop.f32.mrb[0].mxu0
    %1014 = vmatprep.mubr.bf16.mxu0 0
    %1015 = vmatmul.mubr.bf16.gmra.mrb[0].mxu0 %v583
    %v1016 = vpop.f32.mrb[0].mxu0
    %v1017 = vadd.f32 0.0, %v1016
    %v1018 = vpop.f32.mrb[0].mxu0
    %v1019 = vpop.f32.mrb[0].mxu0
    %v1020 = vadd.f32 0.0, %v1019
    %v1021 = vpop.f32.mrb[0].mxu0
    %1022 = vmatprep.mubr.bf16.mxu0 0
    %1023 = vmatmul.mubr.bf16.gmra.mrb[0].mxu0 %v586
    %v1024 = vpop.f32.mrb[0].mxu0
    %v1025 = vadd.f32 0.0, %v1024
    %v1026 = vpop.f32.mrb[0].mxu0
    %v1027 = vpop.f32.mrb[0].mxu0
    %v1028 = vadd.f32 0.0, %v1027
    %v1029 = vpop.f32.mrb[0].mxu0
    %1030 = vmatprep.mubr.bf16.mxu0 0
    %1031 = vmatmul.mubr.bf16.gmra.mrb[0].mxu0 %v589
    %v1032 = vpop.f32.mrb[0].mxu0
    %v1033 = vadd.f32 0.0, %v1032
    %v1034 = vpop.f32.mrb[0].mxu0
    %v1035 = vpop.f32.mrb[0].mxu0
    %v1036 = vadd.f32 0.0, %v1035
    %v1037 = vpop.f32.mrb[0].mxu0
    %1038 = vmatprep.mubr.bf16.mxu0 0
    %1039 = vmatmul.mubr.bf16.gmra.mrb[0].mxu0 %v592
    %v1040 = vpop.f32.mrb[0].mxu0
    %v1041 = vadd.f32 0.0, %v1040
    %v1042 = vpop.f32.mrb[0].mxu0
    %v1043 = vpop.f32.mrb[0].mxu0
    %v1044 = vadd.f32 0.0, %v1043
    %v1045 = vpop.f32.mrb[0].mxu0
    %1046 = vmatprep.mubr.bf16.mxu0 0
    %1047 = vmatmul.mubr.bf16.gmra.mrb[0].mxu0 %v595
    %v1048 = vpop.f32.mrb[0].mxu0
    %v1049 = vadd.f32 0.0, %v1048
    %v1050 = vpop.f32.mrb[0].mxu0
    %v1051 = vpop.f32.mrb[0].mxu0
    %v1052 = vadd.f32 0.0, %v1051
    %v1053 = vpop.f32.mrb[0].mxu0
    %1054 = vmatprep.mubr.bf16.mxu0 0
    %1055 = vmatmul.mubr.bf16.gmra.mrb[0].mxu0 %v598
    %v1056 = vpop.f32.mrb[0].mxu0
    %v1057 = vadd.f32 0.0, %v1056
    %v1058 = vpop.f32.mrb[0].mxu0
    %v1059 = vpop.f32.mrb[0].mxu0
    %v1060 = vadd.f32 0.0, %v1059
    %v1061 = vpop.f32.mrb[0].mxu0
    %1062 = vmatprep.mubr.bf16.mxu0 0
    %1063 = vmatmul.mubr.bf16.gmra.mrb[0].mxu0 %v601
    %v1064 = vpop.f32.mrb[0].mxu0
    %v1065 = vadd.f32 0.0, %v1064
    %v1066 = vpop.f32.mrb[0].mxu0
    %v1067 = vpop.f32.mrb[0].mxu0
    %v1068 = vadd.f32 0.0, %v1067
    %v1069 = vpop.f32.mrb[0].mxu0
    %1070 = vmatprep.mubr.bf16.mxu0 0
    %1071 = vmatmul.mubr.bf16.gmra.mrb[0].mxu0 %v604
    %v1072 = vpop.f32.mrb[0].mxu0
    %v1073 = vadd.f32 0.0, %v1072
    %v1074 = vpop.f32.mrb[0].mxu0
    %v1075 = vpop.f32.mrb[0].mxu0
    %v1076 = vadd.f32 0.0, %v1075
    %v1077 = vpop.f32.mrb[0].mxu0
    %1078 = vmatprep.mubr.bf16.mxu0 0
    %1079 = vmatmul.mubr.bf16.gmra.mrb[0].mxu0 %v607
    %v1080 = vpop.f32.mrb[0].mxu0
    %v1081 = vadd.f32 0.0, %v1080
    %v1082 = vpop.f32.mrb[0].mxu0
    %v1083 = vpop.f32.mrb[0].mxu0
    %v1084 = vadd.f32 0.0, %v1083
    %v1085 = vpop.f32.mrb[0].mxu0
    %1086 = vmatprep.mubr.bf16.mxu0 0
    %1087 = vmatmul.mubr.bf16.gmra.mrb[0].mxu0 %v610
    %v1088 = vpop.f32.mrb[0].mxu0
    %v1089 = vadd.f32 0.0, %v1088
    %v1090 = vpop.f32.mrb[0].mxu0
    %v1091 = vpop.f32.mrb[0].mxu0
    %v1092 = vadd.f32 0.0, %v1091
    %v1093 = vpop.f32.mrb[0].mxu0
    %1094 = vmatprep.mubr.bf16.mxu0 0
    %1095 = vmatmul.mubr.bf16.gmra.mrb[0].mxu0 %v613
    %v1096 = vpop.f32.mrb[0].mxu0
    %v1097 = vadd.f32 0.0, %v1096
    %v1098 = vpop.f32.mrb[0].mxu0
    %v1099 = vpop.f32.mrb[0].mxu0
    %v1100 = vpop.f32.mrb[0].mxu0
    %1101 = vdwg.mxu0
    %vm1102 = vcmask 932864
    %v1104 = vsel %vm1102, 1.0, 0
    %vm1106 = vcmask 1041408
    %v1108 = vsel %vm1106, %v1097, 0
    %1110 = vmatprep.subr.mxu0 0.0
    %1111 = vmatpush1.msra.mxu0 %v657
    %1112 = vmatprep.subr.mxu0 0.0
    %1113 = vmatpush1.msra.mxu0 %v660
    %1114 = vmatprep.subr.mxu0 0.0
    %1115 = vmatpush1.msra.mxu0 %v665
    %1116 = vmatprep.subr.mxu0 0.0
    %1117 = vmatpush1.msra.mxu0 %v668
    %1118 = vmatprep.subr.mxu0 0.0
    %1119 = vmatpush1.msra.mxu0 %v673
    %1120 = vmatprep.subr.mxu0 0.0
    %1121 = vmatpush1.msra.mxu0 %v676
    %1122 = vmatprep.subr.mxu0 0.0
    %1123 = vmatpush1.msra.mxu0 %v681
    %1124 = vmatprep.subr.mxu0 0.0
    %1125 = vmatpush1.msra.mxu0 %v684
    %1126 = vmatprep.subr.mxu0 0.0
    %1127 = vmatpush1.msra.mxu0 %v689
    %1128 = vmatprep.subr.mxu0 0.0
    %1129 = vmatpush1.msra.mxu0 %v692
    %1130 = vmatprep.subr.mxu0 0.0
    %1131 = vmatpush1.msra.mxu0 %v697
    %1132 = vmatprep.subr.mxu0 0.0
    %1133 = vmatpush1.msra.mxu0 %v700
    %1134 = vmatprep.subr.mxu0 0.0
    %1135 = vmatpush1.msra.mxu0 %v705
    %1136 = vmatprep.subr.mxu0 0.0
    %1137 = vmatpush1.msra.mxu0 %v708
    %1138 = vmatprep.subr.mxu0 0.0
    %1139 = vmatpush1.msra.mxu0 %v713
    %1140 = vmatprep.subr.mxu0 0.0
    %1141 = vmatpush1.msra.mxu0 %v716
    %1142 = vmatprep.subr.mxu0 0.0
    %1143 = vmatpush1.msra.mxu0 %v721
    %1144 = vmatprep.subr.mxu0 0.0
    %1145 = vmatpush1.msra.mxu0 %v724
    %1146 = vmatprep.subr.mxu0 0.0
    %1147 = vmatpush1.msra.mxu0 %v729
    %1148 = vmatprep.subr.mxu0 0.0
    %1149 = vmatpush1.msra.mxu0 %v732
    %1150 = vmatprep.subr.mxu0 0.0
    %1151 = vmatpush1.msra.mxu0 %v737
    %1152 = vmatprep.subr.mxu0 0.0
    %1153 = vmatpush1.msra.mxu0 %v740
    %1154 = vmatprep.subr.mxu0 0.0
    %1155 = vmatpush1.msra.mxu0 %v745
    %1156 = vmatprep.subr.mxu0 0.0
    %1157 = vmatpush1.msra.mxu0 %v748
    %1158 = vmatprep.subr.mxu0 0.0
    %1159 = vmatpush1.msra.mxu0 %v753
    %1160 = vmatprep.subr.mxu0 0.0
    %1161 = vmatpush1.msra.mxu0 %v756
    %1162 = vmatprep.subr.mxu0 0.0
    %1163 = vmatpush1.msra.mxu0 %v761
    %1164 = vmatprep.subr.mxu0 0.0
    %1165 = vmatpush1.msra.mxu0 %v764
    %1166 = vmatprep.subr.mxu0 0.0
    %1167 = vmatpush1.msra.mxu0 %v769
    %1168 = vmatprep.subr.mxu0 0.0
    %1169 = vmatpush1.msra.mxu0 %v772
    %1170 = vmatprep.subr.mxu0 0.0
    %1171 = vmatpush1.msra.mxu0 %v777
    %1172 = vmatprep.subr.mxu0 0.0
    %1173 = vmatpush1.msra.mxu0 %v780
    %1174 = vmatprep.mubr.f32.mxu0 1.0
    %1175 = vmatmul.mubr.f32.gmra.mrb[0].mxu0 1.0
    %v1176 = vpop.f32.mrb[0].mxu0
    %v1177 = vadd.f32 0.0, %v1176
    %v1178 = vpop.f32.mrb[0].mxu0
    %1179 = vdwg.mxu0
    %1180 = vmatprep.subr.mxu0 0.0
    %1181 = vmatpush1.msra.mxu0 %v785
    %1182 = vmatprep.subr.mxu0 0.0
    %1183 = vmatpush1.msra.mxu0 %v788
    %1184 = vmatprep.subr.mxu0 0.0
    %1185 = vmatpush1.msra.mxu0 %v793
    %1186 = vmatprep.subr.mxu0 0.0
    %1187 = vmatpush1.msra.mxu0 %v796
    %1188 = vmatprep.subr.mxu0 0.0
    %1189 = vmatpush1.msra.mxu0 %v801
    %1190 = vmatprep.subr.mxu0 0.0
    %1191 = vmatpush1.msra.mxu0 %v804
    %1192 = vmatprep.subr.mxu0 0.0
    %1193 = vmatpush1.msra.mxu0 %v809
    %1194 = vmatprep.subr.mxu0 0.0
    %1195 = vmatpush1.msra.mxu0 %v812
    %1196 = vmatprep.subr.mxu0 0.0
    %1197 = vmatpush1.msra.mxu0 %v817
    %1198 = vmatprep.subr.mxu0 0.0
    %1199 = vmatpush1.msra.mxu0 %v820
    %1200 = vmatprep.subr.mxu0 0.0
    %1201 = vmatpush1.msra.mxu0 %v825
    %1202 = vmatprep.subr.mxu0 0.0
    %1203 = vmatpush1.msra.mxu0 %v828
    %1204 = vmatprep.subr.mxu0 0.0
    %1205 = vmatpush1.msra.mxu0 %v833
    %1206 = vmatprep.subr.mxu0 0.0
    %1207 = vmatpush1.msra.mxu0 %v836
    %1208 = vmatprep.subr.mxu0 0.0
    %1209 = vmatpush1.msra.mxu0 %v841
    %1210 = vmatprep.subr.mxu0 0.0
    %1211 = vmatpush1.msra.mxu0 %v844
    %1212 = vmatprep.subr.mxu0 0.0
    %1213 = vmatpush1.msra.mxu0 %v849
    %1214 = vmatprep.subr.mxu0 0.0
    %1215 = vmatpush1.msra.mxu0 %v852
    %1216 = vmatprep.subr.mxu0 0.0
    %1217 = vmatpush1.msra.mxu0 %v857
    %1218 = vmatprep.subr.mxu0 0.0
    %1219 = vmatpush1.msra.mxu0 %v860
    %1220 = vmatprep.subr.mxu0 0.0
    %1221 = vmatpush1.msra.mxu0 %v865
    %1222 = vmatprep.subr.mxu0 0.0
    %1223 = vmatpush1.msra.mxu0 %v868
    %1224 = vmatprep.subr.mxu0 0.0
    %1225 = vmatpush1.msra.mxu0 %v873
    %1226 = vmatprep.subr.mxu0 0.0
    %1227 = vmatpush1.msra.mxu0 %v876
    %1228 = vmatprep.subr.mxu0 0.0
    %1229 = vmatpush1.msra.mxu0 %v881
    %1230 = vmatprep.subr.mxu0 0.0
    %1231 = vmatpush1.msra.mxu0 %v884
    %1232 = vmatprep.subr.mxu0 0.0
    %1233 = vmatpush1.msra.mxu0 %v889
    %1234 = vmatprep.subr.mxu0 0.0
    %1235 = vmatpush1.msra.mxu0 %v892
    %1236 = vmatprep.subr.mxu0 0.0
    %1237 = vmatpush1.msra.mxu0 %v897
    %1238 = vmatprep.subr.mxu0 0.0
    %1239 = vmatpush1.msra.mxu0 %v900
    %1240 = vmatprep.subr.mxu0 0.0
    %1241 = vmatpush1.msra.mxu0 %v905
    %1242 = vmatprep.subr.mxu0 0.0
    %1243 = vmatpush1.msra.mxu0 %v908
    %1244 = vmatprep.mubr.f32.mxu0 1.0
    %1245 = vmatmul.mubr.f32.gmra.mrb[0].mxu0 1.0
    %v1246 = vpop.f32.mrb[0].mxu0
    %v1247 = vadd.f32 %v1177, %v1246
    %v1248 = vpop.f32.mrb[0].mxu0
    %1249 = vdwg.mxu0
    %1250 = vmatprep.subr.mxu0 0.0
    %1251 = vmatpush1.msra.mxu0 %v913
    %1252 = vmatprep.subr.mxu0 0.0
    %1253 = vmatpush1.msra.mxu0 %v916
    %1254 = vmatprep.subr.mxu0 0.0
    %1255 = vmatpush1.msra.mxu0 %v921
    %1256 = vmatprep.subr.mxu0 0.0
    %1257 = vmatpush1.msra.mxu0 %v924
    %1258 = vmatprep.subr.mxu0 0.0
    %1259 = vmatpush1.msra.mxu0 %v929
    %1260 = vmatprep.subr.mxu0 0.0
    %1261 = vmatpush1.msra.mxu0 %v932
    %1262 = vmatprep.subr.mxu0 0.0
    %1263 = vmatpush1.msra.mxu0 %v937
    %1264 = vmatprep.subr.mxu0 0.0
    %1265 = vmatpush1.msra.mxu0 %v940
    %1266 = vmatprep.subr.mxu0 0.0
    %1267 = vmatpush1.msra.mxu0 %v945
    %1268 = vmatprep.subr.mxu0 0.0
    %1269 = vmatpush1.msra.mxu0 %v948
    %1270 = vmatprep.subr.mxu0 0.0
    %1271 = vmatpush1.msra.mxu0 %v953
    %1272 = vmatprep.subr.mxu0 0.0
    %1273 = vmatpush1.msra.mxu0 %v956
    %1274 = vmatprep.subr.mxu0 0.0
    %1275 = vmatpush1.msra.mxu0 %v961
    %1276 = vmatprep.subr.mxu0 0.0
    %1277 = vmatpush1.msra.mxu0 %v964
    %1278 = vmatprep.subr.mxu0 0.0
    %1279 = vmatpush1.msra.mxu0 %v969
    %1280 = vmatprep.subr.mxu0 0.0
    %1281 = vmatpush1.msra.mxu0 %v972
    %1282 = vmatprep.subr.mxu0 0.0
    %1283 = vmatpush1.msra.mxu0 %v977
    %1284 = vmatprep.subr.mxu0 0.0
    %1285 = vmatpush1.msra.mxu0 %v980
    %1286 = vmatprep.subr.mxu0 0.0
    %1287 = vmatpush1.msra.mxu0 %v985
    %1288 = vmatprep.subr.mxu0 0.0
    %1289 = vmatpush1.msra.mxu0 %v988
    %1290 = vmatprep.subr.mxu0 0.0
    %1291 = vmatpush1.msra.mxu0 %v993
    %1292 = vmatprep.subr.mxu0 0.0
    %1293 = vmatpush1.msra.mxu0 %v996
    %1294 = vmatprep.subr.mxu0 0.0
    %1295 = vmatpush1.msra.mxu0 %v1001
    %1296 = vmatprep.subr.mxu0 0.0
    %1297 = vmatpush1.msra.mxu0 %v1004
    %1298 = vmatprep.subr.mxu0 0.0
    %1299 = vmatpush1.msra.mxu0 %v1009
    %1300 = vmatprep.subr.mxu0 0.0
    %1301 = vmatpush1.msra.mxu0 %v1012
    %1302 = vmatprep.subr.mxu0 0.0
    %1303 = vmatpush1.msra.mxu0 %v1017
    %1304 = vmatprep.subr.mxu0 0.0
    %1305 = vmatpush1.msra.mxu0 %v1020
    %1306 = vmatprep.subr.mxu0 0.0
    %1307 = vmatpush1.msra.mxu0 %v1025
    %1308 = vmatprep.subr.mxu0 0.0
    %1309 = vmatpush1.msra.mxu0 %v1028
    %1310 = vmatprep.subr.mxu0 0.0
    %1311 = vmatpush1.msra.mxu0 %v1033
    %1312 = vmatprep.subr.mxu0 0.0
    %1313 = vmatpush1.msra.mxu0 %v1036
    %1314 = vmatprep.mubr.f32.mxu0 1.0
    %1315 = vmatmul.mubr.f32.gmra.mrb[0].mxu0 1.0
    %v1316 = vpop.f32.mrb[0].mxu0
    %v1317 = vadd.f32 %v1247, %v1316
    %v1318 = vpop.f32.mrb[0].mxu0
    %1319 = vdwg.mxu0
    %1320 = vmatprep.subr.mxu0 0.0
    %1321 = vmatpush1.msra.mxu0 %v1041
    %1322 = vmatprep.subr.mxu0 0.0
    %1323 = vmatpush1.msra.mxu0 %v1044
    %1324 = vmatprep.subr.mxu0 0.0
    %1325 = vmatpush1.msra.mxu0 %v1049
    %1326 = vmatprep.subr.mxu0 0.0
    %1327 = vmatpush1.msra.mxu0 %v1052
    %1328 = vmatprep.subr.mxu0 0.0
    %1329 = vmatpush1.msra.mxu0 %v1057
    %1330 = vmatprep.subr.mxu0 0.0
    %1331 = vmatpush1.msra.mxu0 %v1060
    %1332 = vmatprep.subr.mxu0 0.0
    %1333 = vmatpush1.msra.mxu0 %v1065
    %1334 = vmatprep.subr.mxu0 0.0
    %1335 = vmatpush1.msra.mxu0 %v1068
    %1336 = vmatprep.subr.mxu0 0.0
    %1337 = vmatpush1.msra.mxu0 %v1073
    %1338 = vmatprep.subr.mxu0 0.0
    %1339 = vmatpush1.msra.mxu0 %v1076
    %1340 = vmatprep.subr.mxu0 0.0
    %1341 = vmatpush1.msra.mxu0 %v1081
    %1342 = vmatprep.subr.mxu0 0.0
    %1343 = vmatpush1.msra.mxu0 %v1084
    %1344 = vmatprep.subr.mxu0 0.0
    %1345 = vmatpush1.msra.mxu0 %v1089
    %1346 = vmatprep.subr.mxu0 0.0
    %1347 = vmatpush1.msra.mxu0 %v1092
    %1348 = vmatprep.subr.mxu0 0.0
    %1349 = vmatpush1.msra.mxu0 %v1108
    %1350 = vmatprep.subr.mxu0 0.0
    %1351 = vmatpush1.msra.mxu0 0.0
    %1352 = vmatprep.subr.mxu0 0.0
    %1353 = vmatpush1.msra.mxu0 0.0
    %1354 = vmatprep.subr.mxu0 0.0
    %1355 = vmatpush1.msra.mxu0 0.0
    %1356 = vmatprep.subr.mxu0 0.0
    %1357 = vmatpush1.msra.mxu0 0.0
    %1358 = vmatprep.subr.mxu0 0.0
    %1359 = vmatpush1.msra.mxu0 0.0
    %1360 = vmatprep.subr.mxu0 0.0
    %1361 = vmatpush1.msra.mxu0 0.0
    %1362 = vmatprep.subr.mxu0 0.0
    %1363 = vmatpush1.msra.mxu0 0.0
    %1364 = vmatprep.subr.mxu0 0.0
    %1365 = vmatpush1.msra.mxu0 0.0
    %1366 = vmatprep.subr.mxu0 0.0
    %1367 = vmatpush1.msra.mxu0 0.0
    %1368 = vmatprep.subr.mxu0 0.0
    %1369 = vmatpush1.msra.mxu0 0.0
    %1370 = vmatprep.subr.mxu0 0.0
    %1371 = vmatpush1.msra.mxu0 0.0
    %1372 = vmatprep.subr.mxu0 0.0
    %1373 = vmatpush1.msra.mxu0 0.0
    %1374 = vmatprep.subr.mxu0 0.0
    %1375 = vmatpush1.msra.mxu0 0.0
    %1376 = vmatprep.subr.mxu0 0.0
    %1377 = vmatpush1.msra.mxu0 0.0
    %1378 = vmatprep.subr.mxu0 0.0
    %1379 = vmatpush1.msra.mxu0 0.0
    %1380 = vmatprep.subr.mxu0 0.0
    %1381 = vmatpush1.msra.mxu0 0.0
    %1382 = vmatprep.subr.mxu0 0.0
    %1383 = vmatpush1.msra.mxu0 0.0
    %1384 = vmatprep.mubr.f32.mxu0 0.0
    %1385 = vmatmul.mubr.f32.gmra.mrb[0].mxu0 %v1104
    %v1386 = vpop.f32.mrb[0].mxu0
    %v1387 = vadd.f32 %v1317, %v1386
    %v1388 = vpop.f32.mrb[0].mxu0
    %1389 = vdwg.mxu0
    %v1390 = vmul.f32 %v1387, 0.0011337869
    %v1391 = vlaneseq
    %v1392 = vshrl.u32 %v1391, 7
    %v1393 = vsub.s32 0, %v1392
    %v1394 = vrot.slane %v1390, %v1393
    %v1395 = vsub.f32 %v657, %v1394
    %v1396 = vsub.f32 %v660, %v1394
    %v1397 = vsub.f32 %v665, %v1394
    %v1398 = vsub.f32 %v668, %v1394
    %v1399 = vsub.f32 %v673, %v1394
    %v1400 = vsub.f32 %v676, %v1394
    %v1401 = vsub.f32 %v681, %v1394
    %v1402 = vsub.f32 %v684, %v1394
    %v1403 = vsub.f32 %v689, %v1394
    %v1404 = vsub.f32 %v692, %v1394
    %v1405 = vsub.f32 %v697, %v1394
    %v1406 = vsub.f32 %v700, %v1394
    %v1407 = vsub.f32 %v705, %v1394
    %v1408 = vsub.f32 %v708, %v1394
    %v1409 = vsub.f32 %v713, %v1394
    %v1410 = vsub.f32 %v716, %v1394
    %v1411 = vsub.f32 %v721, %v1394
    %v1412 = vsub.f32 %v724, %v1394
    %v1413 = vsub.f32 %v729, %v1394
    %v1414 = vsub.f32 %v732, %v1394
    %v1415 = vsub.f32 %v737, %v1394
    %v1416 = vsub.f32 %v740, %v1394
    %v1417 = vsub.f32 %v745, %v1394
    %v1418 = vsub.f32 %v748, %v1394
    %v1419 = vsub.f32 %v753, %v1394
    %v1420 = vsub.f32 %v756, %v1394
    %v1421 = vsub.f32 %v761, %v1394
    %v1422 = vsub.f32 %v764, %v1394
    %v1423 = vsub.f32 %v769, %v1394
    %v1424 = vsub.f32 %v772, %v1394
    %v1425 = vsub.f32 %v777, %v1394
    %v1426 = vsub.f32 %v780, %v1394
    %v1427 = vsub.f32 %v785, %v1394
    %v1428 = vsub.f32 %v788, %v1394
    %v1429 = vsub.f32 %v793, %v1394
    %v1430 = vsub.f32 %v796, %v1394
    %v1431 = vsub.f32 %v801, %v1394
    %v1432 = vsub.f32 %v804, %v1394
    %v1433 = vsub.f32 %v809, %v1394
    %v1434 = vsub.f32 %v812, %v1394
    %v1435 = vsub.f32 %v817, %v1394
    %v1436 = vsub.f32 %v820, %v1394
    %v1437 = vsub.f32 %v825, %v1394
    %v1438 = vsub.f32 %v828, %v1394
    %v1439 = vsub.f32 %v833, %v1394
    %v1440 = vsub.f32 %v836, %v1394
    %v1441 = vsub.f32 %v841, %v1394
    %v1442 = vsub.f32 %v844, %v1394
    %v1443 = vsub.f32 %v849, %v1394
    %v1444 = vsub.f32 %v852, %v1394
    %v1445 = vsub.f32 %v857, %v1394
    %v1446 = vsub.f32 %v860, %v1394
    %v1447 = vsub.f32 %v865, %v1394
    %v1448 = vsub.f32 %v868, %v1394
    %v1449 = vsub.f32 %v873, %v1394
    %v1450 = vsub.f32 %v876, %v1394
    %v1451 = vsub.f32 %v881, %v1394
    %v1452 = vsub.f32 %v884, %v1394
    %v1453 = vsub.f32 %v889, %v1394
    %v1454 = vsub.f32 %v892, %v1394
    %v1455 = vsub.f32 %v897, %v1394
    %v1456 = vsub.f32 %v900, %v1394
    %v1457 = vsub.f32 %v905, %v1394
    %v1458 = vsub.f32 %v908, %v1394
    %v1459 = vsub.f32 %v913, %v1394
    %v1460 = vsub.f32 %v916, %v1394
    %v1461 = vsub.f32 %v921, %v1394
    %v1462 = vsub.f32 %v924, %v1394
    %v1463 = vsub.f32 %v929, %v1394
    %v1464 = vsub.f32 %v932, %v1394
    %v1465 = vsub.f32 %v937, %v1394
    %v1466 = vsub.f32 %v940, %v1394
    %v1467 = vsub.f32 %v945, %v1394
    %v1468 = vsub.f32 %v948, %v1394
    %v1469 = vsub.f32 %v953, %v1394
    %v1470 = vsub.f32 %v956, %v1394
    %v1471 = vsub.f32 %v961, %v1394
    %v1472 = vsub.f32 %v964, %v1394
    %v1473 = vsub.f32 %v969, %v1394
    %v1474 = vsub.f32 %v972, %v1394
    %v1475 = vsub.f32 %v977, %v1394
    %v1476 = vsub.f32 %v980, %v1394
    %v1477 = vsub.f32 %v985, %v1394
    %v1478 = vsub.f32 %v988, %v1394
    %v1479 = vsub.f32 %v993, %v1394
    %v1480 = vsub.f32 %v996, %v1394
    %v1481 = vsub.f32 %v1001, %v1394
    %v1482 = vsub.f32 %v1004, %v1394
    %v1483 = vsub.f32 %v1009, %v1394
    %v1484 = vsub.f32 %v1012, %v1394
    %v1485 = vsub.f32 %v1017, %v1394
    %v1486 = vsub.f32 %v1020, %v1394
    %v1487 = vsub.f32 %v1025, %v1394
    %v1488 = vsub.f32 %v1028, %v1394
    %v1489 = vsub.f32 %v1033, %v1394
    %v1490 = vsub.f32 %v1036, %v1394
    %v1491 = vsub.f32 %v1041, %v1394
    %v1492 = vsub.f32 %v1044, %v1394
    %v1493 = vsub.f32 %v1049, %v1394
    %v1494 = vsub.f32 %v1052, %v1394
    %v1495 = vsub.f32 %v1057, %v1394
    %v1496 = vsub.f32 %v1060, %v1394
    %v1497 = vsub.f32 %v1065, %v1394
    %v1498 = vsub.f32 %v1068, %v1394
    %v1499 = vsub.f32 %v1073, %v1394
    %v1500 = vsub.f32 %v1076, %v1394
    %v1501 = vsub.f32 %v1081, %v1394
    %v1502 = vsub.f32 %v1084, %v1394
    %v1503 = vsub.f32 %v1089, %v1394
    %v1504 = vsub.f32 %v1092, %v1394
    %v1505 = vsub.f32 %v1097, %v1394
    %v1506 = vmul.f32 %v1395, %v1395
    %v1507 = vmul.f32 %v1396, %v1396
    %v1508 = vmul.f32 %v1397, %v1397
    %v1509 = vmul.f32 %v1398, %v1398
    %v1510 = vmul.f32 %v1399, %v1399
    %v1511 = vmul.f32 %v1400, %v1400
    %v1512 = vmul.f32 %v1401, %v1401
    %v1513 = vmul.f32 %v1402, %v1402
    %v1514 = vmul.f32 %v1403, %v1403
    %v1515 = vmul.f32 %v1404, %v1404
    %v1516 = vmul.f32 %v1405, %v1405
    %v1517 = vmul.f32 %v1406, %v1406
    %v1518 = vmul.f32 %v1407, %v1407
    %v1519 = vmul.f32 %v1408, %v1408
    %v1520 = vmul.f32 %v1409, %v1409
    %v1521 = vmul.f32 %v1410, %v1410
    %v1522 = vmul.f32 %v1411, %v1411
    %v1523 = vmul.f32 %v1412, %v1412
    %v1524 = vmul.f32 %v1413, %v1413
    %v1525 = vmul.f32 %v1414, %v1414
    %v1526 = vmul.f32 %v1415, %v1415
    %v1527 = vmul.f32 %v1416, %v1416
    %v1528 = vmul.f32 %v1417, %v1417
    %v1529 = vmul.f32 %v1418, %v1418
    %v1530 = vmul.f32 %v1419, %v1419
    %v1531 = vmul.f32 %v1420, %v1420
    %v1532 = vmul.f32 %v1421, %v1421
    %v1533 = vmul.f32 %v1422, %v1422
    %v1534 = vmul.f32 %v1423, %v1423
    %v1535 = vmul.f32 %v1424, %v1424
    %v1536 = vmul.f32 %v1425, %v1425
    %v1537 = vmul.f32 %v1426, %v1426
    %v1538 = vmul.f32 %v1427, %v1427
    %v1539 = vmul.f32 %v1428, %v1428
    %v1540 = vmul.f32 %v1429, %v1429
    %v1541 = vmul.f32 %v1430, %v1430
    %v1542 = vmul.f32 %v1431, %v1431
    %v1543 = vmul.f32 %v1432, %v1432
    %v1544 = vmul.f32 %v1433, %v1433
    %v1545 = vmul.f32 %v1434, %v1434
    %v1546 = vmul.f32 %v1435, %v1435
    %v1547 = vmul.f32 %v1436, %v1436
    %v1548 = vmul.f32 %v1437, %v1437
    %v1549 = vmul.f32 %v1438, %v1438
    %v1550 = vmul.f32 %v1439, %v1439
    %v1551 = vmul.f32 %v1440, %v1440
    %v1552 = vmul.f32 %v1441, %v1441
    %v1553 = vmul.f32 %v1442, %v1442
    %v1554 = vmul.f32 %v1443, %v1443
    %v1555 = vmul.f32 %v1444, %v1444
    %v1556 = vmul.f32 %v1445, %v1445
    %v1557 = vmul.f32 %v1446, %v1446
    %v1558 = vmul.f32 %v1447, %v1447
    %v1559 = vmul.f32 %v1448, %v1448
    %v1560 = vmul.f32 %v1449, %v1449
    %v1561 = vmul.f32 %v1450, %v1450
    %v1562 = vmul.f32 %v1451, %v1451
    %v1563 = vmul.f32 %v1452, %v1452
    %v1564 = vmul.f32 %v1453, %v1453
    %v1565 = vmul.f32 %v1454, %v1454
    %v1566 = vmul.f32 %v1455, %v1455
    %v1567 = vmul.f32 %v1456, %v1456
    %v1568 = vmul.f32 %v1457, %v1457
    %v1569 = vmul.f32 %v1458, %v1458
    %v1570 = vmul.f32 %v1459, %v1459
    %v1571 = vmul.f32 %v1460, %v1460
    %v1572 = vmul.f32 %v1461, %v1461
    %v1573 = vmul.f32 %v1462, %v1462
    %v1574 = vmul.f32 %v1463, %v1463
    %v1575 = vmul.f32 %v1464, %v1464
    %v1576 = vmul.f32 %v1465, %v1465
    %v1577 = vmul.f32 %v1466, %v1466
    %v1578 = vmul.f32 %v1467, %v1467
    %v1579 = vmul.f32 %v1468, %v1468
    %v1580 = vmul.f32 %v1469, %v1469
    %v1581 = vmul.f32 %v1470, %v1470
    %v1582 = vmul.f32 %v1471, %v1471
    %v1583 = vmul.f32 %v1472, %v1472
    %v1584 = vmul.f32 %v1473, %v1473
    %v1585 = vmul.f32 %v1474, %v1474
    %v1586 = vmul.f32 %v1475, %v1475
    %v1587 = vmul.f32 %v1476, %v1476
    %v1588 = vmul.f32 %v1477, %v1477
    %v1589 = vmul.f32 %v1478, %v1478
    %v1590 = vmul.f32 %v1479, %v1479
    %v1591 = vmul.f32 %v1480, %v1480
    %v1592 = vmul.f32 %v1481, %v1481
    %v1593 = vmul.f32 %v1482, %v1482
    %v1594 = vmul.f32 %v1483, %v1483
    %v1595 = vmul.f32 %v1484, %v1484
    %v1596 = vmul.f32 %v1485, %v1485
    %v1597 = vmul.f32 %v1486, %v1486
    %v1598 = vmul.f32 %v1487, %v1487
    %v1599 = vmul.f32 %v1488, %v1488
    %v1600 = vmul.f32 %v1489, %v1489
    %v1601 = vmul.f32 %v1490, %v1490
    %v1602 = vmul.f32 %v1491, %v1491
    %v1603 = vmul.f32 %v1492, %v1492
    %v1604 = vmul.f32 %v1493, %v1493
    %v1605 = vmul.f32 %v1494, %v1494
    %v1606 = vmul.f32 %v1495, %v1495
    %v1607 = vmul.f32 %v1496, %v1496
    %v1608 = vmul.f32 %v1497, %v1497
    %v1609 = vmul.f32 %v1498, %v1498
    %v1610 = vmul.f32 %v1499, %v1499
    %v1611 = vmul.f32 %v1500, %v1500
    %v1612 = vmul.f32 %v1501, %v1501
    %v1613 = vmul.f32 %v1502, %v1502
    %v1614 = vmul.f32 %v1503, %v1503
    %v1615 = vmul.f32 %v1504, %v1504
    %v1616 = vmul.f32 %v1505, %v1505
    %v1618 = vsel %vm1106, %v1616, 0
    %1620 = vmatprep.subr.mxu0 0.0
    %1621 = vmatpush1.msra.mxu0 %v1506
    %1622 = vmatprep.subr.mxu0 0.0
    %1623 = vmatpush1.msra.mxu0 %v1507
    %1624 = vmatprep.subr.mxu0 0.0
    %1625 = vmatpush1.msra.mxu0 %v1508
    %1626 = vmatprep.subr.mxu0 0.0
    %1627 = vmatpush1.msra.mxu0 %v1509
    %1628 = vmatprep.subr.mxu0 0.0
    %1629 = vmatpush1.msra.mxu0 %v1510
    %1630 = vmatprep.subr.mxu0 0.0
    %1631 = vmatpush1.msra.mxu0 %v1511
    %1632 = vmatprep.subr.mxu0 0.0
    %1633 = vmatpush1.msra.mxu0 %v1512
    %1634 = vmatprep.subr.mxu0 0.0
    %1635 = vmatpush1.msra.mxu0 %v1513
    %1636 = vmatprep.subr.mxu0 0.0
    %1637 = vmatpush1.msra.mxu0 %v1514
    %1638 = vmatprep.subr.mxu0 0.0
    %1639 = vmatpush1.msra.mxu0 %v1515
    %1640 = vmatprep.subr.mxu0 0.0
    %1641 = vmatpush1.msra.mxu0 %v1516
    %1642 = vmatprep.subr.mxu0 0.0
    %1643 = vmatpush1.msra.mxu0 %v1517
    %1644 = vmatprep.subr.mxu0 0.0
    %1645 = vmatpush1.msra.mxu0 %v1518
    %1646 = vmatprep.subr.mxu0 0.0
    %1647 = vmatpush1.msra.mxu0 %v1519
    %1648 = vmatprep.subr.mxu0 0.0
    %1649 = vmatpush1.msra.mxu0 %v1520
    %1650 = vmatprep.subr.mxu0 0.0
    %1651 = vmatpush1.msra.mxu0 %v1521
    %1652 = vmatprep.subr.mxu0 0.0
    %1653 = vmatpush1.msra.mxu0 %v1522
    %1654 = vmatprep.subr.mxu0 0.0
    %1655 = vmatpush1.msra.mxu0 %v1523
    %1656 = vmatprep.subr.mxu0 0.0
    %1657 = vmatpush1.msra.mxu0 %v1524
    %1658 = vmatprep.subr.mxu0 0.0
    %1659 = vmatpush1.msra.mxu0 %v1525
    %1660 = vmatprep.subr.mxu0 0.0
    %1661 = vmatpush1.msra.mxu0 %v1526
    %1662 = vmatprep.subr.mxu0 0.0
    %1663 = vmatpush1.msra.mxu0 %v1527
    %1664 = vmatprep.subr.mxu0 0.0
    %1665 = vmatpush1.msra.mxu0 %v1528
    %1666 = vmatprep.subr.mxu0 0.0
    %1667 = vmatpush1.msra.mxu0 %v1529
    %1668 = vmatprep.subr.mxu0 0.0
    %1669 = vmatpush1.msra.mxu0 %v1530
    %1670 = vmatprep.subr.mxu0 0.0
    %1671 = vmatpush1.msra.mxu0 %v1531
    %1672 = vmatprep.subr.mxu0 0.0
    %1673 = vmatpush1.msra.mxu0 %v1532
    %1674 = vmatprep.subr.mxu0 0.0
    %1675 = vmatpush1.msra.mxu0 %v1533
    %1676 = vmatprep.subr.mxu0 0.0
    %1677 = vmatpush1.msra.mxu0 %v1534
    %1678 = vmatprep.subr.mxu0 0.0
    %1679 = vmatpush1.msra.mxu0 %v1535
    %1680 = vmatprep.subr.mxu0 0.0
    %1681 = vmatpush1.msra.mxu0 %v1536
    %1682 = vmatprep.subr.mxu0 0.0
    %1683 = vmatpush1.msra.mxu0 %v1537
    %1684 = vmatprep.mubr.f32.mxu0 1.0
    %1685 = vmatmul.mubr.f32.gmra.mrb[0].mxu0 1.0
    %v1686 = vpop.f32.mrb[0].mxu0
    %v1687 = vadd.f32 0.0, %v1686
    %v1688 = vpop.f32.mrb[0].mxu0
    %1689 = vdwg.mxu0
    %1690 = vmatprep.subr.mxu0 0.0
    %1691 = vmatpush1.msra.mxu0 %v1538
    %1692 = vmatprep.subr.mxu0 0.0
    %1693 = vmatpush1.msra.mxu0 %v1539
    %1694 = vmatprep.subr.mxu0 0.0
    %1695 = vmatpush1.msra.mxu0 %v1540
    %1696 = vmatprep.subr.mxu0 0.0
    %1697 = vmatpush1.msra.mxu0 %v1541
    %1698 = vmatprep.subr.mxu0 0.0
    %1699 = vmatpush1.msra.mxu0 %v1542
    %1700 = vmatprep.subr.mxu0 0.0
    %1701 = vmatpush1.msra.mxu0 %v1543
    %1702 = vmatprep.subr.mxu0 0.0
    %1703 = vmatpush1.msra.mxu0 %v1544
    %1704 = vmatprep.subr.mxu0 0.0
    %1705 = vmatpush1.msra.mxu0 %v1545
    %1706 = vmatprep.subr.mxu0 0.0
    %1707 = vmatpush1.msra.mxu0 %v1546
    %1708 = vmatprep.subr.mxu0 0.0
    %1709 = vmatpush1.msra.mxu0 %v1547
    %1710 = vmatprep.subr.mxu0 0.0
    %1711 = vmatpush1.msra.mxu0 %v1548
    %1712 = vmatprep.subr.mxu0 0.0
    %1713 = vmatpush1.msra.mxu0 %v1549
    %1714 = vmatprep.subr.mxu0 0.0
    %1715 = vmatpush1.msra.mxu0 %v1550
    %1716 = vmatprep.subr.mxu0 0.0
    %1717 = vmatpush1.msra.mxu0 %v1551
    %1718 = vmatprep.subr.mxu0 0.0
    %1719 = vmatpush1.msra.mxu0 %v1552
    %1720 = vmatprep.subr.mxu0 0.0
    %1721 = vmatpush1.msra.mxu0 %v1553
    %1722 = vmatprep.subr.mxu0 0.0
    %1723 = vmatpush1.msra.mxu0 %v1554
    %1724 = vmatprep.subr.mxu0 0.0
    %1725 = vmatpush1.msra.mxu0 %v1555
    %1726 = vmatprep.subr.mxu0 0.0
    %1727 = vmatpush1.msra.mxu0 %v1556
    %1728 = vmatprep.subr.mxu0 0.0
    %1729 = vmatpush1.msra.mxu0 %v1557
    %1730 = vmatprep.subr.mxu0 0.0
    %1731 = vmatpush1.msra.mxu0 %v1558
    %1732 = vmatprep.subr.mxu0 0.0
    %1733 = vmatpush1.msra.mxu0 %v1559
    %1734 = vmatprep.subr.mxu0 0.0
    %1735 = vmatpush1.msra.mxu0 %v1560
    %1736 = vmatprep.subr.mxu0 0.0
    %1737 = vmatpush1.msra.mxu0 %v1561
    %1738 = vmatprep.subr.mxu0 0.0
    %1739 = vmatpush1.msra.mxu0 %v1562
    %1740 = vmatprep.subr.mxu0 0.0
    %1741 = vmatpush1.msra.mxu0 %v1563
    %1742 = vmatprep.subr.mxu0 0.0
    %1743 = vmatpush1.msra.mxu0 %v1564
    %1744 = vmatprep.subr.mxu0 0.0
    %1745 = vmatpush1.msra.mxu0 %v1565
    %1746 = vmatprep.subr.mxu0 0.0
    %1747 = vmatpush1.msra.mxu0 %v1566
    %1748 = vmatprep.subr.mxu0 0.0
    %1749 = vmatpush1.msra.mxu0 %v1567
    %1750 = vmatprep.subr.mxu0 0.0
    %1751 = vmatpush1.msra.mxu0 %v1568
    %1752 = vmatprep.subr.mxu0 0.0
    %1753 = vmatpush1.msra.mxu0 %v1569
    %1754 = vmatprep.mubr.f32.mxu0 1.0
    %1755 = vmatmul.mubr.f32.gmra.mrb[0].mxu0 1.0
    %v1756 = vpop.f32.mrb[0].mxu0
    %v1757 = vadd.f32 %v1687, %v1756
    %v1758 = vpop.f32.mrb[0].mxu0
    %1759 = vdwg.mxu0
    %1760 = vmatprep.subr.mxu0 0.0
    %1761 = vmatpush1.msra.mxu0 %v1570
    %1762 = vmatprep.subr.mxu0 0.0
    %1763 = vmatpush1.msra.mxu0 %v1571
    %1764 = vmatprep.subr.mxu0 0.0
    %1765 = vmatpush1.msra.mxu0 %v1572
    %1766 = vmatprep.subr.mxu0 0.0
    %1767 = vmatpush1.msra.mxu0 %v1573
    %1768 = vmatprep.subr.mxu0 0.0
    %1769 = vmatpush1.msra.mxu0 %v1574
    %1770 = vmatprep.subr.mxu0 0.0
    %1771 = vmatpush1.msra.mxu0 %v1575
    %1772 = vmatprep.subr.mxu0 0.0
    %1773 = vmatpush1.msra.mxu0 %v1576
    %1774 = vmatprep.subr.mxu0 0.0
    %1775 = vmatpush1.msra.mxu0 %v1577
    %1776 = vmatprep.subr.mxu0 0.0
    %1777 = vmatpush1.msra.mxu0 %v1578
    %1778 = vmatprep.subr.mxu0 0.0
    %1779 = vmatpush1.msra.mxu0 %v1579
    %1780 = vmatprep.subr.mxu0 0.0
    %1781 = vmatpush1.msra.mxu0 %v1580
    %1782 = vmatprep.subr.mxu0 0.0
    %1783 = vmatpush1.msra.mxu0 %v1581
    %1784 = vmatprep.subr.mxu0 0.0
    %1785 = vmatpush1.msra.mxu0 %v1582
    %1786 = vmatprep.subr.mxu0 0.0
    %1787 = vmatpush1.msra.mxu0 %v1583
    %1788 = vmatprep.subr.mxu0 0.0
    %1789 = vmatpush1.msra.mxu0 %v1584
    %1790 = vmatprep.subr.mxu0 0.0
    %1791 = vmatpush1.msra.mxu0 %v1585
    %1792 = vmatprep.subr.mxu0 0.0
    %1793 = vmatpush1.msra.mxu0 %v1586
    %1794 = vmatprep.subr.mxu0 0.0
    %1795 = vmatpush1.msra.mxu0 %v1587
    %1796 = vmatprep.subr.mxu0 0.0
    %1797 = vmatpush1.msra.mxu0 %v1588
    %1798 = vmatprep.subr.mxu0 0.0
    %1799 = vmatpush1.msra.mxu0 %v1589
    %1800 = vmatprep.subr.mxu0 0.0
    %1801 = vmatpush1.msra.mxu0 %v1590
    %1802 = vmatprep.subr.mxu0 0.0
    %1803 = vmatpush1.msra.mxu0 %v1591
    %1804 = vmatprep.subr.mxu0 0.0
    %1805 = vmatpush1.msra.mxu0 %v1592
    %1806 = vmatprep.subr.mxu0 0.0
    %1807 = vmatpush1.msra.mxu0 %v1593
    %1808 = vmatprep.subr.mxu0 0.0
    %1809 = vmatpush1.msra.mxu0 %v1594
    %1810 = vmatprep.subr.mxu0 0.0
    %1811 = vmatpush1.msra.mxu0 %v1595
    %1812 = vmatprep.subr.mxu0 0.0
    %1813 = vmatpush1.msra.mxu0 %v1596
    %1814 = vmatprep.subr.mxu0 0.0
    %1815 = vmatpush1.msra.mxu0 %v1597
    %1816 = vmatprep.subr.mxu0 0.0
    %1817 = vmatpush1.msra.mxu0 %v1598
    %1818 = vmatprep.subr.mxu0 0.0
    %1819 = vmatpush1.msra.mxu0 %v1599
    %1820 = vmatprep.subr.mxu0 0.0
    %1821 = vmatpush1.msra.mxu0 %v1600
    %1822 = vmatprep.subr.mxu0 0.0
    %1823 = vmatpush1.msra.mxu0 %v1601
    %1824 = vmatprep.mubr.f32.mxu0 1.0
    %1825 = vmatmul.mubr.f32.gmra.mrb[0].mxu0 1.0
    %v1826 = vpop.f32.mrb[0].mxu0
    %v1827 = vadd.f32 %v1757, %v1826
    %v1828 = vpop.f32.mrb[0].mxu0
    %1829 = vdwg.mxu0
    %1830 = vmatprep.subr.mxu0 0.0
    %1831 = vmatpush1.msra.mxu0 %v1602
    %1832 = vmatprep.subr.mxu0 0.0
    %1833 = vmatpush1.msra.mxu0 %v1603
    %1834 = vmatprep.subr.mxu0 0.0
    %1835 = vmatpush1.msra.mxu0 %v1604
    %1836 = vmatprep.subr.mxu0 0.0
    %1837 = vmatpush1.msra.mxu0 %v1605
    %1838 = vmatprep.subr.mxu0 0.0
    %1839 = vmatpush1.msra.mxu0 %v1606
    %1840 = vmatprep.subr.mxu0 0.0
    %1841 = vmatpush1.msra.mxu0 %v1607
    %1842 = vmatprep.subr.mxu0 0.0
    %1843 = vmatpush1.msra.mxu0 %v1608
    %1844 = vmatprep.subr.mxu0 0.0
    %1845 = vmatpush1.msra.mxu0 %v1609
    %1846 = vmatprep.subr.mxu0 0.0
    %1847 = vmatpush1.msra.mxu0 %v1610
    %1848 = vmatprep.subr.mxu0 0.0
    %1849 = vmatpush1.msra.mxu0 %v1611
    %1850 = vmatprep.subr.mxu0 0.0
    %1851 = vmatpush1.msra.mxu0 %v1612
    %1852 = vmatprep.subr.mxu0 0.0
    %1853 = vmatpush1.msra.mxu0 %v1613
    %1854 = vmatprep.subr.mxu0 0.0
    %1855 = vmatpush1.msra.mxu0 %v1614
    %1856 = vmatprep.subr.mxu0 0.0
    %1857 = vmatpush1.msra.mxu0 %v1615
    %1858 = vmatprep.subr.mxu0 0.0
    %1859 = vmatpush1.msra.mxu0 %v1618
    %1860 = vmatprep.subr.mxu0 0.0
    %1861 = vmatpush1.msra.mxu0 0.0
    %1862 = vmatprep.subr.mxu0 0.0
    %1863 = vmatpush1.msra.mxu0 0.0
    %1864 = vmatprep.subr.mxu0 0.0
    %1865 = vmatpush1.msra.mxu0 0.0
    %1866 = vmatprep.subr.mxu0 0.0
    %1867 = vmatpush1.msra.mxu0 0.0
    %1868 = vmatprep.subr.mxu0 0.0
    %1869 = vmatpush1.msra.mxu0 0.0
    %1870 = vmatprep.subr.mxu0 0.0
    %1871 = vmatpush1.msra.mxu0 0.0
    %1872 = vmatprep.subr.mxu0 0.0
    %1873 = vmatpush1.msra.mxu0 0.0
    %1874 = vmatprep.subr.mxu0 0.0
    %1875 = vmatpush1.msra.mxu0 0.0
    %1876 = vmatprep.subr.mxu0 0.0
    %1877 = vmatpush1.msra.mxu0 0.0
    %1878 = vmatprep.subr.mxu0 0.0
    %1879 = vmatpush1.msra.mxu0 0.0
    %1880 = vmatprep.subr.mxu0 0.0
    %1881 = vmatpush1.msra.mxu0 0.0
    %1882 = vmatprep.subr.mxu0 0.0
    %1883 = vmatpush1.msra.mxu0 0.0
    %1884 = vmatprep.subr.mxu0 0.0
    %1885 = vmatpush1.msra.mxu0 0.0
    %1886 = vmatprep.subr.mxu0 0.0
    %1887 = vmatpush1.msra.mxu0 0.0
    %1888 = vmatprep.subr.mxu0 0.0
    %1889 = vmatpush1.msra.mxu0 0.0
    %1890 = vmatprep.subr.mxu0 0.0
    %1891 = vmatpush1.msra.mxu0 0.0
    %1892 = vmatprep.subr.mxu0 0.0
    %1893 = vmatpush1.msra.mxu0 0.0
    %1894 = vmatprep.mubr.f32.mxu0 0.0
    %1895 = vmatmul.mubr.f32.gmra.mrb[0].mxu0 %v1104
    %v1896 = vpop.f32.mrb[0].mxu0
    %v1897 = vadd.f32 %v1827, %v1896
    %v1898 = vpop.f32.mrb[0].mxu0
    %1899 = vdwg.mxu0
    %v1900 = vmul.f32 %v1897, 0.0011337869
    %v1901 = vadd.f32 %v1900, 1e-05
    %v1902 = vrsqrt.pop %v1901
    %v1903 = vld [vmem:[#allocation2] sm:$0x1]
    %v1904 = vmul.f32 %v1902, %v1903
    %v1905 = vlaneseq
    %v1906 = vshrl.u32 %v1905, 7
    %v1907 = vsub.s32 0, %v1906
    %v1908 = vrot.slane %v1904, %v1907
    %v1909 = vmul.f32 %v1395, %v1908
    %v1910 = vmul.f32 %v1396, %v1908
    %v1911 = vmul.f32 %v1397, %v1908
    %v1912 = vmul.f32 %v1398, %v1908
    %v1913 = vmul.f32 %v1399, %v1908
    %v1914 = vmul.f32 %v1400, %v1908
    %v1915 = vmul.f32 %v1401, %v1908
    %v1916 = vmul.f32 %v1402, %v1908
    %v1917 = vmul.f32 %v1403, %v1908
    %v1918 = vmul.f32 %v1404, %v1908
    %v1919 = vmul.f32 %v1405, %v1908
    %v1920 = vmul.f32 %v1406, %v1908
    %v1921 = vmul.f32 %v1407, %v1908
    %v1922 = vmul.f32 %v1408, %v1908
    %v1923 = vmul.f32 %v1409, %v1908
    %v1924 = vmul.f32 %v1410, %v1908
    %v1925 = vmul.f32 %v1411, %v1908
    %v1926 = vmul.f32 %v1412, %v1908
    %v1927 = vmul.f32 %v1413, %v1908
    %v1928 = vmul.f32 %v1414, %v1908
    %v1929 = vmul.f32 %v1415, %v1908
    %v1930 = vmul.f32 %v1416, %v1908
    %v1931 = vmul.f32 %v1417, %v1908
    %v1932 = vmul.f32 %v1418, %v1908
    %v1933 = vmul.f32 %v1419, %v1908
    %v1934 = vmul.f32 %v1420, %v1908
    %v1935 = vmul.f32 %v1421, %v1908
    %v1936 = vmul.f32 %v1422, %v1908
    %v1937 = vmul.f32 %v1423, %v1908
    %v1938 = vmul.f32 %v1424, %v1908
    %v1939 = vmul.f32 %v1425, %v1908
    %v1940 = vmul.f32 %v1426, %v1908
    %v1941 = vmul.f32 %v1427, %v1908
    %v1942 = vmul.f32 %v1428, %v1908
    %v1943 = vmul.f32 %v1429, %v1908
    %v1944 = vmul.f32 %v1430, %v1908
    %v1945 = vmul.f32 %v1431, %v1908
    %v1946 = vmul.f32 %v1432, %v1908
    %v1947 = vmul.f32 %v1433, %v1908
    %v1948 = vmul.f32 %v1434, %v1908
    %v1949 = vmul.f32 %v1435, %v1908
    %v1950 = vmul.f32 %v1436, %v1908
    %v1951 = vmul.f32 %v1437, %v1908
    %v1952 = vmul.f32 %v1438, %v1908
    %v1953 = vmul.f32 %v1439, %v1908
    %v1954 = vmul.f32 %v1440, %v1908
    %v1955 = vmul.f32 %v1441, %v1908
    %v1956 = vmul.f32 %v1442, %v1908
    %v1957 = vmul.f32 %v1443, %v1908
    %v1958 = vmul.f32 %v1444, %v1908
    %v1959 = vmul.f32 %v1445, %v1908
    %v1960 = vmul.f32 %v1446, %v1908
    %v1961 = vmul.f32 %v1447, %v1908
    %v1962 = vmul.f32 %v1448, %v1908
    %v1963 = vmul.f32 %v1449, %v1908
    %v1964 = vmul.f32 %v1450, %v1908
    %v1965 = vmul.f32 %v1451, %v1908
    %v1966 = vmul.f32 %v1452, %v1908
    %v1967 = vmul.f32 %v1453, %v1908
    %v1968 = vmul.f32 %v1454, %v1908
    %v1969 = vmul.f32 %v1455, %v1908
    %v1970 = vmul.f32 %v1456, %v1908
    %v1971 = vmul.f32 %v1457, %v1908
    %v1972 = vmul.f32 %v1458, %v1908
    %v1973 = vmul.f32 %v1459, %v1908
    %v1974 = vmul.f32 %v1460, %v1908
    %v1975 = vmul.f32 %v1461, %v1908
    %v1976 = vmul.f32 %v1462, %v1908
    %v1977 = vmul.f32 %v1463, %v1908
    %v1978 = vmul.f32 %v1464, %v1908
    %v1979 = vmul.f32 %v1465, %v1908
    %v1980 = vmul.f32 %v1466, %v1908
    %v1981 = vmul.f32 %v1467, %v1908
    %v1982 = vmul.f32 %v1468, %v1908
    %v1983 = vmul.f32 %v1469, %v1908
    %v1984 = vmul.f32 %v1470, %v1908
    %v1985 = vmul.f32 %v1471, %v1908
    %v1986 = vmul.f32 %v1472, %v1908
    %v1987 = vmul.f32 %v1473, %v1908
    %v1988 = vmul.f32 %v1474, %v1908
    %v1989 = vmul.f32 %v1475, %v1908
    %v1990 = vmul.f32 %v1476, %v1908
    %v1991 = vmul.f32 %v1477, %v1908
    %v1992 = vmul.f32 %v1478, %v1908
    %v1993 = vmul.f32 %v1479, %v1908
    %v1994 = vmul.f32 %v1480, %v1908
    %v1995 = vmul.f32 %v1481, %v1908
    %v1996 = vmul.f32 %v1482, %v1908
    %v1997 = vmul.f32 %v1483, %v1908
    %v1998 = vmul.f32 %v1484, %v1908
    %v1999 = vmul.f32 %v1485, %v1908
    %v2000 = vmul.f32 %v1486, %v1908
    %v2001 = vmul.f32 %v1487, %v1908
    %v2002 = vmul.f32 %v1488, %v1908
    %v2003 = vmul.f32 %v1489, %v1908
    %v2004 = vmul.f32 %v1490, %v1908
    %v2005 = vmul.f32 %v1491, %v1908
    %v2006 = vmul.f32 %v1492, %v1908
    %v2007 = vmul.f32 %v1493, %v1908
    %v2008 = vmul.f32 %v1494, %v1908
    %v2009 = vmul.f32 %v1495, %v1908
    %v2010 = vmul.f32 %v1496, %v1908
    %v2011 = vmul.f32 %v1497, %v1908
    %v2012 = vmul.f32 %v1498, %v1908
    %v2013 = vmul.f32 %v1499, %v1908
    %v2014 = vmul.f32 %v1500, %v1908
    %v2015 = vmul.f32 %v1501, %v1908
    %v2016 = vmul.f32 %v1502, %v1908
    %v2017 = vmul.f32 %v1503, %v1908
    %v2018 = vmul.f32 %v1504, %v1908
    %v2019 = vmul.f32 %v1505, %v1908
    %v2020 = vld [vmem:[#allocation4] sm:$0x1]
    %v2022 = vlaneseq
    %v2023 = vshrl.u32 %v2022, 7
    %v2024 = vsub.s32 0, %v2023
    %v2025 = vrot.slane %v2020, %v2024
    %v2027 = vadd.f32 %v1909, %v2025
    %v2028 = vadd.f32 %v1910, %v2025
    %v2029 = vadd.f32 %v1911, %v2025
    %v2030 = vadd.f32 %v1912, %v2025
    %v2031 = vadd.f32 %v1913, %v2025
    %v2032 = vadd.f32 %v1914, %v2025
    %v2033 = vadd.f32 %v1915, %v2025
    %v2034 = vadd.f32 %v1916, %v2025
    %v2035 = vadd.f32 %v1917, %v2025
    %v2036 = vadd.f32 %v1918, %v2025
    %v2037 = vadd.f32 %v1919, %v2025
    %v2038 = vadd.f32 %v1920, %v2025
    %v2039 = vadd.f32 %v1921, %v2025
    %v2040 = vadd.f32 %v1922, %v2025
    %v2041 = vadd.f32 %v1923, %v2025
    %v2042 = vadd.f32 %v1924, %v2025
    %v2043 = vadd.f32 %v1925, %v2025
    %v2044 = vadd.f32 %v1926, %v2025
    %v2045 = vadd.f32 %v1927, %v2025
    %v2046 = vadd.f32 %v1928, %v2025
    %v2047 = vadd.f32 %v1929, %v2025
    %v2048 = vadd.f32 %v1930, %v2025
    %v2049 = vadd.f32 %v1931, %v2025
    %v2050 = vadd.f32 %v1932, %v2025
    %v2051 = vadd.f32 %v1933, %v2025
    %v2052 = vadd.f32 %v1934, %v2025
    %v2053 = vadd.f32 %v1935, %v2025
    %v2054 = vadd.f32 %v1936, %v2025
    %v2055 = vadd.f32 %v1937, %v2025
    %v2056 = vadd.f32 %v1938, %v2025
    %v2057 = vadd.f32 %v1939, %v2025
    %v2058 = vadd.f32 %v1940, %v2025
    %v2059 = vadd.f32 %v1941, %v2025
    %v2060 = vadd.f32 %v1942, %v2025
    %v2061 = vadd.f32 %v1943, %v2025
    %v2062 = vadd.f32 %v1944, %v2025
    %v2063 = vadd.f32 %v1945, %v2025
    %v2064 = vadd.f32 %v1946, %v2025
    %v2065 = vadd.f32 %v1947, %v2025
    %v2066 = vadd.f32 %v1948, %v2025
    %v2067 = vadd.f32 %v1949, %v2025
    %v2068 = vadd.f32 %v1950, %v2025
    %v2069 = vadd.f32 %v1951, %v2025
    %v2070 = vadd.f32 %v1952, %v2025
    %v2071 = vadd.f32 %v1953, %v2025
    %v2072 = vadd.f32 %v1954, %v2025
    %v2073 = vadd.f32 %v1955, %v2025
    %v2074 = vadd.f32 %v1956, %v2025
    %v2075 = vadd.f32 %v1957, %v2025
    %v2076 = vadd.f32 %v1958, %v2025
    %v2077 = vadd.f32 %v1959, %v2025
    %v2078 = vadd.f32 %v1960, %v2025
    %v2079 = vadd.f32 %v1961, %v2025
    %v2080 = vadd.f32 %v1962, %v2025
    %v2081 = vadd.f32 %v1963, %v2025
    %v2082 = vadd.f32 %v1964, %v2025
    %v2083 = vadd.f32 %v1965, %v2025
    %v2084 = vadd.f32 %v1966, %v2025
    %v2085 = vadd.f32 %v1967, %v2025
    %v2086 = vadd.f32 %v1968, %v2025
    %v2087 = vadd.f32 %v1969, %v2025
    %v2088 = vadd.f32 %v1970, %v2025
    %v2089 = vadd.f32 %v1971, %v2025
    %v2090 = vadd.f32 %v1972, %v2025
    %v2091 = vadd.f32 %v1973, %v2025
    %v2092 = vadd.f32 %v1974, %v2025
    %v2093 = vadd.f32 %v1975, %v2025
    %v2094 = vadd.f32 %v1976, %v2025
    %v2095 = vadd.f32 %v1977, %v2025
    %v2096 = vadd.f32 %v1978, %v2025
    %v2097 = vadd.f32 %v1979, %v2025
    %v2098 = vadd.f32 %v1980, %v2025
    %v2099 = vadd.f32 %v1981, %v2025
    %v2100 = vadd.f32 %v1982, %v2025
    %v2101 = vadd.f32 %v1983, %v2025
    %v2102 = vadd.f32 %v1984, %v2025
    %v2103 = vadd.f32 %v1985, %v2025
    %v2104 = vadd.f32 %v1986, %v2025
    %v2105 = vadd.f32 %v1987, %v2025
    %v2106 = vadd.f32 %v1988, %v2025
    %v2107 = vadd.f32 %v1989, %v2025
    %v2108 = vadd.f32 %v1990, %v2025
    %v2109 = vadd.f32 %v1991, %v2025
    %v2110 = vadd.f32 %v1992, %v2025
    %v2111 = vadd.f32 %v1993, %v2025
    %v2112 = vadd.f32 %v1994, %v2025
    %v2113 = vadd.f32 %v1995, %v2025
    %v2114 = vadd.f32 %v1996, %v2025
    %v2115 = vadd.f32 %v1997, %v2025
    %v2116 = vadd.f32 %v1998, %v2025
    %v2117 = vadd.f32 %v1999, %v2025
    %v2118 = vadd.f32 %v2000, %v2025
    %v2119 = vadd.f32 %v2001, %v2025
    %v2120 = vadd.f32 %v2002, %v2025
    %v2121 = vadd.f32 %v2003, %v2025
    %v2122 = vadd.f32 %v2004, %v2025
    %v2123 = vadd.f32 %v2005, %v2025
    %v2124 = vadd.f32 %v2006, %v2025
    %v2125 = vadd.f32 %v2007, %v2025
    %v2126 = vadd.f32 %v2008, %v2025
    %v2127 = vadd.f32 %v2009, %v2025
    %v2128 = vadd.f32 %v2010, %v2025
    %v2129 = vadd.f32 %v2011, %v2025
    %v2130 = vadd.f32 %v2012, %v2025
    %v2131 = vadd.f32 %v2013, %v2025
    %v2132 = vadd.f32 %v2014, %v2025
    %v2133 = vadd.f32 %v2015, %v2025
    %v2134 = vadd.f32 %v2016, %v2025
    %v2135 = vadd.f32 %v2017, %v2025
    %v2136 = vadd.f32 %v2018, %v2025
    %v2137 = vadd.f32 %v2019, %v2025
    %v2138 = vmax.f32 %v2027, 0.0
    %v2139 = vmax.f32 %v2028, 0.0
    %v2140 = vmax.f32 %v2029, 0.0
    %v2141 = vmax.f32 %v2030, 0.0
    %v2142 = vmax.f32 %v2031, 0.0
    %v2143 = vmax.f32 %v2032, 0.0
    %v2144 = vmax.f32 %v2033, 0.0
    %v2145 = vmax.f32 %v2034, 0.0
    %v2146 = vmax.f32 %v2035, 0.0
    %v2147 = vmax.f32 %v2036, 0.0
    %v2148 = vmax.f32 %v2037, 0.0
    %v2149 = vmax.f32 %v2038, 0.0
    %v2150 = vmax.f32 %v2039, 0.0
    %v2151 = vmax.f32 %v2040, 0.0
    %v2152 = vmax.f32 %v2041, 0.0
    %v2153 = vmax.f32 %v2042, 0.0
    %v2154 = vmax.f32 %v2043, 0.0
    %v2155 = vmax.f32 %v2044, 0.0
    %v2156 = vmax.f32 %v2045, 0.0
    %v2157 = vmax.f32 %v2046, 0.0
    %v2158 = vmax.f32 %v2047, 0.0
    %v2159 = vmax.f32 %v2048, 0.0
    %v2160 = vmax.f32 %v2049, 0.0
    %v2161 = vmax.f32 %v2050, 0.0
    %v2162 = vmax.f32 %v2051, 0.0
    %v2163 = vmax.f32 %v2052, 0.0
    %v2164 = vmax.f32 %v2053, 0.0
    %v2165 = vmax.f32 %v2054, 0.0
    %v2166 = vmax.f32 %v2055, 0.0
    %v2167 = vmax.f32 %v2056, 0.0
    %v2168 = vmax.f32 %v2057, 0.0
    %v2169 = vmax.f32 %v2058, 0.0
    %v2170 = vmax.f32 %v2059, 0.0
    %v2171 = vmax.f32 %v2060, 0.0
    %v2172 = vmax.f32 %v2061, 0.0
    %v2173 = vmax.f32 %v2062, 0.0
    %v2174 = vmax.f32 %v2063, 0.0
    %v2175 = vmax.f32 %v2064, 0.0
    %v2176 = vmax.f32 %v2065, 0.0
    %v2177 = vmax.f32 %v2066, 0.0
    %v2178 = vmax.f32 %v2067, 0.0
    %v2179 = vmax.f32 %v2068, 0.0
    %v2180 = vmax.f32 %v2069, 0.0
    %v2181 = vmax.f32 %v2070, 0.0
    %v2182 = vmax.f32 %v2071, 0.0
    %v2183 = vmax.f32 %v2072, 0.0
    %v2184 = vmax.f32 %v2073, 0.0
    %v2185 = vmax.f32 %v2074, 0.0
    %v2186 = vmax.f32 %v2075, 0.0
    %v2187 = vmax.f32 %v2076, 0.0
    %v2188 = vmax.f32 %v2077, 0.0
    %v2189 = vmax.f32 %v2078, 0.0
    %v2190 = vmax.f32 %v2079, 0.0
    %v2191 = vmax.f32 %v2080, 0.0
    %v2192 = vmax.f32 %v2081, 0.0
    %v2193 = vmax.f32 %v2082, 0.0
    %v2194 = vmax.f32 %v2083, 0.0
    %v2195 = vmax.f32 %v2084, 0.0
    %v2196 = vmax.f32 %v2085, 0.0
    %v2197 = vmax.f32 %v2086, 0.0
    %v2198 = vmax.f32 %v2087, 0.0
    %v2199 = vmax.f32 %v2088, 0.0
    %v2200 = vmax.f32 %v2089, 0.0
    %v2201 = vmax.f32 %v2090, 0.0
    %v2202 = vmax.f32 %v2091, 0.0
    %v2203 = vmax.f32 %v2092, 0.0
    %v2204 = vmax.f32 %v2093, 0.0
    %v2205 = vmax.f32 %v2094, 0.0
    %v2206 = vmax.f32 %v2095, 0.0
    %v2207 = vmax.f32 %v2096, 0.0
    %v2208 = vmax.f32 %v2097, 0.0
    %v2209 = vmax.f32 %v2098, 0.0
    %v2210 = vmax.f32 %v2099, 0.0
    %v2211 = vmax.f32 %v2100, 0.0
    %v2212 = vmax.f32 %v2101, 0.0
    %v2213 = vmax.f32 %v2102, 0.0
    %v2214 = vmax.f32 %v2103, 0.0
    %v2215 = vmax.f32 %v2104, 0.0
    %v2216 = vmax.f32 %v2105, 0.0
    %v2217 = vmax.f32 %v2106, 0.0
    %v2218 = vmax.f32 %v2107, 0.0
    %v2219 = vmax.f32 %v2108, 0.0
    %v2220 = vmax.f32 %v2109, 0.0
    %v2221 = vmax.f32 %v2110, 0.0
    %v2222 = vmax.f32 %v2111, 0.0
    %v2223 = vmax.f32 %v2112, 0.0
    %v2224 = vmax.f32 %v2113, 0.0
    %v2225 = vmax.f32 %v2114, 0.0
    %v2226 = vmax.f32 %v2115, 0.0
    %v2227 = vmax.f32 %v2116, 0.0
    %v2228 = vmax.f32 %v2117, 0.0
    %v2229 = vmax.f32 %v2118, 0.0
    %v2230 = vmax.f32 %v2119, 0.0
    %v2231 = vmax.f32 %v2120, 0.0
    %v2232 = vmax.f32 %v2121, 0.0
    %v2233 = vmax.f32 %v2122, 0.0
    %v2234 = vmax.f32 %v2123, 0.0
    %v2235 = vmax.f32 %v2124, 0.0
    %v2236 = vmax.f32 %v2125, 0.0
    %v2237 = vmax.f32 %v2126, 0.0
    %v2238 = vmax.f32 %v2127, 0.0
    %v2239 = vmax.f32 %v2128, 0.0
    %v2240 = vmax.f32 %v2129, 0.0
    %v2241 = vmax.f32 %v2130, 0.0
    %v2242 = vmax.f32 %v2131, 0.0
    %v2243 = vmax.f32 %v2132, 0.0
    %v2244 = vmax.f32 %v2133, 0.0
    %v2245 = vmax.f32 %v2134, 0.0
    %v2246 = vmax.f32 %v2135, 0.0
    %v2247 = vmax.f32 %v2136, 0.0
    %v2248 = vmax.f32 %v2137, 0.0
    %v2249 = vpack.c.bf16 %v2139, %v2138
    %v2250 = vpack.c.bf16 %v2141, %v2140
    %v2251 = vpack.c.bf16 %v2143, %v2142
    %v2252 = vpack.c.bf16 %v2145, %v2144
    %v2253 = vpack.c.bf16 %v2147, %v2146
    %v2254 = vpack.c.bf16 %v2149, %v2148
    %v2255 = vpack.c.bf16 %v2151, %v2150
    %v2256 = vpack.c.bf16 %v2153, %v2152
    %v2257 = vpack.c.bf16 %v2155, %v2154
    %v2258 = vpack.c.bf16 %v2157, %v2156
    %v2259 = vpack.c.bf16 %v2159, %v2158
    %v2260 = vpack.c.bf16 %v2161, %v2160
    %v2261 = vpack.c.bf16 %v2163, %v2162
    %v2262 = vpack.c.bf16 %v2165, %v2164
    %v2263 = vpack.c.bf16 %v2167, %v2166
    %v2264 = vpack.c.bf16 %v2169, %v2168
    %v2265 = vpack.c.bf16 %v2171, %v2170
    %v2266 = vpack.c.bf16 %v2173, %v2172
    %v2267 = vpack.c.bf16 %v2175, %v2174
    %v2268 = vpack.c.bf16 %v2177, %v2176
    %v2269 = vpack.c.bf16 %v2179, %v2178
    %v2270 = vpack.c.bf16 %v2181, %v2180
    %v2271 = vpack.c.bf16 %v2183, %v2182
    %v2272 = vpack.c.bf16 %v2185, %v2184
    %v2273 = vpack.c.bf16 %v2187, %v2186
    %v2274 = vpack.c.bf16 %v2189, %v2188
    %v2275 = vpack.c.bf16 %v2191, %v2190
    %v2276 = vpack.c.bf16 %v2193, %v2192
    %v2277 = vpack.c.bf16 %v2195, %v2194
    %v2278 = vpack.c.bf16 %v2197, %v2196
    %v2279 = vpack.c.bf16 %v2199, %v2198
    %v2280 = vpack.c.bf16 %v2201, %v2200
    %v2281 = vpack.c.bf16 %v2203, %v2202
    %v2282 = vpack.c.bf16 %v2205, %v2204
    %v2283 = vpack.c.bf16 %v2207, %v2206
    %v2284 = vpack.c.bf16 %v2209, %v2208
    %v2285 = vpack.c.bf16 %v2211, %v2210
    %v2286 = vpack.c.bf16 %v2213, %v2212
    %v2287 = vpack.c.bf16 %v2215, %v2214
    %v2288 = vpack.c.bf16 %v2217, %v2216
    %v2289 = vpack.c.bf16 %v2219, %v2218
    %v2290 = vpack.c.bf16 %v2221, %v2220
    %v2291 = vpack.c.bf16 %v2223, %v2222
    %v2292 = vpack.c.bf16 %v2225, %v2224
    %v2293 = vpack.c.bf16 %v2227, %v2226
    %v2294 = vpack.c.bf16 %v2229, %v2228
    %v2295 = vpack.c.bf16 %v2231, %v2230
    %v2296 = vpack.c.bf16 %v2233, %v2232
    %v2297 = vpack.c.bf16 %v2235, %v2234
    %v2298 = vpack.c.bf16 %v2237, %v2236
    %v2299 = vpack.c.bf16 %v2239, %v2238
    %v2300 = vpack.c.bf16 %v2241, %v2240
    %v2301 = vpack.c.bf16 %v2243, %v2242
    %v2302 = vpack.c.bf16 %v2245, %v2244
    %v2303 = vpack.c.bf16 %v2247, %v2246
    %v2304 = vpack.c.bf16 %v2248, %v2248
    %v2361 = vunpack.c.l.b16 %v2249
    %v2362 = vunpack.c.h.b16 %v2249
    %v2363 = vunpack.c.l.b16 %v2250
    %v2364 = vunpack.c.h.b16 %v2250
    %v2365 = vunpack.c.l.b16 %v2251
    %v2366 = vunpack.c.h.b16 %v2251
    %v2367 = vunpack.c.l.b16 %v2252
    %v2368 = vunpack.c.h.b16 %v2252
    %v2369 = vunpack.c.l.b16 %v2253
    %v2370 = vunpack.c.h.b16 %v2253
    %v2371 = vunpack.c.l.b16 %v2254
    %v2372 = vunpack.c.h.b16 %v2254
    %v2373 = vunpack.c.l.b16 %v2255
    %v2374 = vunpack.c.h.b16 %v2255
    %v2375 = vunpack.c.l.b16 %v2256
    %v2376 = vunpack.c.h.b16 %v2256
    %v2377 = vunpack.c.l.b16 %v2257
    %v2378 = vunpack.c.h.b16 %v2257
    %v2379 = vunpack.c.l.b16 %v2258
    %v2380 = vunpack.c.h.b16 %v2258
    %v2381 = vunpack.c.l.b16 %v2259
    %v2382 = vunpack.c.h.b16 %v2259
    %v2383 = vunpack.c.l.b16 %v2260
    %v2384 = vunpack.c.h.b16 %v2260
    %v2385 = vunpack.c.l.b16 %v2261
    %v2386 = vunpack.c.h.b16 %v2261
    %v2387 = vunpack.c.l.b16 %v2262
    %v2388 = vunpack.c.h.b16 %v2262
    %v2389 = vunpack.c.l.b16 %v2263
    %v2390 = vunpack.c.h.b16 %v2263
    %v2391 = vunpack.c.l.b16 %v2264
    %v2392 = vunpack.c.h.b16 %v2264
    %v2393 = vunpack.c.l.b16 %v2265
    %v2394 = vunpack.c.h.b16 %v2265
    %v2395 = vunpack.c.l.b16 %v2266
    %v2396 = vunpack.c.h.b16 %v2266
    %v2397 = vunpack.c.l.b16 %v2267
    %v2398 = vunpack.c.h.b16 %v2267
    %v2399 = vunpack.c.l.b16 %v2268
    %v2400 = vunpack.c.h.b16 %v2268
    %v2401 = vunpack.c.l.b16 %v2269
    %v2402 = vunpack.c.h.b16 %v2269
    %v2403 = vunpack.c.l.b16 %v2270
    %v2404 = vunpack.c.h.b16 %v2270
    %v2405 = vunpack.c.l.b16 %v2271
    %v2406 = vunpack.c.h.b16 %v2271
    %v2407 = vunpack.c.l.b16 %v2272
    %v2408 = vunpack.c.h.b16 %v2272
    %v2409 = vunpack.c.l.b16 %v2273
    %v2410 = vunpack.c.h.b16 %v2273
    %v2411 = vunpack.c.l.b16 %v2274
    %v2412 = vunpack.c.h.b16 %v2274
    %v2413 = vunpack.c.l.b16 %v2275
    %v2414 = vunpack.c.h.b16 %v2275
    %v2415 = vunpack.c.l.b16 %v2276
    %v2416 = vunpack.c.h.b16 %v2276
    %v2417 = vunpack.c.l.b16 %v2277
    %v2418 = vunpack.c.h.b16 %v2277
    %v2419 = vunpack.c.l.b16 %v2278
    %v2420 = vunpack.c.h.b16 %v2278
    %v2421 = vunpack.c.l.b16 %v2279
    %v2422 = vunpack.c.h.b16 %v2279
    %v2423 = vunpack.c.l.b16 %v2280
    %v2424 = vunpack.c.h.b16 %v2280
    %v2425 = vunpack.c.l.b16 %v2281
    %v2426 = vunpack.c.h.b16 %v2281
    %v2427 = vunpack.c.l.b16 %v2282
    %v2428 = vunpack.c.h.b16 %v2282
    %v2429 = vunpack.c.l.b16 %v2283
    %v2430 = vunpack.c.h.b16 %v2283
    %v2431 = vunpack.c.l.b16 %v2284
    %v2432 = vunpack.c.h.b16 %v2284
    %v2433 = vunpack.c.l.b16 %v2285
    %v2434 = vunpack.c.h.b16 %v2285
    %v2435 = vunpack.c.l.b16 %v2286
    %v2436 = vunpack.c.h.b16 %v2286
    %v2437 = vunpack.c.l.b16 %v2287
    %v2438 = vunpack.c.h.b16 %v2287
    %v2439 = vunpack.c.l.b16 %v2288
    %v2440 = vunpack.c.h.b16 %v2288
    %v2441 = vunpack.c.l.b16 %v2289
    %v2442 = vunpack.c.h.b16 %v2289
    %v2443 = vunpack.c.l.b16 %v2290
    %v2444 = vunpack.c.h.b16 %v2290
    %v2445 = vunpack.c.l.b16 %v2291
    %v2446 = vunpack.c.h.b16 %v2291
    %v2447 = vunpack.c.l.b16 %v2292
    %v2448 = vunpack.c.h.b16 %v2292
    %v2449 = vunpack.c.l.b16 %v2293
    %v2450 = vunpack.c.h.b16 %v2293
    %v2451 = vunpack.c.l.b16 %v2294
    %v2452 = vunpack.c.h.b16 %v2294
    %v2453 = vunpack.c.l.b16 %v2295
    %v2454 = vunpack.c.h.b16 %v2295
    %v2455 = vunpack.c.l.b16 %v2296
    %v2456 = vunpack.c.h.b16 %v2296
    %v2457 = vunpack.c.l.b16 %v2297
    %v2458 = vunpack.c.h.b16 %v2297
    %v2459 = vunpack.c.l.b16 %v2298
    %v2460 = vunpack.c.h.b16 %v2298
    %v2461 = vunpack.c.l.b16 %v2299
    %v2462 = vunpack.c.h.b16 %v2299
    %v2463 = vunpack.c.l.b16 %v2300
    %v2464 = vunpack.c.h.b16 %v2300
    %v2465 = vunpack.c.l.b16 %v2301
    %v2466 = vunpack.c.h.b16 %v2301
    %v2467 = vunpack.c.l.b16 %v2302
    %v2468 = vunpack.c.h.b16 %v2302
    %v2469 = vunpack.c.l.b16 %v2303
    %v2470 = vunpack.c.h.b16 %v2303
    %v2471 = vunpack.c.l.b16 %v2304
    %v2472 = vpack.c.b16 %v2361, %v2361
    %v2473 = vpack.c.b16 %v2362, %v2362
    %v2474 = vpack.c.b16 %v2363, %v2363
    %v2475 = vpack.c.b16 %v2364, %v2364
    %v2476 = vpack.c.b16 %v2365, %v2365
    %v2477 = vpack.c.b16 %v2366, %v2366
    %v2478 = vpack.c.b16 %v2367, %v2367
    %v2479 = vpack.c.b16 %v2368, %v2368
    %v2480 = vpack.c.b16 %v2369, %v2369
    %v2481 = vpack.c.b16 %v2370, %v2370
    %v2482 = vpack.c.b16 %v2371, %v2371
    %v2483 = vpack.c.b16 %v2372, %v2372
    %v2484 = vpack.c.b16 %v2373, %v2373
    %v2485 = vpack.c.b16 %v2374, %v2374
    %v2486 = vpack.c.b16 %v2375, %v2375
    %v2487 = vpack.c.b16 %v2376, %v2376
    %v2488 = vpack.c.b16 %v2377, %v2377
    %v2489 = vpack.c.b16 %v2378, %v2378
    %v2490 = vpack.c.b16 %v2379, %v2379
    %v2491 = vpack.c.b16 %v2380, %v2380
    %v2492 = vpack.c.b16 %v2381, %v2381
    %v2493 = vpack.c.b16 %v2382, %v2382
    %v2494 = vpack.c.b16 %v2383, %v2383
    %v2495 = vpack.c.b16 %v2384, %v2384
    %v2496 = vpack.c.b16 %v2385, %v2385
    %v2497 = vpack.c.b16 %v2386, %v2386
    %v2498 = vpack.c.b16 %v2387, %v2387
    %v2499 = vpack.c.b16 %v2388, %v2388
    %v2500 = vpack.c.b16 %v2389, %v2389
    %v2501 = vpack.c.b16 %v2390, %v2390
    %v2502 = vpack.c.b16 %v2391, %v2391
    %v2503 = vpack.c.b16 %v2392, %v2392
    %v2504 = vpack.c.b16 %v2393, %v2393
    %v2505 = vpack.c.b16 %v2394, %v2394
    %v2506 = vpack.c.b16 %v2395, %v2395
    %v2507 = vpack.c.b16 %v2396, %v2396
    %v2508 = vpack.c.b16 %v2397, %v2397
    %v2509 = vpack.c.b16 %v2398, %v2398
    %v2510 = vpack.c.b16 %v2399, %v2399
    %v2511 = vpack.c.b16 %v2400, %v2400
    %v2512 = vpack.c.b16 %v2401, %v2401
    %v2513 = vpack.c.b16 %v2402, %v2402
    %v2514 = vpack.c.b16 %v2403, %v2403
    %v2515 = vpack.c.b16 %v2404, %v2404
    %v2516 = vpack.c.b16 %v2405, %v2405
    %v2517 = vpack.c.b16 %v2406, %v2406
    %v2518 = vpack.c.b16 %v2407, %v2407
    %v2519 = vpack.c.b16 %v2408, %v2408
    %v2520 = vpack.c.b16 %v2409, %v2409
    %v2521 = vpack.c.b16 %v2410, %v2410
    %v2522 = vpack.c.b16 %v2411, %v2411
    %v2523 = vpack.c.b16 %v2412, %v2412
    %v2524 = vpack.c.b16 %v2413, %v2413
    %v2525 = vpack.c.b16 %v2414, %v2414
    %v2526 = vpack.c.b16 %v2415, %v2415
    %v2527 = vpack.c.b16 %v2416, %v2416
    %v2528 = vpack.c.b16 %v2417, %v2417
    %v2529 = vpack.c.b16 %v2418, %v2418
    %v2530 = vpack.c.b16 %v2419, %v2419
    %v2531 = vpack.c.b16 %v2420, %v2420
    %v2532 = vpack.c.b16 %v2421, %v2421
    %v2533 = vpack.c.b16 %v2422, %v2422
    %v2534 = vpack.c.b16 %v2423, %v2423
    %v2535 = vpack.c.b16 %v2424, %v2424
    %v2536 = vpack.c.b16 %v2425, %v2425
    %v2537 = vpack.c.b16 %v2426, %v2426
    %v2538 = vpack.c.b16 %v2427, %v2427
    %v2539 = vpack.c.b16 %v2428, %v2428
    %v2540 = vpack.c.b16 %v2429, %v2429
    %v2541 = vpack.c.b16 %v2430, %v2430
    %v2542 = vpack.c.b16 %v2431, %v2431
    %v2543 = vpack.c.b16 %v2432, %v2432
    %v2544 = vpack.c.b16 %v2433, %v2433
    %v2545 = vpack.c.b16 %v2434, %v2434
    %v2546 = vpack.c.b16 %v2435, %v2435
    %v2547 = vpack.c.b16 %v2436, %v2436
    %v2548 = vpack.c.b16 %v2437, %v2437
    %v2549 = vpack.c.b16 %v2438, %v2438
    %v2550 = vpack.c.b16 %v2439, %v2439
    %v2551 = vpack.c.b16 %v2440, %v2440
    %v2552 = vpack.c.b16 %v2441, %v2441
    %v2553 = vpack.c.b16 %v2442, %v2442
    %v2554 = vpack.c.b16 %v2443, %v2443
    %v2555 = vpack.c.b16 %v2444, %v2444
    %v2556 = vpack.c.b16 %v2445, %v2445
    %v2557 = vpack.c.b16 %v2446, %v2446
    %v2558 = vpack.c.b16 %v2447, %v2447
    %v2559 = vpack.c.b16 %v2448, %v2448
    %v2560 = vpack.c.b16 %v2449, %v2449
    %v2561 = vpack.c.b16 %v2450, %v2450
    %v2562 = vpack.c.b16 %v2451, %v2451
    %v2563 = vpack.c.b16 %v2452, %v2452
    %v2564 = vpack.c.b16 %v2453, %v2453
    %v2565 = vpack.c.b16 %v2454, %v2454
    %v2566 = vpack.c.b16 %v2455, %v2455
    %v2567 = vpack.c.b16 %v2456, %v2456
    %v2568 = vpack.c.b16 %v2457, %v2457
    %v2569 = vpack.c.b16 %v2458, %v2458
    %v2570 = vpack.c.b16 %v2459, %v2459
    %v2571 = vpack.c.b16 %v2460, %v2460
    %v2572 = vpack.c.b16 %v2461, %v2461
    %v2573 = vpack.c.b16 %v2462, %v2462
    %v2574 = vpack.c.b16 %v2463, %v2463
    %v2575 = vpack.c.b16 %v2464, %v2464
    %v2576 = vpack.c.b16 %v2465, %v2465
    %v2577 = vpack.c.b16 %v2466, %v2466
    %v2578 = vpack.c.b16 %v2467, %v2467
    %v2579 = vpack.c.b16 %v2468, %v2468
    %v2580 = vpack.c.b16 %v2469, %v2469
    %v2581 = vpack.c.b16 %v2470, %v2470
    %v2582 = vpack.c.b16 %v2471, %v2471
    %vm2694 = vcmask 60416
    %2695 = vst.msk [vmem:[%s4] sm:$0xf] %vm2694, %v2472
    %2696 = vst.msk [vmem:[%s4 + $0x4] sm:$0xf] %vm2694, %v2473
    %2697 = vst.msk [vmem:[%s4 + $0x8] sm:$0xf] %vm2694, %v2474
    %2698 = vst.msk [vmem:[%s4 + $0xc] sm:$0xf] %vm2694, %v2475
    %2699 = vst.msk [vmem:[%s4 + $0x10] sm:$0xf] %vm2694, %v2476
    %2700 = vst.msk [vmem:[%s4 + $0x14] sm:$0xf] %vm2694, %v2477
    %2701 = vst.msk [vmem:[%s4 + $0x18] sm:$0xf] %vm2694, %v2478
    %2702 = vst.msk [vmem:[%s4 + $0x1c] sm:$0xf] %vm2694, %v2479
    %2703 = vst.msk [vmem:[%s4 + $0x20] sm:$0xf] %vm2694, %v2480
    %2704 = vst.msk [vmem:[%s4 + $0x24] sm:$0xf] %vm2694, %v2481
    %2705 = vst.msk [vmem:[%s4 + $0x28] sm:$0xf] %vm2694, %v2482
    %2706 = vst.msk [vmem:[%s4 + $0x2c] sm:$0xf] %vm2694, %v2483
    %2707 = vst.msk [vmem:[%s4 + $0x30] sm:$0xf] %vm2694, %v2484
    %2708 = vst.msk [vmem:[%s4 + $0x34] sm:$0xf] %vm2694, %v2485
    %2709 = vst.msk [vmem:[%s4 + $0x38] sm:$0xf] %vm2694, %v2486
    %2710 = vst.msk [vmem:[%s4 + $0x3c] sm:$0xf] %vm2694, %v2487
    %2711 = vst.msk [vmem:[%s4 + $0x40] sm:$0xf] %vm2694, %v2488
    %2712 = vst.msk [vmem:[%s4 + $0x44] sm:$0xf] %vm2694, %v2489
    %2713 = vst.msk [vmem:[%s4 + $0x48] sm:$0xf] %vm2694, %v2490
    %2714 = vst.msk [vmem:[%s4 + $0x4c] sm:$0xf] %vm2694, %v2491
    %2715 = vst.msk [vmem:[%s4 + $0x50] sm:$0xf] %vm2694, %v2492
    %2716 = vst.msk [vmem:[%s4 + $0x54] sm:$0xf] %vm2694, %v2493
    %2717 = vst.msk [vmem:[%s4 + $0x58] sm:$0xf] %vm2694, %v2494
    %2718 = vst.msk [vmem:[%s4 + $0x5c] sm:$0xf] %vm2694, %v2495
    %2719 = vst.msk [vmem:[%s4 + $0x60] sm:$0xf] %vm2694, %v2496
    %2720 = vst.msk [vmem:[%s4 + $0x64] sm:$0xf] %vm2694, %v2497
    %2721 = vst.msk [vmem:[%s4 + $0x68] sm:$0xf] %vm2694, %v2498
    %2722 = vst.msk [vmem:[%s4 + $0x6c] sm:$0xf] %vm2694, %v2499
    %2723 = vst.msk [vmem:[%s4 + $0x70] sm:$0xf] %vm2694, %v2500
    %2724 = vst.msk [vmem:[%s4 + $0x74] sm:$0xf] %vm2694, %v2501
    %2725 = vst.msk [vmem:[%s4 + $0x78] sm:$0xf] %vm2694, %v2502
    %2726 = vst.msk [vmem:[%s4 + $0x7c] sm:$0xf] %vm2694, %v2503
    %2727 = vst.msk [vmem:[%s4 + $0x80] sm:$0xf] %vm2694, %v2504
    %2728 = vst.msk [vmem:[%s4 + $0x84] sm:$0xf] %vm2694, %v2505
    %2729 = vst.msk [vmem:[%s4 + $0x88] sm:$0xf] %vm2694, %v2506
    %2730 = vst.msk [vmem:[%s4 + $0x8c] sm:$0xf] %vm2694, %v2507
    %2731 = vst.msk [vmem:[%s4 + $0x90] sm:$0xf] %vm2694, %v2508
    %2732 = vst.msk [vmem:[%s4 + $0x94] sm:$0xf] %vm2694, %v2509
    %2733 = vst.msk [vmem:[%s4 + $0x98] sm:$0xf] %vm2694, %v2510
    %2734 = vst.msk [vmem:[%s4 + $0x9c] sm:$0xf] %vm2694, %v2511
    %2735 = vst.msk [vmem:[%s4 + $0xa0] sm:$0xf] %vm2694, %v2512
    %2736 = vst.msk [vmem:[%s4 + $0xa4] sm:$0xf] %vm2694, %v2513
    %2737 = vst.msk [vmem:[%s4 + $0xa8] sm:$0xf] %vm2694, %v2514
    %2738 = vst.msk [vmem:[%s4 + $0xac] sm:$0xf] %vm2694, %v2515
    %2739 = vst.msk [vmem:[%s4 + $0xb0] sm:$0xf] %vm2694, %v2516
    %2740 = vst.msk [vmem:[%s4 + $0xb4] sm:$0xf] %vm2694, %v2517
    %2741 = vst.msk [vmem:[%s4 + $0xb8] sm:$0xf] %vm2694, %v2518
    %2742 = vst.msk [vmem:[%s4 + $0xbc] sm:$0xf] %vm2694, %v2519
    %2743 = vst.msk [vmem:[%s4 + $0xc0] sm:$0xf] %vm2694, %v2520
    %2744 = vst.msk [vmem:[%s4 + $0xc4] sm:$0xf] %vm2694, %v2521
    %2745 = vst.msk [vmem:[%s4 + $0xc8] sm:$0xf] %vm2694, %v2522
    %2746 = vst.msk [vmem:[%s4 + $0xcc] sm:$0xf] %vm2694, %v2523
    %2747 = vst.msk [vmem:[%s4 + $0xd0] sm:$0xf] %vm2694, %v2524
    %2748 = vst.msk [vmem:[%s4 + $0xd4] sm:$0xf] %vm2694, %v2525
    %2749 = vst.msk [vmem:[%s4 + $0xd8] sm:$0xf] %vm2694, %v2526
    %2750 = vst.msk [vmem:[%s4 + $0xdc] sm:$0xf] %vm2694, %v2527
    %2751 = vst.msk [vmem:[%s4 + $0xe0] sm:$0xf] %vm2694, %v2528
    %2752 = vst.msk [vmem:[%s4 + $0xe4] sm:$0xf] %vm2694, %v2529
    %2753 = vst.msk [vmem:[%s4 + $0xe8] sm:$0xf] %vm2694, %v2530
    %2754 = vst.msk [vmem:[%s4 + $0xec] sm:$0xf] %vm2694, %v2531
    %2755 = vst.msk [vmem:[%s4 + $0xf0] sm:$0xf] %vm2694, %v2532
    %2756 = vst.msk [vmem:[%s4 + $0xf4] sm:$0xf] %vm2694, %v2533
    %2757 = vst.msk [vmem:[%s4 + $0xf8] sm:$0xf] %vm2694, %v2534
    %2758 = vst.msk [vmem:[%s4 + $0xfc] sm:$0xf] %vm2694, %v2535
    %2759 = vst.msk [vmem:[%s4 + $0x100] sm:$0xf] %vm2694, %v2536
    %2760 = vst.msk [vmem:[%s4 + $0x104] sm:$0xf] %vm2694, %v2537
    %2761 = vst.msk [vmem:[%s4 + $0x108] sm:$0xf] %vm2694, %v2538
    %2762 = vst.msk [vmem:[%s4 + $0x10c] sm:$0xf] %vm2694, %v2539
    %2763 = vst.msk [vmem:[%s4 + $0x110] sm:$0xf] %vm2694, %v2540
    %2764 = vst.msk [vmem:[%s4 + $0x114] sm:$0xf] %vm2694, %v2541
    %2765 = vst.msk [vmem:[%s4 + $0x118] sm:$0xf] %vm2694, %v2542
    %2766 = vst.msk [vmem:[%s4 + $0x11c] sm:$0xf] %vm2694, %v2543
    %2767 = vst.msk [vmem:[%s4 + $0x120] sm:$0xf] %vm2694, %v2544
    %2768 = vst.msk [vmem:[%s4 + $0x124] sm:$0xf] %vm2694, %v2545
    %2769 = vst.msk [vmem:[%s4 + $0x128] sm:$0xf] %vm2694, %v2546
    %2770 = vst.msk [vmem:[%s4 + $0x12c] sm:$0xf] %vm2694, %v2547
    %2771 = vst.msk [vmem:[%s4 + $0x130] sm:$0xf] %vm2694, %v2548
    %2772 = vst.msk [vmem:[%s4 + $0x134] sm:$0xf] %vm2694, %v2549
    %2773 = vst.msk [vmem:[%s4 + $0x138] sm:$0xf] %vm2694, %v2550
    %2774 = vst.msk [vmem:[%s4 + $0x13c] sm:$0xf] %vm2694, %v2551
    %2775 = vst.msk [vmem:[%s4 + $0x140] sm:$0xf] %vm2694, %v2552
    %2776 = vst.msk [vmem:[%s4 + $0x144] sm:$0xf] %vm2694, %v2553
    %2777 = vst.msk [vmem:[%s4 + $0x148] sm:$0xf] %vm2694, %v2554
    %2778 = vst.msk [vmem:[%s4 + $0x14c] sm:$0xf] %vm2694, %v2555
    %2779 = vst.msk [vmem:[%s4 + $0x150] sm:$0xf] %vm2694, %v2556
    %2780 = vst.msk [vmem:[%s4 + $0x154] sm:$0xf] %vm2694, %v2557
    %2781 = vst.msk [vmem:[%s4 + $0x158] sm:$0xf] %vm2694, %v2558
    %2782 = vst.msk [vmem:[%s4 + $0x15c] sm:$0xf] %vm2694, %v2559
    %2783 = vst.msk [vmem:[%s4 + $0x160] sm:$0xf] %vm2694, %v2560
    %2784 = vst.msk [vmem:[%s4 + $0x164] sm:$0xf] %vm2694, %v2561
    %2785 = vst.msk [vmem:[%s4 + $0x168] sm:$0xf] %vm2694, %v2562
    %2786 = vst.msk [vmem:[%s4 + $0x16c] sm:$0xf] %vm2694, %v2563
    %2787 = vst.msk [vmem:[%s4 + $0x170] sm:$0xf] %vm2694, %v2564
    %2788 = vst.msk [vmem:[%s4 + $0x174] sm:$0xf] %vm2694, %v2565
    %2789 = vst.msk [vmem:[%s4 + $0x178] sm:$0xf] %vm2694, %v2566
    %2790 = vst.msk [vmem:[%s4 + $0x17c] sm:$0xf] %vm2694, %v2567
    %2791 = vst.msk [vmem:[%s4 + $0x180] sm:$0xf] %vm2694, %v2568
    %2792 = vst.msk [vmem:[%s4 + $0x184] sm:$0xf] %vm2694, %v2569
    %2793 = vst.msk [vmem:[%s4 + $0x188] sm:$0xf] %vm2694, %v2570
    %2794 = vst.msk [vmem:[%s4 + $0x18c] sm:$0xf] %vm2694, %v2571
    %2795 = vst.msk [vmem:[%s4 + $0x190] sm:$0xf] %vm2694, %v2572
    %2796 = vst.msk [vmem:[%s4 + $0x194] sm:$0xf] %vm2694, %v2573
    %2797 = vst.msk [vmem:[%s4 + $0x198] sm:$0xf] %vm2694, %v2574
    %2798 = vst.msk [vmem:[%s4 + $0x19c] sm:$0xf] %vm2694, %v2575
    %2799 = vst.msk [vmem:[%s4 + $0x1a0] sm:$0xf] %vm2694, %v2576
    %2800 = vst.msk [vmem:[%s4 + $0x1a4] sm:$0xf] %vm2694, %v2577
    %2801 = vst.msk [vmem:[%s4 + $0x1a8] sm:$0xf] %vm2694, %v2578
    %2802 = vst.msk [vmem:[%s4 + $0x1ac] sm:$0xf] %vm2694, %v2579
    %2803 = vst.msk [vmem:[%s4 + $0x1b0] sm:$0xf] %vm2694, %v2580
    %2804 = vst.msk [vmem:[%s4 + $0x1b4] sm:$0xf] %vm2694, %v2581
    %vm2805 = vcmask 57344
    %2806 = vst.msk [vmem:[%s4 + $0x1b8] sm:$0x1] %vm2805, %v2582
    // Predicated region
    $region26: #{conv2d_classifier_forward.4} parent=1 // pred_check
      _
    $region27: #{conv2d_classifier_forward.4} parent=1 // pred_check_branch
      %2808 = sbr.rel (0) target = $region29
    $region28: #{conv2d_classifier_forward.4} parent=1 // pred_region
      _
    $region29: #{conv2d_classifier_forward.4} parent=1 // pred_fallthru
      _
    // Predicated region
    $region30: #{conv2d_classifier_forward.4} parent=1 // pred_check
      _
    $region31: #{conv2d_classifier_forward.4} parent=1 // pred_check_branch
      %2810 = sbr.rel (0) target = $region33
    $region32: #{conv2d_classifier_forward.4} parent=1 // pred_region
      _
    $region33: #{conv2d_classifier_forward.4} parent=1 // pred_fallthru
      _
    %2811 = vsyncpa [#allocation3], 1
    %2812 = vsyncpa [#allocation5], 1

// kernel: conv2d_classifier_forward.5
$region0: #{conv2d_classifier_forward.5}
  #allocation0 [shape = 'u32[]', space=smem, size = 0x4, offset = 0x4, fixed_abs, tag = 'smem constant byte address 0x4 - core index']
  #allocation1 [shape = 'u32[144,128]{1,0:T(1,128)}', space=vmem, size = 0x12000, scoped, tag = 'internal scratch']
  %s0 = inlined_call_operand.vmem [shape: bf16[338,200], index: 0, kind: input, shape index: {}]
  %s1 = inlined_call_operand.vmem [shape: bf16[200,16], index: 1, kind: input, shape index: {}]
  %s2 = inlined_call_operand.vmem [shape: bf16[338,16], index: 2, kind: output, shape index: {}]
  %s3 = sld [smem:[#allocation0]]
  $region18: #{conv2d_classifier_forward.5} parent=0
    _
  %s5 = ssub.s32 1, %s3
  %s6 = scalar_select 0, %s5, %s3
  // Predicated region
  $region2: #{conv2d_classifier_forward.5} parent=0 // pred_check
    _
  $region3: #{conv2d_classifier_forward.5} parent=0 // pred_check_branch
    %8 = sbr.rel (0) target = $region5
  $region4: #{conv2d_classifier_forward.5} parent=0 // pred_region
    _
  $region5: #{conv2d_classifier_forward.5} parent=0 // pred_fallthru
    _
  // Predicated region
  $region6: #{conv2d_classifier_forward.5} parent=0 // pred_check
    _
  $region7: #{conv2d_classifier_forward.5} parent=0 // pred_check_branch
    %10 = sbr.rel (0) target = $region9
  $region8: #{conv2d_classifier_forward.5} parent=0 // pred_region
    _
  $region9: #{conv2d_classifier_forward.5} parent=0 // pred_fallthru
    _
  %v12 = vld [vmem:[%s0] sm:$0xff]
  %v13 = vld [vmem:[%s0 + $0x8] sm:$0xff]
  %v14 = vld [vmem:[%s0 + $0x10] sm:$0xff]
  %v15 = vld [vmem:[%s0 + $0x18] sm:$0xff]
  %v16 = vld [vmem:[%s0 + $0x20] sm:$0xff]
  %v17 = vld [vmem:[%s0 + $0x28] sm:$0xff]
  %v18 = vld [vmem:[%s0 + $0x30] sm:$0xff]
  %v19 = vld [vmem:[%s0 + $0x38] sm:$0xff]
  %v20 = vld [vmem:[%s0 + $0x40] sm:$0xff]
  %v21 = vld [vmem:[%s0 + $0x48] sm:$0xff]
  %v22 = vld [vmem:[%s0 + $0x50] sm:$0xff]
  %v23 = vld [vmem:[%s0 + $0x58] sm:$0xff]
  %v24 = vld [vmem:[%s0 + $0x60] sm:$0xff]
  %v25 = vld [vmem:[%s0 + $0x68] sm:$0xff]
  %v26 = vld [vmem:[%s0 + $0x70] sm:$0xff]
  %v27 = vld [vmem:[%s0 + $0x78] sm:$0xff]
  %v28 = vld [vmem:[%s0 + $0x80] sm:$0xff]
  %v29 = vld [vmem:[%s0 + $0x88] sm:$0xff]
  %v30 = vld [vmem:[%s0 + $0x90] sm:$0xff]
  %v31 = vld [vmem:[%s0 + $0x98] sm:$0xff]
  %v32 = vld [vmem:[%s0 + $0xa0] sm:$0xff]
  %v33 = vld [vmem:[%s0 + $0xa8] sm:$0xff]
  %v34 = vld [vmem:[%s0 + $0xb0] sm:$0xff]
  %v35 = vld [vmem:[%s0 + $0xb8] sm:$0xff]
  %v36 = vld [vmem:[%s0 + $0xc0] sm:$0xff]
  %v37 = vld [vmem:[%s0 + $0xc8] sm:$0xff]
  %v38 = vld [vmem:[%s0 + $0xd0] sm:$0xff]
  %v39 = vld [vmem:[%s0 + $0xd8] sm:$0xff]
  %v40 = vld [vmem:[%s0 + $0xe0] sm:$0xff]
  %v41 = vld [vmem:[%s0 + $0xe8] sm:$0xff]
  %v42 = vld [vmem:[%s0 + $0xf0] sm:$0xff]
  %v43 = vld [vmem:[%s0 + $0xf8] sm:$0xff]
  %v44 = vld [vmem:[%s0 + $0x100] sm:$0xff]
  %v45 = vld [vmem:[%s0 + $0x108] sm:$0xff]
  %v46 = vld [vmem:[%s0 + $0x110] sm:$0xff]
  %v47 = vld [vmem:[%s0 + $0x118] sm:$0xff]
  %v48 = vld [vmem:[%s0 + $0x120] sm:$0xff]
  %v49 = vld [vmem:[%s0 + $0x128] sm:$0xff]
  %v50 = vld [vmem:[%s0 + $0x130] sm:$0xff]
  %v51 = vld [vmem:[%s0 + $0x138] sm:$0xff]
  %v52 = vld [vmem:[%s0 + $0x140] sm:$0xff]
  %v53 = vld [vmem:[%s0 + $0x148] sm:$0xff]
  %v54 = vld [vmem:[%s0 + $0x150] sm:$0x11]
  %v55 = vld [vmem:[%s1] sm:$0xf]
  %v56 = vld [vmem:[%s1 + $0x4] sm:$0xf]
  %v57 = vld [vmem:[%s1 + $0x8] sm:$0xf]
  %v58 = vld [vmem:[%s1 + $0xc] sm:$0xf]
  %v59 = vld [vmem:[%s1 + $0x10] sm:$0xf]
  %v60 = vld [vmem:[%s1 + $0x14] sm:$0xf]
  %v61 = vld [vmem:[%s1 + $0x18] sm:$0xf]
  %v62 = vld [vmem:[%s1 + $0x1c] sm:$0xf]
  %v63 = vld [vmem:[%s1 + $0x20] sm:$0xf]
  %v64 = vld [vmem:[%s1 + $0x24] sm:$0xf]
  %v65 = vld [vmem:[%s1 + $0x28] sm:$0xf]
  %v66 = vld [vmem:[%s1 + $0x2c] sm:$0xf]
  %v67 = vld [vmem:[%s1 + $0x30] sm:$0xf]
  %v68 = vld [vmem:[%s1 + $0x34] sm:$0xf]
  %v69 = vld [vmem:[%s1 + $0x38] sm:$0xf]
  %v70 = vld [vmem:[%s1 + $0x3c] sm:$0xf]
  %v71 = vld [vmem:[%s1 + $0x40] sm:$0xf]
  %v72 = vld [vmem:[%s1 + $0x44] sm:$0xf]
  %v73 = vld [vmem:[%s1 + $0x48] sm:$0xf]
  %v74 = vld [vmem:[%s1 + $0x4c] sm:$0xf]
  %v75 = vld [vmem:[%s1 + $0x50] sm:$0xf]
  %v76 = vld [vmem:[%s1 + $0x54] sm:$0xf]
  %v77 = vld [vmem:[%s1 + $0x58] sm:$0xf]
  %v78 = vld [vmem:[%s1 + $0x5c] sm:$0xf]
  %v79 = vld [vmem:[%s1 + $0x60] sm:$0xf]
  %v123 = vunpack.c.l.b16 %v12
  %v124 = vunpack.c.h.b16 %v12
  %v125 = vunpack.c.l.b16 %v13
  %v126 = vunpack.c.h.b16 %v13
  %v127 = vunpack.c.l.b16 %v14
  %v128 = vunpack.c.h.b16 %v14
  %v129 = vunpack.c.l.b16 %v15
  %v130 = vunpack.c.h.b16 %v15
  %v131 = vunpack.c.l.b16 %v16
  %v132 = vunpack.c.h.b16 %v16
  %v133 = vunpack.c.l.b16 %v17
  %v134 = vunpack.c.h.b16 %v17
  %v135 = vunpack.c.l.b16 %v18
  %v136 = vunpack.c.h.b16 %v18
  %v137 = vunpack.c.l.b16 %v19
  %v138 = vunpack.c.h.b16 %v19
  %v139 = vunpack.c.l.b16 %v20
  %v140 = vunpack.c.h.b16 %v20
  %v141 = vunpack.c.l.b16 %v21
  %v142 = vunpack.c.h.b16 %v21
  %v143 = vunpack.c.l.b16 %v22
  %v144 = vunpack.c.h.b16 %v22
  %v145 = vunpack.c.l.b16 %v23
  %v146 = vunpack.c.h.b16 %v23
  %v147 = vunpack.c.l.b16 %v24
  %v148 = vunpack.c.h.b16 %v24
  %v149 = vunpack.c.l.b16 %v25
  %v150 = vunpack.c.h.b16 %v25
  %v151 = vunpack.c.l.b16 %v26
  %v152 = vunpack.c.h.b16 %v26
  %v153 = vunpack.c.l.b16 %v27
  %v154 = vunpack.c.h.b16 %v27
  %v155 = vunpack.c.l.b16 %v28
  %v156 = vunpack.c.h.b16 %v28
  %v157 = vunpack.c.l.b16 %v29
  %v158 = vunpack.c.h.b16 %v29
  %v159 = vunpack.c.l.b16 %v30
  %v160 = vunpack.c.h.b16 %v30
  %v161 = vunpack.c.l.b16 %v31
  %v162 = vunpack.c.h.b16 %v31
  %v163 = vunpack.c.l.b16 %v32
  %v164 = vunpack.c.h.b16 %v32
  %v165 = vunpack.c.l.b16 %v33
  %v166 = vunpack.c.h.b16 %v33
  %v167 = vunpack.c.l.b16 %v34
  %v168 = vunpack.c.h.b16 %v34
  %v169 = vunpack.c.l.b16 %v35
  %v170 = vunpack.c.h.b16 %v35
  %v171 = vunpack.c.l.b16 %v36
  %v172 = vunpack.c.h.b16 %v36
  %v173 = vunpack.c.l.b16 %v37
  %v174 = vunpack.c.h.b16 %v37
  %v175 = vunpack.c.l.b16 %v38
  %v176 = vunpack.c.h.b16 %v38
  %v177 = vunpack.c.l.b16 %v39
  %v178 = vunpack.c.h.b16 %v39
  %v179 = vunpack.c.l.b16 %v40
  %v180 = vunpack.c.h.b16 %v40
  %v181 = vunpack.c.l.b16 %v41
  %v182 = vunpack.c.h.b16 %v41
  %v183 = vunpack.c.l.b16 %v42
  %v184 = vunpack.c.h.b16 %v42
  %v185 = vunpack.c.l.b16 %v43
  %v186 = vunpack.c.h.b16 %v43
  %v187 = vunpack.c.l.b16 %v44
  %v188 = vunpack.c.h.b16 %v44
  %v189 = vunpack.c.l.b16 %v45
  %v190 = vunpack.c.h.b16 %v45
  %v191 = vunpack.c.l.b16 %v46
  %v192 = vunpack.c.h.b16 %v46
  %v193 = vunpack.c.l.b16 %v47
  %v194 = vunpack.c.h.b16 %v47
  %v195 = vunpack.c.l.b16 %v48
  %v196 = vunpack.c.h.b16 %v48
  %v197 = vunpack.c.l.b16 %v49
  %v198 = vunpack.c.h.b16 %v49
  %v199 = vunpack.c.l.b16 %v50
  %v200 = vunpack.c.h.b16 %v50
  %v201 = vunpack.c.l.b16 %v51
  %v202 = vunpack.c.h.b16 %v51
  %v203 = vunpack.c.l.b16 %v52
  %v204 = vunpack.c.h.b16 %v52
  %v205 = vunpack.c.l.b16 %v53
  %v206 = vunpack.c.h.b16 %v53
  %v207 = vunpack.c.l.b16 %v54
  %v208 = vunpack.c.h.b16 %v54
  %v209 = vpack.c.b16 %v125, %v123
  %v210 = vpack.c.b16 %v126, %v124
  %v211 = vpack.c.b16 %v129, %v127
  %v212 = vpack.c.b16 %v130, %v128
  %v213 = vpack.c.b16 %v133, %v131
  %v214 = vpack.c.b16 %v134, %v132
  %v215 = vpack.c.b16 %v137, %v135
  %v216 = vpack.c.b16 %v138, %v136
  %v217 = vpack.c.b16 %v141, %v139
  %v218 = vpack.c.b16 %v142, %v140
  %v219 = vpack.c.b16 %v145, %v143
  %v220 = vpack.c.b16 %v146, %v144
  %v221 = vpack.c.b16 %v149, %v147
  %v222 = vpack.c.b16 %v150, %v148
  %v223 = vpack.c.b16 %v153, %v151
  %v224 = vpack.c.b16 %v154, %v152
  %v225 = vpack.c.b16 %v157, %v155
  %v226 = vpack.c.b16 %v158, %v156
  %v227 = vpack.c.b16 %v161, %v159
  %v228 = vpack.c.b16 %v162, %v160
  %v229 = vpack.c.b16 %v165, %v163
  %v230 = vpack.c.b16 %v166, %v164
  %v231 = vpack.c.b16 %v169, %v167
  %v232 = vpack.c.b16 %v170, %v168
  %v233 = vpack.c.b16 %v173, %v171
  %v234 = vpack.c.b16 %v174, %v172
  %v235 = vpack.c.b16 %v177, %v175
  %v236 = vpack.c.b16 %v178, %v176
  %v237 = vpack.c.b16 %v181, %v179
  %v238 = vpack.c.b16 %v182, %v180
  %v239 = vpack.c.b16 %v185, %v183
  %v240 = vpack.c.b16 %v186, %v184
  %v241 = vpack.c.b16 %v189, %v187
  %v242 = vpack.c.b16 %v190, %v188
  %v243 = vpack.c.b16 %v193, %v191
  %v244 = vpack.c.b16 %v194, %v192
  %v245 = vpack.c.b16 %v197, %v195
  %v246 = vpack.c.b16 %v198, %v196
  %v247 = vpack.c.b16 %v201, %v199
  %v248 = vpack.c.b16 %v202, %v200
  %v249 = vpack.c.b16 %v205, %v203
  %v250 = vpack.c.b16 %v206, %v204
  %v251 = vpack.c.b16 %v207, %v207
  %v252 = vpack.c.b16 %v208, %v208
  %v300 = vunpack.c.l.b16 %v55
  %v301 = vunpack.c.l.b16 %v56
  %v302 = vunpack.c.l.b16 %v57
  %v303 = vunpack.c.l.b16 %v58
  %v304 = vunpack.c.l.b16 %v59
  %v305 = vunpack.c.l.b16 %v60
  %v306 = vunpack.c.l.b16 %v61
  %v307 = vunpack.c.l.b16 %v62
  %v308 = vunpack.c.l.b16 %v63
  %v309 = vunpack.c.l.b16 %v64
  %v310 = vunpack.c.l.b16 %v65
  %v311 = vunpack.c.l.b16 %v66
  %v312 = vunpack.c.l.b16 %v67
  %v313 = vunpack.c.l.b16 %v68
  %v314 = vunpack.c.l.b16 %v69
  %v315 = vunpack.c.l.b16 %v70
  %v316 = vunpack.c.l.b16 %v71
  %v317 = vunpack.c.l.b16 %v72
  %v318 = vunpack.c.l.b16 %v73
  %v319 = vunpack.c.l.b16 %v74
  %v320 = vunpack.c.l.b16 %v75
  %v321 = vunpack.c.l.b16 %v76
  %v322 = vunpack.c.l.b16 %v77
  %v323 = vunpack.c.l.b16 %v78
  %v324 = vunpack.c.l.b16 %v79
  %v325 = vpack.c.b16 %v301, %v300
  %v326 = vpack.c.b16 %v303, %v302
  %v327 = vpack.c.b16 %v305, %v304
  %v328 = vpack.c.b16 %v307, %v306
  %v329 = vpack.c.b16 %v309, %v308
  %v330 = vpack.c.b16 %v311, %v310
  %v331 = vpack.c.b16 %v313, %v312
  %v332 = vpack.c.b16 %v315, %v314
  %v333 = vpack.c.b16 %v317, %v316
  %v334 = vpack.c.b16 %v319, %v318
  %v335 = vpack.c.b16 %v321, %v320
  %v336 = vpack.c.b16 %v323, %v322
  %v337 = vpack.c.b16 %v324, %v324
  %vm350 = vcmask 588800
  %v352 = vsel %vm350, %v210, 0
  %v355 = vsel %vm350, %v212, 0
  %v358 = vsel %vm350, %v214, 0
  %v361 = vsel %vm350, %v216, 0
  %v364 = vsel %vm350, %v218, 0
  %v367 = vsel %vm350, %v220, 0
  %v370 = vsel %vm350, %v222, 0
  %v373 = vsel %vm350, %v224, 0
  %v376 = vsel %vm350, %v226, 0
  %v379 = vsel %vm350, %v228, 0
  %v382 = vsel %vm350, %v230, 0
  %v385 = vsel %vm350, %v232, 0
  %v388 = vsel %vm350, %v234, 0
  %v391 = vsel %vm350, %v236, 0
  %v394 = vsel %vm350, %v238, 0
  %v397 = vsel %vm350, %v240, 0
  %v400 = vsel %vm350, %v242, 0
  %v403 = vsel %vm350, %v244, 0
  %v406 = vsel %vm350, %v246, 0
  %v409 = vsel %vm350, %v248, 0
  %v412 = vsel %vm350, %v250, 0
  %v415 = vsel %vm350, %v252, 0
  %vm417 = vcmask 1043456
  %v419 = vsel %vm417, %v337, 0
  %421 = vmatprep.subr.bf16.mxu0 0
  %422 = vmatpush1.bf16.msra.mxu0 %v325
  %423 = vmatprep.subr.bf16.mxu0 0
  %424 = vmatpush1.bf16.msra.mxu0 %v326
  %425 = vmatprep.subr.bf16.mxu0 0
  %426 = vmatpush1.bf16.msra.mxu0 %v327
  %427 = vmatprep.subr.bf16.mxu0 0
  %428 = vmatpush1.bf16.msra.mxu0 %v328
  %429 = vmatprep.subr.bf16.mxu0 0
  %430 = vmatpush1.bf16.msra.mxu0 %v329
  %431 = vmatprep.subr.bf16.mxu0 0
  %432 = vmatpush1.bf16.msra.mxu0 %v330
  %433 = vmatprep.subr.bf16.mxu0 0
  %434 = vmatpush1.bf16.msra.mxu0 %v331
  %435 = vmatprep.subr.bf16.mxu0 0
  %436 = vmatpush1.bf16.msra.mxu0 %v332
  %437 = vmatprep.subr.bf16.mxu0 0
  %438 = vmatpush1.bf16.msra.mxu0 %v333
  %439 = vmatprep.subr.bf16.mxu0 0
  %440 = vmatpush1.bf16.msra.mxu0 %v334
  %441 = vmatprep.subr.bf16.mxu0 0
  %442 = vmatpush1.bf16.msra.mxu0 %v335
  %443 = vmatprep.subr.bf16.mxu0 0
  %444 = vmatpush1.bf16.msra.mxu0 %v336
  %445 = vmatprep.subr.bf16.mxu0 0
  %446 = vmatpush1.bf16.msra.mxu0 %v419
  %447 = vmatprep.subr.bf16.mxu0 0
  %448 = vmatpush1.bf16.msra.mxu0 0
  %449 = vmatprep.subr.bf16.mxu0 0
  %450 = vmatpush1.bf16.msra.mxu0 0
  %451 = vmatprep.subr.bf16.mxu0 0
  %452 = vmatpush1.bf16.msra.mxu0 0
  %453 = vmatprep.mubr.bf16.mxu0 %v352
  %454 = vmatmul.mubr.bf16.gmra.mrb[0].mxu0 %v209
  %v455 = vpop.f32.mrb[0].mxu0
  %v456 = vadd.f32 0.0, %v455
  %v457 = vpop.f32.mrb[0].mxu0
  %v458 = vpop.f32.mrb[0].mxu0
  %v459 = vadd.f32 0.0, %v458
  %v460 = vpop.f32.mrb[0].mxu0
  %461 = vmatprep.mubr.bf16.mxu0 %v355
  %462 = vmatmul.mubr.bf16.gmra.mrb[0].mxu0 %v211
  %v463 = vpop.f32.mrb[0].mxu0
  %v464 = vadd.f32 0.0, %v463
  %v465 = vpop.f32.mrb[0].mxu0
  %v466 = vpop.f32.mrb[0].mxu0
  %v467 = vadd.f32 0.0, %v466
  %v468 = vpop.f32.mrb[0].mxu0
  %469 = vmatprep.mubr.bf16.mxu0 %v358
  %470 = vmatmul.mubr.bf16.gmra.mrb[0].mxu0 %v213
  %v471 = vpop.f32.mrb[0].mxu0
  %v472 = vadd.f32 0.0, %v471
  %v473 = vpop.f32.mrb[0].mxu0
  %v474 = vpop.f32.mrb[0].mxu0
  %v475 = vadd.f32 0.0, %v474
  %v476 = vpop.f32.mrb[0].mxu0
  %477 = vmatprep.mubr.bf16.mxu0 %v361
  %478 = vmatmul.mubr.bf16.gmra.mrb[0].mxu0 %v215
  %v479 = vpop.f32.mrb[0].mxu0
  %v480 = vadd.f32 0.0, %v479
  %v481 = vpop.f32.mrb[0].mxu0
  %v482 = vpop.f32.mrb[0].mxu0
  %v483 = vadd.f32 0.0, %v482
  %v484 = vpop.f32.mrb[0].mxu0
  %485 = vmatprep.mubr.bf16.mxu0 %v364
  %486 = vmatmul.mubr.bf16.gmra.mrb[0].mxu0 %v217
  %v487 = vpop.f32.mrb[0].mxu0
  %v488 = vadd.f32 0.0, %v487
  %v489 = vpop.f32.mrb[0].mxu0
  %v490 = vpop.f32.mrb[0].mxu0
  %v491 = vadd.f32 0.0, %v490
  %v492 = vpop.f32.mrb[0].mxu0
  %493 = vmatprep.mubr.bf16.mxu0 %v367
  %494 = vmatmul.mubr.bf16.gmra.mrb[0].mxu0 %v219
  %v495 = vpop.f32.mrb[0].mxu0
  %v496 = vadd.f32 0.0, %v495
  %v497 = vpop.f32.mrb[0].mxu0
  %v498 = vpop.f32.mrb[0].mxu0
  %v499 = vadd.f32 0.0, %v498
  %v500 = vpop.f32.mrb[0].mxu0
  %501 = vmatprep.mubr.bf16.mxu0 %v370
  %502 = vmatmul.mubr.bf16.gmra.mrb[0].mxu0 %v221
  %v503 = vpop.f32.mrb[0].mxu0
  %v504 = vadd.f32 0.0, %v503
  %v505 = vpop.f32.mrb[0].mxu0
  %v506 = vpop.f32.mrb[0].mxu0
  %v507 = vadd.f32 0.0, %v506
  %v508 = vpop.f32.mrb[0].mxu0
  %509 = vmatprep.mubr.bf16.mxu0 %v373
  %510 = vmatmul.mubr.bf16.gmra.mrb[0].mxu0 %v223
  %v511 = vpop.f32.mrb[0].mxu0
  %v512 = vadd.f32 0.0, %v511
  %v513 = vpop.f32.mrb[0].mxu0
  %v514 = vpop.f32.mrb[0].mxu0
  %v515 = vadd.f32 0.0, %v514
  %v516 = vpop.f32.mrb[0].mxu0
  %517 = vmatprep.mubr.bf16.mxu0 %v376
  %518 = vmatmul.mubr.bf16.gmra.mrb[0].mxu0 %v225
  %v519 = vpop.f32.mrb[0].mxu0
  %v520 = vadd.f32 0.0, %v519
  %v521 = vpop.f32.mrb[0].mxu0
  %v522 = vpop.f32.mrb[0].mxu0
  %v523 = vadd.f32 0.0, %v522
  %v524 = vpop.f32.mrb[0].mxu0
  %525 = vmatprep.mubr.bf16.mxu0 %v379
  %526 = vmatmul.mubr.bf16.gmra.mrb[0].mxu0 %v227
  %v527 = vpop.f32.mrb[0].mxu0
  %v528 = vadd.f32 0.0, %v527
  %v529 = vpop.f32.mrb[0].mxu0
  %v530 = vpop.f32.mrb[0].mxu0
  %v531 = vadd.f32 0.0, %v530
  %v532 = vpop.f32.mrb[0].mxu0
  %533 = vmatprep.mubr.bf16.mxu0 %v382
  %534 = vmatmul.mubr.bf16.gmra.mrb[0].mxu0 %v229
  %v535 = vpop.f32.mrb[0].mxu0
  %v536 = vadd.f32 0.0, %v535
  %v537 = vpop.f32.mrb[0].mxu0
  %v538 = vpop.f32.mrb[0].mxu0
  %v539 = vadd.f32 0.0, %v538
  %v540 = vpop.f32.mrb[0].mxu0
  %541 = vmatprep.mubr.bf16.mxu0 %v385
  %542 = vmatmul.mubr.bf16.gmra.mrb[0].mxu0 %v231
  %v543 = vpop.f32.mrb[0].mxu0
  %v544 = vadd.f32 0.0, %v543
  %v545 = vpop.f32.mrb[0].mxu0
  %v546 = vpop.f32.mrb[0].mxu0
  %v547 = vadd.f32 0.0, %v546
  %v548 = vpop.f32.mrb[0].mxu0
  %549 = vmatprep.mubr.bf16.mxu0 %v388
  %550 = vmatmul.mubr.bf16.gmra.mrb[0].mxu0 %v233
  %v551 = vpop.f32.mrb[0].mxu0
  %v552 = vadd.f32 0.0, %v551
  %v553 = vpop.f32.mrb[0].mxu0
  %v554 = vpop.f32.mrb[0].mxu0
  %v555 = vadd.f32 0.0, %v554
  %v556 = vpop.f32.mrb[0].mxu0
  %557 = vmatprep.mubr.bf16.mxu0 %v391
  %558 = vmatmul.mubr.bf16.gmra.mrb[0].mxu0 %v235
  %v559 = vpop.f32.mrb[0].mxu0
  %v560 = vadd.f32 0.0, %v559
  %v561 = vpop.f32.mrb[0].mxu0
  %v562 = vpop.f32.mrb[0].mxu0
  %v563 = vadd.f32 0.0, %v562
  %v564 = vpop.f32.mrb[0].mxu0
  %565 = vmatprep.mubr.bf16.mxu0 %v394
  %566 = vmatmul.mubr.bf16.gmra.mrb[0].mxu0 %v237
  %v567 = vpop.f32.mrb[0].mxu0
  %v568 = vadd.f32 0.0, %v567
  %v569 = vpop.f32.mrb[0].mxu0
  %v570 = vpop.f32.mrb[0].mxu0
  %v571 = vadd.f32 0.0, %v570
  %v572 = vpop.f32.mrb[0].mxu0
  %573 = vmatprep.mubr.bf16.mxu0 %v397
  %574 = vmatmul.mubr.bf16.gmra.mrb[0].mxu0 %v239
  %v575 = vpop.f32.mrb[0].mxu0
  %v576 = vadd.f32 0.0, %v575
  %v577 = vpop.f32.mrb[0].mxu0
  %v578 = vpop.f32.mrb[0].mxu0
  %v579 = vadd.f32 0.0, %v578
  %v580 = vpop.f32.mrb[0].mxu0
  %581 = vmatprep.mubr.bf16.mxu0 %v400
  %582 = vmatmul.mubr.bf16.gmra.mrb[0].mxu0 %v241
  %v583 = vpop.f32.mrb[0].mxu0
  %v584 = vadd.f32 0.0, %v583
  %v585 = vpop.f32.mrb[0].mxu0
  %v586 = vpop.f32.mrb[0].mxu0
  %v587 = vadd.f32 0.0, %v586
  %v588 = vpop.f32.mrb[0].mxu0
  %589 = vmatprep.mubr.bf16.mxu0 %v403
  %590 = vmatmul.mubr.bf16.gmra.mrb[0].mxu0 %v243
  %v591 = vpop.f32.mrb[0].mxu0
  %v592 = vadd.f32 0.0, %v591
  %v593 = vpop.f32.mrb[0].mxu0
  %v594 = vpop.f32.mrb[0].mxu0
  %v595 = vadd.f32 0.0, %v594
  %v596 = vpop.f32.mrb[0].mxu0
  %597 = vmatprep.mubr.bf16.mxu0 %v406
  %598 = vmatmul.mubr.bf16.gmra.mrb[0].mxu0 %v245
  %v599 = vpop.f32.mrb[0].mxu0
  %v600 = vadd.f32 0.0, %v599
  %v601 = vpop.f32.mrb[0].mxu0
  %v602 = vpop.f32.mrb[0].mxu0
  %v603 = vadd.f32 0.0, %v602
  %v604 = vpop.f32.mrb[0].mxu0
  %605 = vmatprep.mubr.bf16.mxu0 %v409
  %606 = vmatmul.mubr.bf16.gmra.mrb[0].mxu0 %v247
  %v607 = vpop.f32.mrb[0].mxu0
  %v608 = vadd.f32 0.0, %v607
  %v609 = vpop.f32.mrb[0].mxu0
  %v610 = vpop.f32.mrb[0].mxu0
  %v611 = vadd.f32 0.0, %v610
  %v612 = vpop.f32.mrb[0].mxu0
  %613 = vmatprep.mubr.bf16.mxu0 %v412
  %614 = vmatmul.mubr.bf16.gmra.mrb[0].mxu0 %v249
  %v615 = vpop.f32.mrb[0].mxu0
  %v616 = vadd.f32 0.0, %v615
  %v617 = vpop.f32.mrb[0].mxu0
  %v618 = vpop.f32.mrb[0].mxu0
  %v619 = vadd.f32 0.0, %v618
  %v620 = vpop.f32.mrb[0].mxu0
  %621 = vmatprep.mubr.bf16.mxu0 %v415
  %622 = vmatmul.mubr.bf16.gmra.mrb[0].mxu0 %v251
  %v623 = vpop.f32.mrb[0].mxu0
  %v624 = vadd.f32 0.0, %v623
  %v625 = vpop.f32.mrb[0].mxu0
  %v626 = vpop.f32.mrb[0].mxu0
  %v627 = vpop.f32.mrb[0].mxu0
  %628 = vdwg.mxu0
  %v629 = vmax.f32 %v456, 0.0
  %v630 = vmax.f32 %v459, 0.0
  %v631 = vmax.f32 %v464, 0.0
  %v632 = vmax.f32 %v467, 0.0
  %v633 = vmax.f32 %v472, 0.0
  %v634 = vmax.f32 %v475, 0.0
  %v635 = vmax.f32 %v480, 0.0
  %v636 = vmax.f32 %v483, 0.0
  %v637 = vmax.f32 %v488, 0.0
  %v638 = vmax.f32 %v491, 0.0
  %v639 = vmax.f32 %v496, 0.0
  %v640 = vmax.f32 %v499, 0.0
  %v641 = vmax.f32 %v504, 0.0
  %v642 = vmax.f32 %v507, 0.0
  %v643 = vmax.f32 %v512, 0.0
  %v644 = vmax.f32 %v515, 0.0
  %v645 = vmax.f32 %v520, 0.0
  %v646 = vmax.f32 %v523, 0.0
  %v647 = vmax.f32 %v528, 0.0
  %v648 = vmax.f32 %v531, 0.0
  %v649 = vmax.f32 %v536, 0.0
  %v650 = vmax.f32 %v539, 0.0
  %v651 = vmax.f32 %v544, 0.0
  %v652 = vmax.f32 %v547, 0.0
  %v653 = vmax.f32 %v552, 0.0
  %v654 = vmax.f32 %v555, 0.0
  %v655 = vmax.f32 %v560, 0.0
  %v656 = vmax.f32 %v563, 0.0
  %v657 = vmax.f32 %v568, 0.0
  %v658 = vmax.f32 %v571, 0.0
  %v659 = vmax.f32 %v576, 0.0
  %v660 = vmax.f32 %v579, 0.0
  %v661 = vmax.f32 %v584, 0.0
  %v662 = vmax.f32 %v587, 0.0
  %v663 = vmax.f32 %v592, 0.0
  %v664 = vmax.f32 %v595, 0.0
  %v665 = vmax.f32 %v600, 0.0
  %v666 = vmax.f32 %v603, 0.0
  %v667 = vmax.f32 %v608, 0.0
  %v668 = vmax.f32 %v611, 0.0
  %v669 = vmax.f32 %v616, 0.0
  %v670 = vmax.f32 %v619, 0.0
  %v671 = vmax.f32 %v624, 0.0
  %v672 = vpack.c.bf16 %v630, %v629
  %v673 = vpack.c.bf16 %v632, %v631
  %v674 = vpack.c.bf16 %v634, %v633
  %v675 = vpack.c.bf16 %v636, %v635
  %v676 = vpack.c.bf16 %v638, %v637
  %v677 = vpack.c.bf16 %v640, %v639
  %v678 = vpack.c.bf16 %v642, %v641
  %v679 = vpack.c.bf16 %v644, %v643
  %v680 = vpack.c.bf16 %v646, %v645
  %v681 = vpack.c.bf16 %v648, %v647
  %v682 = vpack.c.bf16 %v650, %v649
  %v683 = vpack.c.bf16 %v652, %v651
  %v684 = vpack.c.bf16 %v654, %v653
  %v685 = vpack.c.bf16 %v656, %v655
  %v686 = vpack.c.bf16 %v658, %v657
  %v687 = vpack.c.bf16 %v660, %v659
  %v688 = vpack.c.bf16 %v662, %v661
  %v689 = vpack.c.bf16 %v664, %v663
  %v690 = vpack.c.bf16 %v666, %v665
  %v691 = vpack.c.bf16 %v668, %v667
  %v692 = vpack.c.bf16 %v670, %v669
  %v693 = vpack.c.bf16 %v671, %v671
  %v716 = vunpack.c.l.b16 %v672
  %v717 = vunpack.c.h.b16 %v672
  %v718 = vunpack.c.l.b16 %v673
  %v719 = vunpack.c.h.b16 %v673
  %v720 = vunpack.c.l.b16 %v674
  %v721 = vunpack.c.h.b16 %v674
  %v722 = vunpack.c.l.b16 %v675
  %v723 = vunpack.c.h.b16 %v675
  %v724 = vunpack.c.l.b16 %v676
  %v725 = vunpack.c.h.b16 %v676
  %v726 = vunpack.c.l.b16 %v677
  %v727 = vunpack.c.h.b16 %v677
  %v728 = vunpack.c.l.b16 %v678
  %v729 = vunpack.c.h.b16 %v678
  %v730 = vunpack.c.l.b16 %v679
  %v731 = vunpack.c.h.b16 %v679
  %v732 = vunpack.c.l.b16 %v680
  %v733 = vunpack.c.h.b16 %v680
  %v734 = vunpack.c.l.b16 %v681
  %v735 = vunpack.c.h.b16 %v681
  %v736 = vunpack.c.l.b16 %v682
  %v737 = vunpack.c.h.b16 %v682
  %v738 = vunpack.c.l.b16 %v683
  %v739 = vunpack.c.h.b16 %v683
  %v740 = vunpack.c.l.b16 %v684
  %v741 = vunpack.c.h.b16 %v684
  %v742 = vunpack.c.l.b16 %v685
  %v743 = vunpack.c.h.b16 %v685
  %v744 = vunpack.c.l.b16 %v686
  %v745 = vunpack.c.h.b16 %v686
  %v746 = vunpack.c.l.b16 %v687
  %v747 = vunpack.c.h.b16 %v687
  %v748 = vunpack.c.l.b16 %v688
  %v749 = vunpack.c.h.b16 %v688
  %v750 = vunpack.c.l.b16 %v689
  %v751 = vunpack.c.h.b16 %v689
  %v752 = vunpack.c.l.b16 %v690
  %v753 = vunpack.c.h.b16 %v690
  %v754 = vunpack.c.l.b16 %v691
  %v755 = vunpack.c.h.b16 %v691
  %v756 = vunpack.c.l.b16 %v692
  %v757 = vunpack.c.h.b16 %v692
  %v758 = vunpack.c.l.b16 %v693
  %v759 = vpack.c.b16 %v716, %v716
  %v760 = vpack.c.b16 %v717, %v717
  %v761 = vpack.c.b16 %v718, %v718
  %v762 = vpack.c.b16 %v719, %v719
  %v763 = vpack.c.b16 %v720, %v720
  %v764 = vpack.c.b16 %v721, %v721
  %v765 = vpack.c.b16 %v722, %v722
  %v766 = vpack.c.b16 %v723, %v723
  %v767 = vpack.c.b16 %v724, %v724
  %v768 = vpack.c.b16 %v725, %v725
  %v769 = vpack.c.b16 %v726, %v726
  %v770 = vpack.c.b16 %v727, %v727
  %v771 = vpack.c.b16 %v728, %v728
  %v772 = vpack.c.b16 %v729, %v729
  %v773 = vpack.c.b16 %v730, %v730
  %v774 = vpack.c.b16 %v731, %v731
  %v775 = vpack.c.b16 %v732, %v732
  %v776 = vpack.c.b16 %v733, %v733
  %v777 = vpack.c.b16 %v734, %v734
  %v778 = vpack.c.b16 %v735, %v735
  %v779 = vpack.c.b16 %v736, %v736
  %v780 = vpack.c.b16 %v737, %v737
  %v781 = vpack.c.b16 %v738, %v738
  %v782 = vpack.c.b16 %v739, %v739
  %v783 = vpack.c.b16 %v740, %v740
  %v784 = vpack.c.b16 %v741, %v741
  %v785 = vpack.c.b16 %v742, %v742
  %v786 = vpack.c.b16 %v743, %v743
  %v787 = vpack.c.b16 %v744, %v744
  %v788 = vpack.c.b16 %v745, %v745
  %v789 = vpack.c.b16 %v746, %v746
  %v790 = vpack.c.b16 %v747, %v747
  %v791 = vpack.c.b16 %v748, %v748
  %v792 = vpack.c.b16 %v749, %v749
  %v793 = vpack.c.b16 %v750, %v750
  %v794 = vpack.c.b16 %v751, %v751
  %v795 = vpack.c.b16 %v752, %v752
  %v796 = vpack.c.b16 %v753, %v753
  %v797 = vpack.c.b16 %v754, %v754
  %v798 = vpack.c.b16 %v755, %v755
  %v799 = vpack.c.b16 %v756, %v756
  %v800 = vpack.c.b16 %v757, %v757
  %v801 = vpack.c.b16 %v758, %v758
  %vm845 = vcmask 125952
  %846 = vst.msk [vmem:[%s2] sm:$0xf] %vm845, %v759
  %847 = vst.msk [vmem:[%s2 + $0x4] sm:$0xf] %vm845, %v760
  %848 = vst.msk [vmem:[%s2 + $0x8] sm:$0xf] %vm845, %v761
  %849 = vst.msk [vmem:[%s2 + $0xc] sm:$0xf] %vm845, %v762
  %850 = vst.msk [vmem:[%s2 + $0x10] sm:$0xf] %vm845, %v763
  %851 = vst.msk [vmem:[%s2 + $0x14] sm:$0xf] %vm845, %v764
  %852 = vst.msk [vmem:[%s2 + $0x18] sm:$0xf] %vm845, %v765
  %853 = vst.msk [vmem:[%s2 + $0x1c] sm:$0xf] %vm845, %v766
  %854 = vst.msk [vmem:[%s2 + $0x20] sm:$0xf] %vm845, %v767
  %855 = vst.msk [vmem:[%s2 + $0x24] sm:$0xf] %vm845, %v768
  %856 = vst.msk [vmem:[%s2 + $0x28] sm:$0xf] %vm845, %v769
  %857 = vst.msk [vmem:[%s2 + $0x2c] sm:$0xf] %vm845, %v770
  %858 = vst.msk [vmem:[%s2 + $0x30] sm:$0xf] %vm845, %v771
  %859 = vst.msk [vmem:[%s2 + $0x34] sm:$0xf] %vm845, %v772
  %860 = vst.msk [vmem:[%s2 + $0x38] sm:$0xf] %vm845, %v773
  %861 = vst.msk [vmem:[%s2 + $0x3c] sm:$0xf] %vm845, %v774
  %862 = vst.msk [vmem:[%s2 + $0x40] sm:$0xf] %vm845, %v775
  %863 = vst.msk [vmem:[%s2 + $0x44] sm:$0xf] %vm845, %v776
  %864 = vst.msk [vmem:[%s2 + $0x48] sm:$0xf] %vm845, %v777
  %865 = vst.msk [vmem:[%s2 + $0x4c] sm:$0xf] %vm845, %v778
  %866 = vst.msk [vmem:[%s2 + $0x50] sm:$0xf] %vm845, %v779
  %867 = vst.msk [vmem:[%s2 + $0x54] sm:$0xf] %vm845, %v780
  %868 = vst.msk [vmem:[%s2 + $0x58] sm:$0xf] %vm845, %v781
  %869 = vst.msk [vmem:[%s2 + $0x5c] sm:$0xf] %vm845, %v782
  %870 = vst.msk [vmem:[%s2 + $0x60] sm:$0xf] %vm845, %v783
  %871 = vst.msk [vmem:[%s2 + $0x64] sm:$0xf] %vm845, %v784
  %872 = vst.msk [vmem:[%s2 + $0x68] sm:$0xf] %vm845, %v785
  %873 = vst.msk [vmem:[%s2 + $0x6c] sm:$0xf] %vm845, %v786
  %874 = vst.msk [vmem:[%s2 + $0x70] sm:$0xf] %vm845, %v787
  %875 = vst.msk [vmem:[%s2 + $0x74] sm:$0xf] %vm845, %v788
  %876 = vst.msk [vmem:[%s2 + $0x78] sm:$0xf] %vm845, %v789
  %877 = vst.msk [vmem:[%s2 + $0x7c] sm:$0xf] %vm845, %v790
  %878 = vst.msk [vmem:[%s2 + $0x80] sm:$0xf] %vm845, %v791
  %879 = vst.msk [vmem:[%s2 + $0x84] sm:$0xf] %vm845, %v792
  %880 = vst.msk [vmem:[%s2 + $0x88] sm:$0xf] %vm845, %v793
  %881 = vst.msk [vmem:[%s2 + $0x8c] sm:$0xf] %vm845, %v794
  %882 = vst.msk [vmem:[%s2 + $0x90] sm:$0xf] %vm845, %v795
  %883 = vst.msk [vmem:[%s2 + $0x94] sm:$0xf] %vm845, %v796
  %884 = vst.msk [vmem:[%s2 + $0x98] sm:$0xf] %vm845, %v797
  %885 = vst.msk [vmem:[%s2 + $0x9c] sm:$0xf] %vm845, %v798
  %886 = vst.msk [vmem:[%s2 + $0xa0] sm:$0xf] %vm845, %v799
  %887 = vst.msk [vmem:[%s2 + $0xa4] sm:$0xf] %vm845, %v800
  %vm888 = vcmask 122880
  %889 = vst.msk [vmem:[%s2 + $0xa8] sm:$0x1] %vm888, %v801
  // Predicated region
  $region10: #{conv2d_classifier_forward.5} parent=0 // pred_check
    _
  $region11: #{conv2d_classifier_forward.5} parent=0 // pred_check_branch
    %891 = sbr.rel (0) target = $region13
  $region12: #{conv2d_classifier_forward.5} parent=0 // pred_region
    _
  $region13: #{conv2d_classifier_forward.5} parent=0 // pred_fallthru
    _
  // Predicated region
  $region14: #{conv2d_classifier_forward.5} parent=0 // pred_check
    _
  $region15: #{conv2d_classifier_forward.5} parent=0 // pred_check_branch
    %893 = sbr.rel (0) target = $region17
  $region16: #{conv2d_classifier_forward.5} parent=0 // pred_region
    _
  $region17: #{conv2d_classifier_forward.5} parent=0 // pred_fallthru
    _

// kernel: conv2d_classifier_forward.6
$region0: #{conv2d_classifier_forward.6}
  #allocation0 [shape = 'u32[]', space=smem, size = 0x4, offset = 0x4, fixed_abs, tag = 'smem constant byte address 0x4 - core index']
  #allocation1 [shape = 'u32[144,128]{1,0:T(1,128)}', space=vmem, size = 0x12000, scoped, tag = 'internal scratch']
  %s0 = inlined_call_operand.vmem [shape: bf16[162,400], index: 0, kind: input, shape index: {}]
  %s1 = inlined_call_operand.vmem [shape: bf16[400,32], index: 1, kind: input, shape index: {}]
  %s2 = inlined_call_operand.vmem [shape: bf16[162,32], index: 2, kind: output, shape index: {}]
  %s3 = sld [smem:[#allocation0]]
  $region18: #{conv2d_classifier_forward.6} parent=0
    _
  %s5 = ssub.s32 1, %s3
  %s6 = scalar_select 0, %s5, %s3
  // Predicated region
  $region2: #{conv2d_classifier_forward.6} parent=0 // pred_check
    _
  $region3: #{conv2d_classifier_forward.6} parent=0 // pred_check_branch
    %8 = sbr.rel (0) target = $region5
  $region4: #{conv2d_classifier_forward.6} parent=0 // pred_region
    _
  $region5: #{conv2d_classifier_forward.6} parent=0 // pred_fallthru
    _
  // Predicated region
  $region6: #{conv2d_classifier_forward.6} parent=0 // pred_check
    _
  $region7: #{conv2d_classifier_forward.6} parent=0 // pred_check_branch
    %10 = sbr.rel (0) target = $region9
  $region8: #{conv2d_classifier_forward.6} parent=0 // pred_region
    _
  $region9: #{conv2d_classifier_forward.6} parent=0 // pred_fallthru
    _
  %v12 = vld [vmem:[%s0] sm:$0xff]
  %v13 = vld [vmem:[%s0 + $0x8] sm:$0xff]
  %v14 = vld [vmem:[%s0 + $0x10] sm:$0xff]
  %v15 = vld [vmem:[%s0 + $0x18] sm:$0xff]
  %v16 = vld [vmem:[%s0 + $0x20] sm:$0xff]
  %v17 = vld [vmem:[%s0 + $0x28] sm:$0xff]
  %v18 = vld [vmem:[%s0 + $0x30] sm:$0xff]
  %v19 = vld [vmem:[%s0 + $0x38] sm:$0xff]
  %v20 = vld [vmem:[%s0 + $0x40] sm:$0xff]
  %v21 = vld [vmem:[%s0 + $0x48] sm:$0xff]
  %v22 = vld [vmem:[%s0 + $0x50] sm:$0xff]
  %v23 = vld [vmem:[%s0 + $0x58] sm:$0xff]
  %v24 = vld [vmem:[%s0 + $0x60] sm:$0xff]
  %v25 = vld [vmem:[%s0 + $0x68] sm:$0xff]
  %v26 = vld [vmem:[%s0 + $0x70] sm:$0xff]
  %v27 = vld [vmem:[%s0 + $0x78] sm:$0xff]
  %v28 = vld [vmem:[%s0 + $0x80] sm:$0xff]
  %v29 = vld [vmem:[%s0 + $0x88] sm:$0xff]
  %v30 = vld [vmem:[%s0 + $0x90] sm:$0xff]
  %v31 = vld [vmem:[%s0 + $0x98] sm:$0xff]
  %v32 = vld [vmem:[%s0 + $0xa0] sm:$0xff]
  %v33 = vld [vmem:[%s0 + $0xa8] sm:$0xff]
  %v34 = vld [vmem:[%s0 + $0xb0] sm:$0xff]
  %v35 = vld [vmem:[%s0 + $0xb8] sm:$0xff]
  %v36 = vld [vmem:[%s0 + $0xc0] sm:$0xff]
  %v37 = vld [vmem:[%s0 + $0xc8] sm:$0xff]
  %v38 = vld [vmem:[%s0 + $0xd0] sm:$0xff]
  %v39 = vld [vmem:[%s0 + $0xd8] sm:$0xff]
  %v40 = vld [vmem:[%s0 + $0xe0] sm:$0xff]
  %v41 = vld [vmem:[%s0 + $0xe8] sm:$0xff]
  %v42 = vld [vmem:[%s0 + $0xf0] sm:$0xff]
  %v43 = vld [vmem:[%s0 + $0xf8] sm:$0xff]
  %v44 = vld [vmem:[%s0 + $0x100] sm:$0xff]
  %v45 = vld [vmem:[%s0 + $0x108] sm:$0xff]
  %v46 = vld [vmem:[%s0 + $0x110] sm:$0xff]
  %v47 = vld [vmem:[%s0 + $0x118] sm:$0xff]
  %v48 = vld [vmem:[%s0 + $0x120] sm:$0xff]
  %v49 = vld [vmem:[%s0 + $0x128] sm:$0xff]
  %v50 = vld [vmem:[%s0 + $0x130] sm:$0xff]
  %v51 = vld [vmem:[%s0 + $0x138] sm:$0xff]
  %v52 = vld [vmem:[%s0 + $0x140] sm:$0x11]
  %v53 = vld [vmem:[%s0 + $0x148] sm:$0x11]
  %v54 = vld [vmem:[%s1] sm:$0xf]
  %v55 = vld [vmem:[%s1 + $0x4] sm:$0xf]
  %v56 = vld [vmem:[%s1 + $0x8] sm:$0xf]
  %v57 = vld [vmem:[%s1 + $0xc] sm:$0xf]
  %v58 = vld [vmem:[%s1 + $0x10] sm:$0xf]
  %v59 = vld [vmem:[%s1 + $0x14] sm:$0xf]
  %v60 = vld [vmem:[%s1 + $0x18] sm:$0xf]
  %v61 = vld [vmem:[%s1 + $0x1c] sm:$0xf]
  %v62 = vld [vmem:[%s1 + $0x20] sm:$0xf]
  %v63 = vld [vmem:[%s1 + $0x24] sm:$0xf]
  %v64 = vld [vmem:[%s1 + $0x28] sm:$0xf]
  %v65 = vld [vmem:[%s1 + $0x2c] sm:$0xf]
  %v66 = vld [vmem:[%s1 + $0x30] sm:$0xf]
  %v67 = vld [vmem:[%s1 + $0x34] sm:$0xf]
  %v68 = vld [vmem:[%s1 + $0x38] sm:$0xf]
  %v69 = vld [vmem:[%s1 + $0x3c] sm:$0xf]
  %v70 = vld [vmem:[%s1 + $0x40] sm:$0xf]
  %v71 = vld [vmem:[%s1 + $0x44] sm:$0xf]
  %v72 = vld [vmem:[%s1 + $0x48] sm:$0xf]
  %v73 = vld [vmem:[%s1 + $0x4c] sm:$0xf]
  %v74 = vld [vmem:[%s1 + $0x50] sm:$0xf]
  %v75 = vld [vmem:[%s1 + $0x54] sm:$0xf]
  %v76 = vld [vmem:[%s1 + $0x58] sm:$0xf]
  %v77 = vld [vmem:[%s1 + $0x5c] sm:$0xf]
  %v78 = vld [vmem:[%s1 + $0x60] sm:$0xf]
  %v79 = vld [vmem:[%s1 + $0x64] sm:$0xf]
  %v80 = vld [vmem:[%s1 + $0x68] sm:$0xf]
  %v81 = vld [vmem:[%s1 + $0x6c] sm:$0xf]
  %v82 = vld [vmem:[%s1 + $0x70] sm:$0xf]
  %v83 = vld [vmem:[%s1 + $0x74] sm:$0xf]
  %v84 = vld [vmem:[%s1 + $0x78] sm:$0xf]
  %v85 = vld [vmem:[%s1 + $0x7c] sm:$0xf]
  %v86 = vld [vmem:[%s1 + $0x80] sm:$0xf]
  %v87 = vld [vmem:[%s1 + $0x84] sm:$0xf]
  %v88 = vld [vmem:[%s1 + $0x88] sm:$0xf]
  %v89 = vld [vmem:[%s1 + $0x8c] sm:$0xf]
  %v90 = vld [vmem:[%s1 + $0x90] sm:$0xf]
  %v91 = vld [vmem:[%s1 + $0x94] sm:$0xf]
  %v92 = vld [vmem:[%s1 + $0x98] sm:$0xf]
  %v93 = vld [vmem:[%s1 + $0x9c] sm:$0xf]
  %v94 = vld [vmem:[%s1 + $0xa0] sm:$0xf]
  %v95 = vld [vmem:[%s1 + $0xa4] sm:$0xf]
  %v96 = vld [vmem:[%s1 + $0xa8] sm:$0xf]
  %v97 = vld [vmem:[%s1 + $0xac] sm:$0xf]
  %v98 = vld [vmem:[%s1 + $0xb0] sm:$0xf]
  %v99 = vld [vmem:[%s1 + $0xb4] sm:$0xf]
  %v100 = vld [vmem:[%s1 + $0xb8] sm:$0xf]
  %v101 = vld [vmem:[%s1 + $0xbc] sm:$0xf]
  %v102 = vld [vmem:[%s1 + $0xc0] sm:$0xf]
  %v103 = vld [vmem:[%s1 + $0xc4] sm:$0xf]
  %v146 = vunpack.c.l.b16 %v12
  %v147 = vunpack.c.h.b16 %v12
  %v148 = vunpack.c.l.b16 %v13
  %v149 = vunpack.c.h.b16 %v13
  %v150 = vunpack.c.l.b16 %v14
  %v151 = vunpack.c.h.b16 %v14
  %v152 = vunpack.c.l.b16 %v15
  %v153 = vunpack.c.h.b16 %v15
  %v154 = vunpack.c.l.b16 %v16
  %v155 = vunpack.c.h.b16 %v16
  %v156 = vunpack.c.l.b16 %v17
  %v157 = vunpack.c.h.b16 %v17
  %v158 = vunpack.c.l.b16 %v18
  %v159 = vunpack.c.h.b16 %v18
  %v160 = vunpack.c.l.b16 %v19
  %v161 = vunpack.c.h.b16 %v19
  %v162 = vunpack.c.l.b16 %v20
  %v163 = vunpack.c.h.b16 %v20
  %v164 = vunpack.c.l.b16 %v21
  %v165 = vunpack.c.h.b16 %v21
  %v166 = vunpack.c.l.b16 %v22
  %v167 = vunpack.c.h.b16 %v22
  %v168 = vunpack.c.l.b16 %v23
  %v169 = vunpack.c.h.b16 %v23
  %v170 = vunpack.c.l.b16 %v24
  %v171 = vunpack.c.h.b16 %v24
  %v172 = vunpack.c.l.b16 %v25
  %v173 = vunpack.c.h.b16 %v25
  %v174 = vunpack.c.l.b16 %v26
  %v175 = vunpack.c.h.b16 %v26
  %v176 = vunpack.c.l.b16 %v27
  %v177 = vunpack.c.h.b16 %v27
  %v178 = vunpack.c.l.b16 %v28
  %v179 = vunpack.c.h.b16 %v28
  %v180 = vunpack.c.l.b16 %v29
  %v181 = vunpack.c.h.b16 %v29
  %v182 = vunpack.c.l.b16 %v30
  %v183 = vunpack.c.h.b16 %v30
  %v184 = vunpack.c.l.b16 %v31
  %v185 = vunpack.c.h.b16 %v31
  %v186 = vunpack.c.l.b16 %v32
  %v187 = vunpack.c.h.b16 %v32
  %v188 = vunpack.c.l.b16 %v33
  %v189 = vunpack.c.h.b16 %v33
  %v190 = vunpack.c.l.b16 %v34
  %v191 = vunpack.c.h.b16 %v34
  %v192 = vunpack.c.l.b16 %v35
  %v193 = vunpack.c.h.b16 %v35
  %v194 = vunpack.c.l.b16 %v36
  %v195 = vunpack.c.h.b16 %v36
  %v196 = vunpack.c.l.b16 %v37
  %v197 = vunpack.c.h.b16 %v37
  %v198 = vunpack.c.l.b16 %v38
  %v199 = vunpack.c.h.b16 %v38
  %v200 = vunpack.c.l.b16 %v39
  %v201 = vunpack.c.h.b16 %v39
  %v202 = vunpack.c.l.b16 %v40
  %v203 = vunpack.c.h.b16 %v40
  %v204 = vunpack.c.l.b16 %v41
  %v205 = vunpack.c.h.b16 %v41
  %v206 = vunpack.c.l.b16 %v42
  %v207 = vunpack.c.h.b16 %v42
  %v208 = vunpack.c.l.b16 %v43
  %v209 = vunpack.c.h.b16 %v43
  %v210 = vunpack.c.l.b16 %v44
  %v211 = vunpack.c.h.b16 %v44
  %v212 = vunpack.c.l.b16 %v45
  %v213 = vunpack.c.h.b16 %v45
  %v214 = vunpack.c.l.b16 %v46
  %v215 = vunpack.c.h.b16 %v46
  %v216 = vunpack.c.l.b16 %v47
  %v217 = vunpack.c.h.b16 %v47
  %v218 = vunpack.c.l.b16 %v48
  %v219 = vunpack.c.h.b16 %v48
  %v220 = vunpack.c.l.b16 %v49
  %v221 = vunpack.c.h.b16 %v49
  %v222 = vunpack.c.l.b16 %v50
  %v223 = vunpack.c.h.b16 %v50
  %v224 = vunpack.c.l.b16 %v51
  %v225 = vunpack.c.h.b16 %v51
  %v226 = vunpack.c.l.b16 %v52
  %v227 = vunpack.c.h.b16 %v52
  %v228 = vunpack.c.l.b16 %v53
  %v229 = vunpack.c.h.b16 %v53
  %v230 = vpack.c.b16 %v150, %v146
  %v231 = vpack.c.b16 %v151, %v147
  %v232 = vpack.c.b16 %v152, %v148
  %v233 = vpack.c.b16 %v153, %v149
  %v234 = vpack.c.b16 %v158, %v154
  %v235 = vpack.c.b16 %v159, %v155
  %v236 = vpack.c.b16 %v160, %v156
  %v237 = vpack.c.b16 %v161, %v157
  %v238 = vpack.c.b16 %v166, %v162
  %v239 = vpack.c.b16 %v167, %v163
  %v240 = vpack.c.b16 %v168, %v164
  %v241 = vpack.c.b16 %v169, %v165
  %v242 = vpack.c.b16 %v174, %v170
  %v243 = vpack.c.b16 %v175, %v171
  %v244 = vpack.c.b16 %v176, %v172
  %v245 = vpack.c.b16 %v177, %v173
  %v246 = vpack.c.b16 %v182, %v178
  %v247 = vpack.c.b16 %v183, %v179
  %v248 = vpack.c.b16 %v184, %v180
  %v249 = vpack.c.b16 %v185, %v181
  %v250 = vpack.c.b16 %v190, %v186
  %v251 = vpack.c.b16 %v191, %v187
  %v252 = vpack.c.b16 %v192, %v188
  %v253 = vpack.c.b16 %v193, %v189
  %v254 = vpack.c.b16 %v198, %v194
  %v255 = vpack.c.b16 %v199, %v195
  %v256 = vpack.c.b16 %v200, %v196
  %v257 = vpack.c.b16 %v201, %v197
  %v258 = vpack.c.b16 %v206, %v202
  %v259 = vpack.c.b16 %v207, %v203
  %v260 = vpack.c.b16 %v208, %v204
  %v261 = vpack.c.b16 %v209, %v205
  %v262 = vpack.c.b16 %v214, %v210
  %v263 = vpack.c.b16 %v215, %v211
  %v264 = vpack.c.b16 %v216, %v212
  %v265 = vpack.c.b16 %v217, %v213
  %v266 = vpack.c.b16 %v222, %v218
  %v267 = vpack.c.b16 %v223, %v219
  %v268 = vpack.c.b16 %v224, %v220
  %v269 = vpack.c.b16 %v225, %v221
  %v270 = vpack.c.b16 %v226, %v226
  %v271 = vpack.c.b16 %v227, %v227
  %v272 = vpack.c.b16 %v228, %v228
  %v273 = vpack.c.b16 %v229, %v229
  %v357 = vunpack.c.l.b16 %v54
  %v358 = vunpack.c.l.b16 %v55
  %v359 = vunpack.c.l.b16 %v56
  %v360 = vunpack.c.l.b16 %v57
  %v361 = vunpack.c.l.b16 %v58
  %v362 = vunpack.c.l.b16 %v59
  %v363 = vunpack.c.l.b16 %v60
  %v364 = vunpack.c.l.b16 %v61
  %v365 = vunpack.c.l.b16 %v62
  %v366 = vunpack.c.l.b16 %v63
  %v367 = vunpack.c.l.b16 %v64
  %v368 = vunpack.c.l.b16 %v65
  %v369 = vunpack.c.l.b16 %v66
  %v370 = vunpack.c.l.b16 %v67
  %v371 = vunpack.c.l.b16 %v68
  %v372 = vunpack.c.l.b16 %v69
  %v373 = vunpack.c.l.b16 %v70
  %v374 = vunpack.c.l.b16 %v71
  %v375 = vunpack.c.l.b16 %v72
  %v376 = vunpack.c.l.b16 %v73
  %v377 = vunpack.c.l.b16 %v74
  %v378 = vunpack.c.l.b16 %v75
  %v379 = vunpack.c.l.b16 %v76
  %v380 = vunpack.c.l.b16 %v77
  %v381 = vunpack.c.l.b16 %v78
  %v382 = vunpack.c.l.b16 %v79
  %v383 = vunpack.c.l.b16 %v80
  %v384 = vunpack.c.l.b16 %v81
  %v385 = vunpack.c.l.b16 %v82
  %v386 = vunpack.c.l.b16 %v83
  %v387 = vunpack.c.l.b16 %v84
  %v388 = vunpack.c.l.b16 %v85
  %v389 = vunpack.c.l.b16 %v86
  %v390 = vunpack.c.l.b16 %v87
  %v391 = vunpack.c.l.b16 %v88
  %v392 = vunpack.c.l.b16 %v89
  %v393 = vunpack.c.l.b16 %v90
  %v394 = vunpack.c.l.b16 %v91
  %v395 = vunpack.c.l.b16 %v92
  %v396 = vunpack.c.l.b16 %v93
  %v397 = vunpack.c.l.b16 %v94
  %v398 = vunpack.c.l.b16 %v95
  %v399 = vunpack.c.l.b16 %v96
  %v400 = vunpack.c.l.b16 %v97
  %v401 = vunpack.c.l.b16 %v98
  %v402 = vunpack.c.l.b16 %v99
  %v403 = vunpack.c.l.b16 %v100
  %v404 = vunpack.c.l.b16 %v101
  %v405 = vunpack.c.l.b16 %v102
  %v406 = vunpack.c.l.b16 %v103
  %v407 = vpack.c.b16 %v358, %v357
  %v408 = vpack.c.b16 %v360, %v359
  %v409 = vpack.c.b16 %v362, %v361
  %v410 = vpack.c.b16 %v364, %v363
  %v411 = vpack.c.b16 %v366, %v365
  %v412 = vpack.c.b16 %v368, %v367
  %v413 = vpack.c.b16 %v370, %v369
  %v414 = vpack.c.b16 %v372, %v371
  %v415 = vpack.c.b16 %v374, %v373
  %v416 = vpack.c.b16 %v376, %v375
  %v417 = vpack.c.b16 %v378, %v377
  %v418 = vpack.c.b16 %v380, %v379
  %v419 = vpack.c.b16 %v382, %v381
  %v420 = vpack.c.b16 %v384, %v383
  %v421 = vpack.c.b16 %v386, %v385
  %v422 = vpack.c.b16 %v388, %v387
  %v423 = vpack.c.b16 %v390, %v389
  %v424 = vpack.c.b16 %v392, %v391
  %v425 = vpack.c.b16 %v394, %v393
  %v426 = vpack.c.b16 %v396, %v395
  %v427 = vpack.c.b16 %v398, %v397
  %v428 = vpack.c.b16 %v400, %v399
  %v429 = vpack.c.b16 %v402, %v401
  %v430 = vpack.c.b16 %v404, %v403
  %v431 = vpack.c.b16 %v406, %v405
  %vm457 = vcmask 130048
  %v459 = vsel %vm457, %v233, 0
  %v462 = vsel %vm457, %v237, 0
  %v465 = vsel %vm457, %v241, 0
  %v468 = vsel %vm457, %v245, 0
  %v471 = vsel %vm457, %v249, 0
  %v474 = vsel %vm457, %v253, 0
  %v477 = vsel %vm457, %v257, 0
  %v480 = vsel %vm457, %v261, 0
  %v483 = vsel %vm457, %v265, 0
  %v486 = vsel %vm457, %v269, 0
  %v489 = vsel %vm457, %v273, 0
  %491 = vmatprep.subr.bf16.mxu0 0
  %492 = vmatpush1.bf16.msra.mxu0 %v407
  %493 = vmatprep.subr.bf16.mxu0 0
  %494 = vmatpush1.bf16.msra.mxu0 %v408
  %495 = vmatprep.subr.bf16.mxu0 0
  %496 = vmatpush1.bf16.msra.mxu0 %v409
  %497 = vmatprep.subr.bf16.mxu0 0
  %498 = vmatpush1.bf16.msra.mxu0 %v410
  %499 = vmatprep.subr.bf16.mxu0 0
  %500 = vmatpush1.bf16.msra.mxu0 %v411
  %501 = vmatprep.subr.bf16.mxu0 0
  %502 = vmatpush1.bf16.msra.mxu0 %v412
  %503 = vmatprep.subr.bf16.mxu0 0
  %504 = vmatpush1.bf16.msra.mxu0 %v413
  %505 = vmatprep.subr.bf16.mxu0 0
  %506 = vmatpush1.bf16.msra.mxu0 %v414
  %507 = vmatprep.subr.bf16.mxu0 0
  %508 = vmatpush1.bf16.msra.mxu0 %v415
  %509 = vmatprep.subr.bf16.mxu0 0
  %510 = vmatpush1.bf16.msra.mxu0 %v416
  %511 = vmatprep.subr.bf16.mxu0 0
  %512 = vmatpush1.bf16.msra.mxu0 %v417
  %513 = vmatprep.subr.bf16.mxu0 0
  %514 = vmatpush1.bf16.msra.mxu0 %v418
  %515 = vmatprep.subr.bf16.mxu0 0
  %516 = vmatpush1.bf16.msra.mxu0 %v419
  %517 = vmatprep.subr.bf16.mxu0 0
  %518 = vmatpush1.bf16.msra.mxu0 %v420
  %519 = vmatprep.subr.bf16.mxu0 0
  %520 = vmatpush1.bf16.msra.mxu0 %v421
  %521 = vmatprep.subr.bf16.mxu0 0
  %522 = vmatpush1.bf16.msra.mxu0 %v422
  %523 = vmatprep.mubr.bf16.mxu0 %v231
  %524 = vmatmul.mubr.bf16.gmra.mrb[0].mxu0 %v230
  %v525 = vpop.f32.mrb[0].mxu0
  %v526 = vadd.f32 0.0, %v525
  %v527 = vpop.f32.mrb[0].mxu0
  %v528 = vpop.f32.mrb[0].mxu0
  %v529 = vadd.f32 0.0, %v528
  %v530 = vpop.f32.mrb[0].mxu0
  %531 = vmatprep.mubr.bf16.mxu0 %v235
  %532 = vmatmul.mubr.bf16.gmra.mrb[0].mxu0 %v234
  %v533 = vpop.f32.mrb[0].mxu0
  %v534 = vadd.f32 0.0, %v533
  %v535 = vpop.f32.mrb[0].mxu0
  %v536 = vpop.f32.mrb[0].mxu0
  %v537 = vadd.f32 0.0, %v536
  %v538 = vpop.f32.mrb[0].mxu0
  %539 = vmatprep.mubr.bf16.mxu0 %v239
  %540 = vmatmul.mubr.bf16.gmra.mrb[0].mxu0 %v238
  %v541 = vpop.f32.mrb[0].mxu0
  %v542 = vadd.f32 0.0, %v541
  %v543 = vpop.f32.mrb[0].mxu0
  %v544 = vpop.f32.mrb[0].mxu0
  %v545 = vadd.f32 0.0, %v544
  %v546 = vpop.f32.mrb[0].mxu0
  %547 = vmatprep.mubr.bf16.mxu0 %v243
  %548 = vmatmul.mubr.bf16.gmra.mrb[0].mxu0 %v242
  %v549 = vpop.f32.mrb[0].mxu0
  %v550 = vadd.f32 0.0, %v549
  %v551 = vpop.f32.mrb[0].mxu0
  %v552 = vpop.f32.mrb[0].mxu0
  %v553 = vadd.f32 0.0, %v552
  %v554 = vpop.f32.mrb[0].mxu0
  %555 = vmatprep.mubr.bf16.mxu0 %v247
  %556 = vmatmul.mubr.bf16.gmra.mrb[0].mxu0 %v246
  %v557 = vpop.f32.mrb[0].mxu0
  %v558 = vadd.f32 0.0, %v557
  %v559 = vpop.f32.mrb[0].mxu0
  %v560 = vpop.f32.mrb[0].mxu0
  %v561 = vadd.f32 0.0, %v560
  %v562 = vpop.f32.mrb[0].mxu0
  %563 = vmatprep.mubr.bf16.mxu0 %v251
  %564 = vmatmul.mubr.bf16.gmra.mrb[0].mxu0 %v250
  %v565 = vpop.f32.mrb[0].mxu0
  %v566 = vadd.f32 0.0, %v565
  %v567 = vpop.f32.mrb[0].mxu0
  %v568 = vpop.f32.mrb[0].mxu0
  %v569 = vadd.f32 0.0, %v568
  %v570 = vpop.f32.mrb[0].mxu0
  %571 = vmatprep.mubr.bf16.mxu0 %v255
  %572 = vmatmul.mubr.bf16.gmra.mrb[0].mxu0 %v254
  %v573 = vpop.f32.mrb[0].mxu0
  %v574 = vadd.f32 0.0, %v573
  %v575 = vpop.f32.mrb[0].mxu0
  %v576 = vpop.f32.mrb[0].mxu0
  %v577 = vadd.f32 0.0, %v576
  %v578 = vpop.f32.mrb[0].mxu0
  %579 = vmatprep.mubr.bf16.mxu0 %v259
  %580 = vmatmul.mubr.bf16.gmra.mrb[0].mxu0 %v258
  %v581 = vpop.f32.mrb[0].mxu0
  %v582 = vadd.f32 0.0, %v581
  %v583 = vpop.f32.mrb[0].mxu0
  %v584 = vpop.f32.mrb[0].mxu0
  %v585 = vadd.f32 0.0, %v584
  %v586 = vpop.f32.mrb[0].mxu0
  %587 = vmatprep.mubr.bf16.mxu0 %v263
  %588 = vmatmul.mubr.bf16.gmra.mrb[0].mxu0 %v262
  %v589 = vpop.f32.mrb[0].mxu0
  %v590 = vadd.f32 0.0, %v589
  %v591 = vpop.f32.mrb[0].mxu0
  %v592 = vpop.f32.mrb[0].mxu0
  %v593 = vadd.f32 0.0, %v592
  %v594 = vpop.f32.mrb[0].mxu0
  %595 = vmatprep.mubr.bf16.mxu0 %v267
  %596 = vmatmul.mubr.bf16.gmra.mrb[0].mxu0 %v266
  %v597 = vpop.f32.mrb[0].mxu0
  %v598 = vadd.f32 0.0, %v597
  %v599 = vpop.f32.mrb[0].mxu0
  %v600 = vpop.f32.mrb[0].mxu0
  %v601 = vadd.f32 0.0, %v600
  %v602 = vpop.f32.mrb[0].mxu0
  %603 = vmatprep.mubr.bf16.mxu0 %v271
  %604 = vmatmul.mubr.bf16.gmra.mrb[0].mxu0 %v270
  %v605 = vpop.f32.mrb[0].mxu0
  %v606 = vadd.f32 0.0, %v605
  %v607 = vpop.f32.mrb[0].mxu0
  %v608 = vpop.f32.mrb[0].mxu0
  %v609 = vpop.f32.mrb[0].mxu0
  %610 = vdwg.mxu0
  %611 = vmatprep.subr.bf16.mxu0 0
  %612 = vmatpush1.bf16.msra.mxu0 %v423
  %613 = vmatprep.subr.bf16.mxu0 0
  %614 = vmatpush1.bf16.msra.mxu0 %v424
  %615 = vmatprep.subr.bf16.mxu0 0
  %616 = vmatpush1.bf16.msra.mxu0 %v425
  %617 = vmatprep.subr.bf16.mxu0 0
  %618 = vmatpush1.bf16.msra.mxu0 %v426
  %619 = vmatprep.subr.bf16.mxu0 0
  %620 = vmatpush1.bf16.msra.mxu0 %v427
  %621 = vmatprep.subr.bf16.mxu0 0
  %622 = vmatpush1.bf16.msra.mxu0 %v428
  %623 = vmatprep.subr.bf16.mxu0 0
  %624 = vmatpush1.bf16.msra.mxu0 %v429
  %625 = vmatprep.subr.bf16.mxu0 0
  %626 = vmatpush1.bf16.msra.mxu0 %v430
  %627 = vmatprep.subr.bf16.mxu0 0
  %628 = vmatpush1.bf16.msra.mxu0 %v431
  %629 = vmatprep.subr.bf16.mxu0 0
  %630 = vmatpush1.bf16.msra.mxu0 0
  %631 = vmatprep.subr.bf16.mxu0 0
  %632 = vmatpush1.bf16.msra.mxu0 0
  %633 = vmatprep.subr.bf16.mxu0 0
  %634 = vmatpush1.bf16.msra.mxu0 0
  %635 = vmatprep.subr.bf16.mxu0 0
  %636 = vmatpush1.bf16.msra.mxu0 0
  %637 = vmatprep.subr.bf16.mxu0 0
  %638 = vmatpush1.bf16.msra.mxu0 0
  %639 = vmatprep.subr.bf16.mxu0 0
  %640 = vmatpush1.bf16.msra.mxu0 0
  %641 = vmatprep.subr.bf16.mxu0 0
  %642 = vmatpush1.bf16.msra.mxu0 0
  %643 = vmatprep.mubr.bf16.mxu0 %v459
  %644 = vmatmul.mubr.bf16.gmra.mrb[0].mxu0 %v232
  %v645 = vpop.f32.mrb[0].mxu0
  %v646 = vadd.f32 %v526, %v645
  %v647 = vpop.f32.mrb[0].mxu0
  %v648 = vpop.f32.mrb[0].mxu0
  %v649 = vadd.f32 %v529, %v648
  %v650 = vpop.f32.mrb[0].mxu0
  %651 = vmatprep.mubr.bf16.mxu0 %v462
  %652 = vmatmul.mubr.bf16.gmra.mrb[0].mxu0 %v236
  %v653 = vpop.f32.mrb[0].mxu0
  %v654 = vadd.f32 %v534, %v653
  %v655 = vpop.f32.mrb[0].mxu0
  %v656 = vpop.f32.mrb[0].mxu0
  %v657 = vadd.f32 %v537, %v656
  %v658 = vpop.f32.mrb[0].mxu0
  %659 = vmatprep.mubr.bf16.mxu0 %v465
  %660 = vmatmul.mubr.bf16.gmra.mrb[0].mxu0 %v240
  %v661 = vpop.f32.mrb[0].mxu0
  %v662 = vadd.f32 %v542, %v661
  %v663 = vpop.f32.mrb[0].mxu0
  %v664 = vpop.f32.mrb[0].mxu0
  %v665 = vadd.f32 %v545, %v664
  %v666 = vpop.f32.mrb[0].mxu0
  %667 = vmatprep.mubr.bf16.mxu0 %v468
  %668 = vmatmul.mubr.bf16.gmra.mrb[0].mxu0 %v244
  %v669 = vpop.f32.mrb[0].mxu0
  %v670 = vadd.f32 %v550, %v669
  %v671 = vpop.f32.mrb[0].mxu0
  %v672 = vpop.f32.mrb[0].mxu0
  %v673 = vadd.f32 %v553, %v672
  %v674 = vpop.f32.mrb[0].mxu0
  %675 = vmatprep.mubr.bf16.mxu0 %v471
  %676 = vmatmul.mubr.bf16.gmra.mrb[0].mxu0 %v248
  %v677 = vpop.f32.mrb[0].mxu0
  %v678 = vadd.f32 %v558, %v677
  %v679 = vpop.f32.mrb[0].mxu0
  %v680 = vpop.f32.mrb[0].mxu0
  %v681 = vadd.f32 %v561, %v680
  %v682 = vpop.f32.mrb[0].mxu0
  %683 = vmatprep.mubr.bf16.mxu0 %v474
  %684 = vmatmul.mubr.bf16.gmra.mrb[0].mxu0 %v252
  %v685 = vpop.f32.mrb[0].mxu0
  %v686 = vadd.f32 %v566, %v685
  %v687 = vpop.f32.mrb[0].mxu0
  %v688 = vpop.f32.mrb[0].mxu0
  %v689 = vadd.f32 %v569, %v688
  %v690 = vpop.f32.mrb[0].mxu0
  %691 = vmatprep.mubr.bf16.mxu0 %v477
  %692 = vmatmul.mubr.bf16.gmra.mrb[0].mxu0 %v256
  %v693 = vpop.f32.mrb[0].mxu0
  %v694 = vadd.f32 %v574, %v693
  %v695 = vpop.f32.mrb[0].mxu0
  %v696 = vpop.f32.mrb[0].mxu0
  %v697 = vadd.f32 %v577, %v696
  %v698 = vpop.f32.mrb[0].mxu0
  %699 = vmatprep.mubr.bf16.mxu0 %v480
  %700 = vmatmul.mubr.bf16.gmra.mrb[0].mxu0 %v260
  %v701 = vpop.f32.mrb[0].mxu0
  %v702 = vadd.f32 %v582, %v701
  %v703 = vpop.f32.mrb[0].mxu0
  %v704 = vpop.f32.mrb[0].mxu0
  %v705 = vadd.f32 %v585, %v704
  %v706 = vpop.f32.mrb[0].mxu0
  %707 = vmatprep.mubr.bf16.mxu0 %v483
  %708 = vmatmul.mubr.bf16.gmra.mrb[0].mxu0 %v264
  %v709 = vpop.f32.mrb[0].mxu0
  %v710 = vadd.f32 %v590, %v709
  %v711 = vpop.f32.mrb[0].mxu0
  %v712 = vpop.f32.mrb[0].mxu0
  %v713 = vadd.f32 %v593, %v712
  %v714 = vpop.f32.mrb[0].mxu0
  %715 = vmatprep.mubr.bf16.mxu0 %v486
  %716 = vmatmul.mubr.bf16.gmra.mrb[0].mxu0 %v268
  %v717 = vpop.f32.mrb[0].mxu0
  %v718 = vadd.f32 %v598, %v717
  %v719 = vpop.f32.mrb[0].mxu0
  %v720 = vpop.f32.mrb[0].mxu0
  %v721 = vadd.f32 %v601, %v720
  %v722 = vpop.f32.mrb[0].mxu0
  %723 = vmatprep.mubr.bf16.mxu0 %v489
  %724 = vmatmul.mubr.bf16.gmra.mrb[0].mxu0 %v272
  %v725 = vpop.f32.mrb[0].mxu0
  %v726 = vadd.f32 %v606, %v725
  %v727 = vpop.f32.mrb[0].mxu0
  %v728 = vpop.f32.mrb[0].mxu0
  %v729 = vpop.f32.mrb[0].mxu0
  %730 = vdwg.mxu0
  %v731 = vmax.f32 %v646, 0.0
  %v732 = vmax.f32 %v649, 0.0
  %v733 = vmax.f32 %v654, 0.0
  %v734 = vmax.f32 %v657, 0.0
  %v735 = vmax.f32 %v662, 0.0
  %v736 = vmax.f32 %v665, 0.0
  %v737 = vmax.f32 %v670, 0.0
  %v738 = vmax.f32 %v673, 0.0
  %v739 = vmax.f32 %v678, 0.0
  %v740 = vmax.f32 %v681, 0.0
  %v741 = vmax.f32 %v686, 0.0
  %v742 = vmax.f32 %v689, 0.0
  %v743 = vmax.f32 %v694, 0.0
  %v744 = vmax.f32 %v697, 0.0
  %v745 = vmax.f32 %v702, 0.0
  %v746 = vmax.f32 %v705, 0.0
  %v747 = vmax.f32 %v710, 0.0
  %v748 = vmax.f32 %v713, 0.0
  %v749 = vmax.f32 %v718, 0.0
  %v750 = vmax.f32 %v721, 0.0
  %v751 = vmax.f32 %v726, 0.0
  %v752 = vpack.c.bf16 %v732, %v731
  %v753 = vpack.c.bf16 %v734, %v733
  %v754 = vpack.c.bf16 %v736, %v735
  %v755 = vpack.c.bf16 %v738, %v737
  %v756 = vpack.c.bf16 %v740, %v739
  %v757 = vpack.c.bf16 %v742, %v741
  %v758 = vpack.c.bf16 %v744, %v743
  %v759 = vpack.c.bf16 %v746, %v745
  %v760 = vpack.c.bf16 %v748, %v747
  %v761 = vpack.c.bf16 %v750, %v749
  %v762 = vpack.c.bf16 %v751, %v751
  %v774 = vunpack.c.l.b16 %v752
  %v775 = vunpack.c.h.b16 %v752
  %v776 = vunpack.c.l.b16 %v753
  %v777 = vunpack.c.h.b16 %v753
  %v778 = vunpack.c.l.b16 %v754
  %v779 = vunpack.c.h.b16 %v754
  %v780 = vunpack.c.l.b16 %v755
  %v781 = vunpack.c.h.b16 %v755
  %v782 = vunpack.c.l.b16 %v756
  %v783 = vunpack.c.h.b16 %v756
  %v784 = vunpack.c.l.b16 %v757
  %v785 = vunpack.c.h.b16 %v757
  %v786 = vunpack.c.l.b16 %v758
  %v787 = vunpack.c.h.b16 %v758
  %v788 = vunpack.c.l.b16 %v759
  %v789 = vunpack.c.h.b16 %v759
  %v790 = vunpack.c.l.b16 %v760
  %v791 = vunpack.c.h.b16 %v760
  %v792 = vunpack.c.l.b16 %v761
  %v793 = vunpack.c.h.b16 %v761
  %v794 = vunpack.c.l.b16 %v762
  %v795 = vpack.c.b16 %v774, %v774
  %v796 = vpack.c.b16 %v775, %v775
  %v797 = vpack.c.b16 %v776, %v776
  %v798 = vpack.c.b16 %v777, %v777
  %v799 = vpack.c.b16 %v778, %v778
  %v800 = vpack.c.b16 %v779, %v779
  %v801 = vpack.c.b16 %v780, %v780
  %v802 = vpack.c.b16 %v781, %v781
  %v803 = vpack.c.b16 %v782, %v782
  %v804 = vpack.c.b16 %v783, %v783
  %v805 = vpack.c.b16 %v784, %v784
  %v806 = vpack.c.b16 %v785, %v785
  %v807 = vpack.c.b16 %v786, %v786
  %v808 = vpack.c.b16 %v787, %v787
  %v809 = vpack.c.b16 %v788, %v788
  %v810 = vpack.c.b16 %v789, %v789
  %v811 = vpack.c.b16 %v790, %v790
  %v812 = vpack.c.b16 %v791, %v791
  %v813 = vpack.c.b16 %v792, %v792
  %v814 = vpack.c.b16 %v793, %v793
  %v815 = vpack.c.b16 %v794, %v794
  %vm837 = vcmask 257024
  %838 = vst.msk [vmem:[%s2] sm:$0xf] %vm837, %v795
  %839 = vst.msk [vmem:[%s2 + $0x4] sm:$0xf] %vm837, %v796
  %840 = vst.msk [vmem:[%s2 + $0x8] sm:$0xf] %vm837, %v797
  %841 = vst.msk [vmem:[%s2 + $0xc] sm:$0xf] %vm837, %v798
  %842 = vst.msk [vmem:[%s2 + $0x10] sm:$0xf] %vm837, %v799
  %843 = vst.msk [vmem:[%s2 + $0x14] sm:$0xf] %vm837, %v800
  %844 = vst.msk [vmem:[%s2 + $0x18] sm:$0xf] %vm837, %v801
  %845 = vst.msk [vmem:[%s2 + $0x1c] sm:$0xf] %vm837, %v802
  %846 = vst.msk [vmem:[%s2 + $0x20] sm:$0xf] %vm837, %v803
  %847 = vst.msk [vmem:[%s2 + $0x24] sm:$0xf] %vm837, %v804
  %848 = vst.msk [vmem:[%s2 + $0x28] sm:$0xf] %vm837, %v805
  %849 = vst.msk [vmem:[%s2 + $0x2c] sm:$0xf] %vm837, %v806
  %850 = vst.msk [vmem:[%s2 + $0x30] sm:$0xf] %vm837, %v807
  %851 = vst.msk [vmem:[%s2 + $0x34] sm:$0xf] %vm837, %v808
  %852 = vst.msk [vmem:[%s2 + $0x38] sm:$0xf] %vm837, %v809
  %853 = vst.msk [vmem:[%s2 + $0x3c] sm:$0xf] %vm837, %v810
  %854 = vst.msk [vmem:[%s2 + $0x40] sm:$0xf] %vm837, %v811
  %855 = vst.msk [vmem:[%s2 + $0x44] sm:$0xf] %vm837, %v812
  %856 = vst.msk [vmem:[%s2 + $0x48] sm:$0xf] %vm837, %v813
  %857 = vst.msk [vmem:[%s2 + $0x4c] sm:$0xf] %vm837, %v814
  %vm858 = vcmask 253952
  %859 = vst.msk [vmem:[%s2 + $0x50] sm:$0x1] %vm858, %v815
  // Predicated region
  $region10: #{conv2d_classifier_forward.6} parent=0 // pred_check
    _
  $region11: #{conv2d_classifier_forward.6} parent=0 // pred_check_branch
    %861 = sbr.rel (0) target = $region13
  $region12: #{conv2d_classifier_forward.6} parent=0 // pred_region
    _
  $region13: #{conv2d_classifier_forward.6} parent=0 // pred_fallthru
    _
  // Predicated region
  $region14: #{conv2d_classifier_forward.6} parent=0 // pred_check
    _
  $region15: #{conv2d_classifier_forward.6} parent=0 // pred_check_branch
    %863 = sbr.rel (0) target = $region17
  $region16: #{conv2d_classifier_forward.6} parent=0 // pred_region
    _
  $region17: #{conv2d_classifier_forward.6} parent=0 // pred_fallthru
    _

// kernel: conv2d_classifier_forward.7
$region0: #{conv2d_classifier_forward.7}
  #allocation0 [shape = 'u32[]', space=smem, size = 0x4, offset = 0x4, fixed_abs, tag = 'smem constant byte address 0x4 - core index']
  #allocation1 [shape = 'u32[144,128]{1,0:T(1,128)}', space=vmem, size = 0x12000, scoped, tag = 'internal scratch']
  %s0 = inlined_call_operand.vmem [shape: bf16[98,288], index: 0, kind: input, shape index: {}]
  %s1 = inlined_call_operand.vmem [shape: bf16[288,64], index: 1, kind: input, shape index: {}]
  %s2 = inlined_call_operand.vmem [shape: f32[1,64], index: 2, kind: input, shape index: {}]
  %s3 = inlined_call_operand.vmem [shape: f32[98,64], index: 3, kind: output, shape index: {}]
  %s4 = sld [smem:[#allocation0]]
  $region22: #{conv2d_classifier_forward.7} parent=0
    _
  %s6 = ssub.s32 1, %s4
  %s7 = scalar_select 0, %s6, %s4
  // Predicated region
  $region2: #{conv2d_classifier_forward.7} parent=0 // pred_check
    _
  $region3: #{conv2d_classifier_forward.7} parent=0 // pred_check_branch
    %9 = sbr.rel (0) target = $region5
  $region4: #{conv2d_classifier_forward.7} parent=0 // pred_region
    _
  $region5: #{conv2d_classifier_forward.7} parent=0 // pred_fallthru
    _
  // Predicated region
  $region6: #{conv2d_classifier_forward.7} parent=0 // pred_check
    _
  $region7: #{conv2d_classifier_forward.7} parent=0 // pred_check_branch
    %11 = sbr.rel (0) target = $region9
  $region8: #{conv2d_classifier_forward.7} parent=0 // pred_region
    _
  $region9: #{conv2d_classifier_forward.7} parent=0 // pred_fallthru
    _
  // Predicated region
  $region10: #{conv2d_classifier_forward.7} parent=0 // pred_check
    _
  $region11: #{conv2d_classifier_forward.7} parent=0 // pred_check_branch
    %13 = sbr.rel (0) target = $region13
  $region12: #{conv2d_classifier_forward.7} parent=0 // pred_region
    _
  $region13: #{conv2d_classifier_forward.7} parent=0 // pred_fallthru
    _
  %v15 = vld [vmem:[%s0] sm:$0xff]
  %v16 = vld [vmem:[%s0 + $0x8] sm:$0xf]
  %v17 = vld [vmem:[%s0 + $0xc] sm:$0xff]
  %v18 = vld [vmem:[%s0 + $0x14] sm:$0xf]
  %v19 = vld [vmem:[%s0 + $0x18] sm:$0xff]
  %v20 = vld [vmem:[%s0 + $0x20] sm:$0xf]
  %v21 = vld [vmem:[%s0 + $0x24] sm:$0xff]
  %v22 = vld [vmem:[%s0 + $0x2c] sm:$0xf]
  %v23 = vld [vmem:[%s0 + $0x30] sm:$0xff]
  %v24 = vld [vmem:[%s0 + $0x38] sm:$0xf]
  %v25 = vld [vmem:[%s0 + $0x3c] sm:$0xff]
  %v26 = vld [vmem:[%s0 + $0x44] sm:$0xf]
  %v27 = vld [vmem:[%s0 + $0x48] sm:$0xff]
  %v28 = vld [vmem:[%s0 + $0x50] sm:$0xf]
  %v29 = vld [vmem:[%s0 + $0x54] sm:$0xff]
  %v30 = vld [vmem:[%s0 + $0x5c] sm:$0xf]
  %v31 = vld [vmem:[%s0 + $0x60] sm:$0xff]
  %v32 = vld [vmem:[%s0 + $0x68] sm:$0xf]
  %v33 = vld [vmem:[%s0 + $0x6c] sm:$0xff]
  %v34 = vld [vmem:[%s0 + $0x74] sm:$0xf]
  %v35 = vld [vmem:[%s0 + $0x78] sm:$0xff]
  %v36 = vld [vmem:[%s0 + $0x80] sm:$0xf]
  %v37 = vld [vmem:[%s0 + $0x84] sm:$0xff]
  %v38 = vld [vmem:[%s0 + $0x8c] sm:$0xf]
  %v39 = vld [vmem:[%s0 + $0x90] sm:$0x11]
  %v40 = vld [vmem:[%s0 + $0x98] sm:$0x1]
  %v41 = vld [vmem:[%s1] sm:$0xf]
  %v42 = vld [vmem:[%s1 + $0x4] sm:$0xf]
  %v43 = vld [vmem:[%s1 + $0x8] sm:$0xf]
  %v44 = vld [vmem:[%s1 + $0xc] sm:$0xf]
  %v45 = vld [vmem:[%s1 + $0x10] sm:$0xf]
  %v46 = vld [vmem:[%s1 + $0x14] sm:$0xf]
  %v47 = vld [vmem:[%s1 + $0x18] sm:$0xf]
  %v48 = vld [vmem:[%s1 + $0x1c] sm:$0xf]
  %v49 = vld [vmem:[%s1 + $0x20] sm:$0xf]
  %v50 = vld [vmem:[%s1 + $0x24] sm:$0xf]
  %v51 = vld [vmem:[%s1 + $0x28] sm:$0xf]
  %v52 = vld [vmem:[%s1 + $0x2c] sm:$0xf]
  %v53 = vld [vmem:[%s1 + $0x30] sm:$0xf]
  %v54 = vld [vmem:[%s1 + $0x34] sm:$0xf]
  %v55 = vld [vmem:[%s1 + $0x38] sm:$0xf]
  %v56 = vld [vmem:[%s1 + $0x3c] sm:$0xf]
  %v57 = vld [vmem:[%s1 + $0x40] sm:$0xf]
  %v58 = vld [vmem:[%s1 + $0x44] sm:$0xf]
  %v59 = vld [vmem:[%s1 + $0x48] sm:$0xf]
  %v60 = vld [vmem:[%s1 + $0x4c] sm:$0xf]
  %v61 = vld [vmem:[%s1 + $0x50] sm:$0xf]
  %v62 = vld [vmem:[%s1 + $0x54] sm:$0xf]
  %v63 = vld [vmem:[%s1 + $0x58] sm:$0xf]
  %v64 = vld [vmem:[%s1 + $0x5c] sm:$0xf]
  %v65 = vld [vmem:[%s1 + $0x60] sm:$0xf]
  %v66 = vld [vmem:[%s1 + $0x64] sm:$0xf]
  %v67 = vld [vmem:[%s1 + $0x68] sm:$0xf]
  %v68 = vld [vmem:[%s1 + $0x6c] sm:$0xf]
  %v69 = vld [vmem:[%s1 + $0x70] sm:$0xf]
  %v70 = vld [vmem:[%s1 + $0x74] sm:$0xf]
  %v71 = vld [vmem:[%s1 + $0x78] sm:$0xf]
  %v72 = vld [vmem:[%s1 + $0x7c] sm:$0xf]
  %v73 = vld [vmem:[%s1 + $0x80] sm:$0xf]
  %v74 = vld [vmem:[%s1 + $0x84] sm:$0xf]
  %v75 = vld [vmem:[%s1 + $0x88] sm:$0xf]
  %v76 = vld [vmem:[%s1 + $0x8c] sm:$0xf]
  %v77 = vld [vmem:[%s2] sm:$0x1]
  %v79 = vlaneseq
  %v80 = vshrl.u32 %v79, 7
  %v81 = vsub.s32 0, %v80
  %v82 = vrot.slane %v77, %v81
  %v110 = vunpack.c.l.b16 %v15
  %v111 = vunpack.c.h.b16 %v15
  %v112 = vunpack.c.l.b16 %v16
  %v113 = vunpack.c.l.b16 %v17
  %v114 = vunpack.c.h.b16 %v17
  %v115 = vunpack.c.l.b16 %v18
  %v116 = vunpack.c.l.b16 %v19
  %v117 = vunpack.c.h.b16 %v19
  %v118 = vunpack.c.l.b16 %v20
  %v119 = vunpack.c.l.b16 %v21
  %v120 = vunpack.c.h.b16 %v21
  %v121 = vunpack.c.l.b16 %v22
  %v122 = vunpack.c.l.b16 %v23
  %v123 = vunpack.c.h.b16 %v23
  %v124 = vunpack.c.l.b16 %v24
  %v125 = vunpack.c.l.b16 %v25
  %v126 = vunpack.c.h.b16 %v25
  %v127 = vunpack.c.l.b16 %v26
  %v128 = vunpack.c.l.b16 %v27
  %v129 = vunpack.c.h.b16 %v27
  %v130 = vunpack.c.l.b16 %v28
  %v131 = vunpack.c.l.b16 %v29
  %v132 = vunpack.c.h.b16 %v29
  %v133 = vunpack.c.l.b16 %v30
  %v134 = vunpack.c.l.b16 %v31
  %v135 = vunpack.c.h.b16 %v31
  %v136 = vunpack.c.l.b16 %v32
  %v137 = vunpack.c.l.b16 %v33
  %v138 = vunpack.c.h.b16 %v33
  %v139 = vunpack.c.l.b16 %v34
  %v140 = vunpack.c.l.b16 %v35
  %v141 = vunpack.c.h.b16 %v35
  %v142 = vunpack.c.l.b16 %v36
  %v143 = vunpack.c.l.b16 %v37
  %v144 = vunpack.c.h.b16 %v37
  %v145 = vunpack.c.l.b16 %v38
  %v146 = vunpack.c.l.b16 %v39
  %v147 = vunpack.c.h.b16 %v39
  %v148 = vunpack.c.l.b16 %v40
  %v149 = vpack.c.b16 %v113, %v110
  %v150 = vpack.c.b16 %v114, %v111
  %v151 = vpack.c.b16 %v115, %v112
  %v152 = vpack.c.b16 %v119, %v116
  %v153 = vpack.c.b16 %v120, %v117
  %v154 = vpack.c.b16 %v121, %v118
  %v155 = vpack.c.b16 %v125, %v122
  %v156 = vpack.c.b16 %v126, %v123
  %v157 = vpack.c.b16 %v127, %v124
  %v158 = vpack.c.b16 %v131, %v128
  %v159 = vpack.c.b16 %v132, %v129
  %v160 = vpack.c.b16 %v133, %v130
  %v161 = vpack.c.b16 %v137, %v134
  %v162 = vpack.c.b16 %v138, %v135
  %v163 = vpack.c.b16 %v139, %v136
  %v164 = vpack.c.b16 %v143, %v140
  %v165 = vpack.c.b16 %v144, %v141
  %v166 = vpack.c.b16 %v145, %v142
  %v167 = vpack.c.b16 %v146, %v146
  %v168 = vpack.c.b16 %v147, %v147
  %v169 = vpack.c.b16 %v148, %v148
  %v220 = vunpack.c.l.b16 %v41
  %v221 = vunpack.c.l.b16 %v42
  %v222 = vunpack.c.l.b16 %v43
  %v223 = vunpack.c.l.b16 %v44
  %v224 = vunpack.c.l.b16 %v45
  %v225 = vunpack.c.l.b16 %v46
  %v226 = vunpack.c.l.b16 %v47
  %v227 = vunpack.c.l.b16 %v48
  %v228 = vunpack.c.l.b16 %v49
  %v229 = vunpack.c.l.b16 %v50
  %v230 = vunpack.c.l.b16 %v51
  %v231 = vunpack.c.l.b16 %v52
  %v232 = vunpack.c.l.b16 %v53
  %v233 = vunpack.c.l.b16 %v54
  %v234 = vunpack.c.l.b16 %v55
  %v235 = vunpack.c.l.b16 %v56
  %v236 = vunpack.c.l.b16 %v57
  %v237 = vunpack.c.l.b16 %v58
  %v238 = vunpack.c.l.b16 %v59
  %v239 = vunpack.c.l.b16 %v60
  %v240 = vunpack.c.l.b16 %v61
  %v241 = vunpack.c.l.b16 %v62
  %v242 = vunpack.c.l.b16 %v63
  %v243 = vunpack.c.l.b16 %v64
  %v244 = vunpack.c.l.b16 %v65
  %v245 = vunpack.c.l.b16 %v66
  %v246 = vunpack.c.l.b16 %v67
  %v247 = vunpack.c.l.b16 %v68
  %v248 = vunpack.c.l.b16 %v69
  %v249 = vunpack.c.l.b16 %v70
  %v250 = vunpack.c.l.b16 %v71
  %v251 = vunpack.c.l.b16 %v72
  %v252 = vunpack.c.l.b16 %v73
  %v253 = vunpack.c.l.b16 %v74
  %v254 = vunpack.c.l.b16 %v75
  %v255 = vunpack.c.l.b16 %v76
  %v256 = vpack.c.b16 %v221, %v220
  %v257 = vpack.c.b16 %v223, %v222
  %v258 = vpack.c.b16 %v225, %v224
  %v259 = vpack.c.b16 %v227, %v226
  %v260 = vpack.c.b16 %v229, %v228
  %v261 = vpack.c.b16 %v231, %v230
  %v262 = vpack.c.b16 %v233, %v232
  %v263 = vpack.c.b16 %v235, %v234
  %v264 = vpack.c.b16 %v237, %v236
  %v265 = vpack.c.b16 %v239, %v238
  %v266 = vpack.c.b16 %v241, %v240
  %v267 = vpack.c.b16 %v243, %v242
  %v268 = vpack.c.b16 %v245, %v244
  %v269 = vpack.c.b16 %v247, %v246
  %v270 = vpack.c.b16 %v249, %v248
  %v271 = vpack.c.b16 %v251, %v250
  %v272 = vpack.c.b16 %v253, %v252
  %v273 = vpack.c.b16 %v255, %v254
  %vm292 = vcmask 261120
  %v294 = vsel %vm292, %v151, 0
  %v297 = vsel %vm292, %v154, 0
  %v300 = vsel %vm292, %v157, 0
  %v303 = vsel %vm292, %v160, 0
  %v306 = vsel %vm292, %v163, 0
  %v309 = vsel %vm292, %v166, 0
  %v312 = vsel %vm292, %v169, 0
  %314 = vmatprep.subr.bf16.mxu0 0
  %315 = vmatpush1.bf16.msra.mxu0 %v256
  %316 = vmatprep.subr.bf16.mxu0 0
  %317 = vmatpush1.bf16.msra.mxu0 %v257
  %318 = vmatprep.subr.bf16.mxu0 0
  %319 = vmatpush1.bf16.msra.mxu0 %v258
  %320 = vmatprep.subr.bf16.mxu0 0
  %321 = vmatpush1.bf16.msra.mxu0 %v259
  %322 = vmatprep.subr.bf16.mxu0 0
  %323 = vmatpush1.bf16.msra.mxu0 %v260
  %324 = vmatprep.subr.bf16.mxu0 0
  %325 = vmatpush1.bf16.msra.mxu0 %v261
  %326 = vmatprep.subr.bf16.mxu0 0
  %327 = vmatpush1.bf16.msra.mxu0 %v262
  %328 = vmatprep.subr.bf16.mxu0 0
  %329 = vmatpush1.bf16.msra.mxu0 %v263
  %330 = vmatprep.subr.bf16.mxu0 0
  %331 = vmatpush1.bf16.msra.mxu0 %v264
  %332 = vmatprep.subr.bf16.mxu0 0
  %333 = vmatpush1.bf16.msra.mxu0 %v265
  %334 = vmatprep.subr.bf16.mxu0 0
  %335 = vmatpush1.bf16.msra.mxu0 %v266
  %336 = vmatprep.subr.bf16.mxu0 0
  %337 = vmatpush1.bf16.msra.mxu0 %v267
  %338 = vmatprep.subr.bf16.mxu0 0
  %339 = vmatpush1.bf16.msra.mxu0 %v268
  %340 = vmatprep.subr.bf16.mxu0 0
  %341 = vmatpush1.bf16.msra.mxu0 %v269
  %342 = vmatprep.subr.bf16.mxu0 0
  %343 = vmatpush1.bf16.msra.mxu0 %v270
  %344 = vmatprep.subr.bf16.mxu0 0
  %345 = vmatpush1.bf16.msra.mxu0 %v271
  %346 = vmatprep.mubr.bf16.mxu0 %v150
  %347 = vmatmul.mubr.bf16.gmra.mrb[0].mxu0 %v149
  %v348 = vpop.f32.mrb[0].mxu0
  %v349 = vadd.f32 %v82, %v348
  %v350 = vpop.f32.mrb[0].mxu0
  %v351 = vpop.f32.mrb[0].mxu0
  %v352 = vadd.f32 %v82, %v351
  %v353 = vpop.f32.mrb[0].mxu0
  %354 = vmatprep.mubr.bf16.mxu0 %v153
  %355 = vmatmul.mubr.bf16.gmra.mrb[0].mxu0 %v152
  %v356 = vpop.f32.mrb[0].mxu0
  %v357 = vadd.f32 %v82, %v356
  %v358 = vpop.f32.mrb[0].mxu0
  %v359 = vpop.f32.mrb[0].mxu0
  %v360 = vadd.f32 %v82, %v359
  %v361 = vpop.f32.mrb[0].mxu0
  %362 = vmatprep.mubr.bf16.mxu0 %v156
  %363 = vmatmul.mubr.bf16.gmra.mrb[0].mxu0 %v155
  %v364 = vpop.f32.mrb[0].mxu0
  %v365 = vadd.f32 %v82, %v364
  %v366 = vpop.f32.mrb[0].mxu0
  %v367 = vpop.f32.mrb[0].mxu0
  %v368 = vadd.f32 %v82, %v367
  %v369 = vpop.f32.mrb[0].mxu0
  %370 = vmatprep.mubr.bf16.mxu0 %v159
  %371 = vmatmul.mubr.bf16.gmra.mrb[0].mxu0 %v158
  %v372 = vpop.f32.mrb[0].mxu0
  %v373 = vadd.f32 %v82, %v372
  %v374 = vpop.f32.mrb[0].mxu0
  %v375 = vpop.f32.mrb[0].mxu0
  %v376 = vadd.f32 %v82, %v375
  %v377 = vpop.f32.mrb[0].mxu0
  %378 = vmatprep.mubr.bf16.mxu0 %v162
  %379 = vmatmul.mubr.bf16.gmra.mrb[0].mxu0 %v161
  %v380 = vpop.f32.mrb[0].mxu0
  %v381 = vadd.f32 %v82, %v380
  %v382 = vpop.f32.mrb[0].mxu0
  %v383 = vpop.f32.mrb[0].mxu0
  %v384 = vadd.f32 %v82, %v383
  %v385 = vpop.f32.mrb[0].mxu0
  %386 = vmatprep.mubr.bf16.mxu0 %v165
  %387 = vmatmul.mubr.bf16.gmra.mrb[0].mxu0 %v164
  %v388 = vpop.f32.mrb[0].mxu0
  %v389 = vadd.f32 %v82, %v388
  %v390 = vpop.f32.mrb[0].mxu0
  %v391 = vpop.f32.mrb[0].mxu0
  %v392 = vadd.f32 %v82, %v391
  %v393 = vpop.f32.mrb[0].mxu0
  %394 = vmatprep.mubr.bf16.mxu0 %v168
  %395 = vmatmul.mubr.bf16.gmra.mrb[0].mxu0 %v167
  %v396 = vpop.f32.mrb[0].mxu0
  %v397 = vadd.f32 %v82, %v396
  %v398 = vpop.f32.mrb[0].mxu0
  %v399 = vpop.f32.mrb[0].mxu0
  %v400 = vpop.f32.mrb[0].mxu0
  %401 = vdwg.mxu0
  %402 = vmatprep.subr.bf16.mxu0 0
  %403 = vmatpush1.bf16.msra.mxu0 %v272
  %404 = vmatprep.subr.bf16.mxu0 0
  %405 = vmatpush1.bf16.msra.mxu0 %v273
  %406 = vmatprep.subr.bf16.mxu0 0
  %407 = vmatpush1.bf16.msra.mxu0 0
  %408 = vmatprep.subr.bf16.mxu0 0
  %409 = vmatpush1.bf16.msra.mxu0 0
  %410 = vmatprep.subr.bf16.mxu0 0
  %411 = vmatpush1.bf16.msra.mxu0 0
  %412 = vmatprep.subr.bf16.mxu0 0
  %413 = vmatpush1.bf16.msra.mxu0 0
  %414 = vmatprep.subr.bf16.mxu0 0
  %415 = vmatpush1.bf16.msra.mxu0 0
  %416 = vmatprep.subr.bf16.mxu0 0
  %417 = vmatpush1.bf16.msra.mxu0 0
  %418 = vmatprep.subr.bf16.mxu0 0
  %419 = vmatpush1.bf16.msra.mxu0 0
  %420 = vmatprep.subr.bf16.mxu0 0
  %421 = vmatpush1.bf16.msra.mxu0 0
  %422 = vmatprep.subr.bf16.mxu0 0
  %423 = vmatpush1.bf16.msra.mxu0 0
  %424 = vmatprep.subr.bf16.mxu0 0
  %425 = vmatpush1.bf16.msra.mxu0 0
  %426 = vmatprep.subr.bf16.mxu0 0
  %427 = vmatpush1.bf16.msra.mxu0 0
  %428 = vmatprep.subr.bf16.mxu0 0
  %429 = vmatpush1.bf16.msra.mxu0 0
  %430 = vmatprep.subr.bf16.mxu0 0
  %431 = vmatpush1.bf16.msra.mxu0 0
  %432 = vmatprep.subr.bf16.mxu0 0
  %433 = vmatpush1.bf16.msra.mxu0 0
  %434 = vmatprep.mubr.bf16.mxu0 0
  %435 = vmatmul.mubr.bf16.gmra.mrb[0].mxu0 %v294
  %v436 = vpop.f32.mrb[0].mxu0
  %v437 = vadd.f32 %v349, %v436
  %v438 = vpop.f32.mrb[0].mxu0
  %v439 = vpop.f32.mrb[0].mxu0
  %v440 = vadd.f32 %v352, %v439
  %v441 = vpop.f32.mrb[0].mxu0
  %442 = vmatprep.mubr.bf16.mxu0 0
  %443 = vmatmul.mubr.bf16.gmra.mrb[0].mxu0 %v297
  %v444 = vpop.f32.mrb[0].mxu0
  %v445 = vadd.f32 %v357, %v444
  %v446 = vpop.f32.mrb[0].mxu0
  %v447 = vpop.f32.mrb[0].mxu0
  %v448 = vadd.f32 %v360, %v447
  %v449 = vpop.f32.mrb[0].mxu0
  %450 = vmatprep.mubr.bf16.mxu0 0
  %451 = vmatmul.mubr.bf16.gmra.mrb[0].mxu0 %v300
  %v452 = vpop.f32.mrb[0].mxu0
  %v453 = vadd.f32 %v365, %v452
  %v454 = vpop.f32.mrb[0].mxu0
  %v455 = vpop.f32.mrb[0].mxu0
  %v456 = vadd.f32 %v368, %v455
  %v457 = vpop.f32.mrb[0].mxu0
  %458 = vmatprep.mubr.bf16.mxu0 0
  %459 = vmatmul.mubr.bf16.gmra.mrb[0].mxu0 %v303
  %v460 = vpop.f32.mrb[0].mxu0
  %v461 = vadd.f32 %v373, %v460
  %v462 = vpop.f32.mrb[0].mxu0
  %v463 = vpop.f32.mrb[0].mxu0
  %v464 = vadd.f32 %v376, %v463
  %v465 = vpop.f32.mrb[0].mxu0
  %466 = vmatprep.mubr.bf16.mxu0 0
  %467 = vmatmul.mubr.bf16.gmra.mrb[0].mxu0 %v306
  %v468 = vpop.f32.mrb[0].mxu0
  %v469 = vadd.f32 %v381, %v468
  %v470 = vpop.f32.mrb[0].mxu0
  %v471 = vpop.f32.mrb[0].mxu0
  %v472 = vadd.f32 %v384, %v471
  %v473 = vpop.f32.mrb[0].mxu0
  %474 = vmatprep.mubr.bf16.mxu0 0
  %475 = vmatmul.mubr.bf16.gmra.mrb[0].mxu0 %v309
  %v476 = vpop.f32.mrb[0].mxu0
  %v477 = vadd.f32 %v389, %v476
  %v478 = vpop.f32.mrb[0].mxu0
  %v479 = vpop.f32.mrb[0].mxu0
  %v480 = vadd.f32 %v392, %v479
  %v481 = vpop.f32.mrb[0].mxu0
  %482 = vmatprep.mubr.bf16.mxu0 0
  %483 = vmatmul.mubr.bf16.gmra.mrb[0].mxu0 %v312
  %v484 = vpop.f32.mrb[0].mxu0
  %v485 = vadd.f32 %v397, %v484
  %v486 = vpop.f32.mrb[0].mxu0
  %v487 = vpop.f32.mrb[0].mxu0
  %v488 = vpop.f32.mrb[0].mxu0
  %489 = vdwg.mxu0
  %vm490 = vcmask 523264
  %491 = vst.msk [vmem:[%s3] sm:$0xff] %vm490, %v437
  %492 = vst.msk [vmem:[%s3 + $0x8] sm:$0xff] %vm490, %v440
  %493 = vst.msk [vmem:[%s3 + $0x10] sm:$0xff] %vm490, %v445
  %494 = vst.msk [vmem:[%s3 + $0x18] sm:$0xff] %vm490, %v448
  %495 = vst.msk [vmem:[%s3 + $0x20] sm:$0xff] %vm490, %v453
  %496 = vst.msk [vmem:[%s3 + $0x28] sm:$0xff] %vm490, %v456
  %497 = vst.msk [vmem:[%s3 + $0x30] sm:$0xff] %vm490, %v461
  %498 = vst.msk [vmem:[%s3 + $0x38] sm:$0xff] %vm490, %v464
  %499 = vst.msk [vmem:[%s3 + $0x40] sm:$0xff] %vm490, %v469
  %500 = vst.msk [vmem:[%s3 + $0x48] sm:$0xff] %vm490, %v472
  %501 = vst.msk [vmem:[%s3 + $0x50] sm:$0xff] %vm490, %v477
  %502 = vst.msk [vmem:[%s3 + $0x58] sm:$0xff] %vm490, %v480
  %vm503 = vcmask 517120
  %504 = vst.msk [vmem:[%s3 + $0x60] sm:$0x3] %vm503, %v485
  // Predicated region
  $region14: #{conv2d_classifier_forward.7} parent=0 // pred_check
    _
  $region15: #{conv2d_classifier_forward.7} parent=0 // pred_check_branch
    %506 = sbr.rel (0) target = $region17
  $region16: #{conv2d_classifier_forward.7} parent=0 // pred_region
    _
  $region17: #{conv2d_classifier_forward.7} parent=0 // pred_fallthru
    _
  // Predicated region
  $region18: #{conv2d_classifier_forward.7} parent=0 // pred_check
    _
  $region19: #{conv2d_classifier_forward.7} parent=0 // pred_check_branch
    %508 = sbr.rel (0) target = $region21
  $region20: #{conv2d_classifier_forward.7} parent=0 // pred_region
    _
  $region21: #{conv2d_classifier_forward.7} parent=0 // pred_fallthru
    _

</llo_original>
